<compile_context>
chip_gen: v7x
topology: tpu7x:2x2x1
jax: 0.10.0
libtpu: 0.0.40
codegen_flags: <defaults>
</compile_context>

<pallas_src>
import functools
import math

import jax
import jax.numpy as jnp
from jax.experimental import pallas as pl
from jax.experimental.pallas import tpu as pltpu

_MATMUL_DTYPE = jnp.bfloat16   # MXU operand dtype; accumulation is f32
_NEG_INF = -1e9


def _compiler_params():
    # Budget VMEM per generation: ~3/4 of physical (64 MiB on v7x -> 48 MiB,
    # 128 MiB on v5e/v6e -> 96 MiB).  Conservative fallback if the query fails.
    vmem_cap = 64 * 1024 * 1024
    try:
        vmem_cap = int(pltpu.get_tpu_info().vmem_capacity_bytes)
    except Exception:
        pass
    limit = min((vmem_cap * 3) // 4, 100 * 1024 * 1024)
    return pltpu.CompilerParams(
        dimension_semantics=("parallel", "arbitrary"),
        vmem_limit_bytes=limit,
    )


# ----------------------------- in-kernel helpers -----------------------------

def _layer_norm(x, a, b, eps):
    # PyTorch NormLayer: a * (x - mean) / (std + eps) + b.
    # std is UNBIASED and eps is added to std (NOT rsqrt(var + eps)).
    d = x.shape[-1]
    mean = jnp.mean(x, axis=-1, keepdims=True)
    diff = x - mean
    var = jnp.sum(diff * diff, axis=-1, keepdims=True) * (1.0 / float(d - 1))
    inv = pl.reciprocal(jnp.sqrt(var) + eps)        # exact; parity with torch
    return a * (diff * inv) + b


def _mha_into(attn_scr, q, k, v, mask, num_heads, scale_inv):
    """softmax((q*scale) k^T, masked) v per head, written into attn_scr (Sq,D).

    Heads are static lane slices; each head's (Sq, dh) result is stored
    directly into the VMEM scratch at its lane offset (no concat, only one
    head's f32 output live at a time).  The softmax scale is folded into q.
    """
    _, d = q.shape
    dh = d // num_heads
    keep = mask > 0.0
    for h in range(num_heads):                       # num_heads small & static
        lo = h * dh
        qh = (q[:, lo:lo + dh] * scale_inv).astype(_MATMUL_DTYPE)
        kh = k[:, lo:lo + dh].astype(_MATMUL_DTYPE)
        vh = v[:, lo:lo + dh].astype(_MATMUL_DTYPE)
        # s = (q*scale) @ k^T  (contract last dims of both)
        s = jax.lax.dot_general(
            qh, kh, dimension_numbers=(((1,), (1,)), ((), ())),
            preferred_element_type=jnp.float32)
        # matches PyTorch masked_fill(mask == 0, -1e9) then softmax
        s = jnp.where(keep, s, _NEG_INF)
        s = s - jnp.max(s, axis=-1, keepdims=True)
        p = jnp.exp(s)
        p = p * pl.reciprocal(jnp.sum(p, axis=-1, keepdims=True), approx=True)
        attn_scr[:, lo:lo + dh] = jnp.dot(p.astype(_MATMUL_DTYPE), vh,
                                          preferred_element_type=jnp.float32)


# ------------------------------- fused kernel ---------------------------------

def _decoder_stack_kernel(x_ref, mem_ref, tmask_ref, smask_ref,
                          sa_na_ref, sa_nb_ref, sa_wqkv_ref, sa_bqkv_ref,
                          sa_wo_ref, sa_bo_ref,
                          ca_na_ref, ca_nb_ref, ca_wq_ref, ca_bq_ref,
                          ca_wkv_ref, ca_bkv_ref, ca_wo_ref, ca_bo_ref,
                          ff_na_ref, ff_nb_ref, ff_w1_ref, ff_b1_ref,
                          ff_w2_ref, ff_b2_ref,
                          fn_a_ref, fn_b_ref,
                          o_ref,
                          x_scr, attn_scr,
                          *, num_heads, scale_inv, eps):
    # Grid = (batch, layer).  One grid step applies ONE full decoder layer to
    # one batch element; the residual stream is carried in x_scr across the
    # inner (arbitrary) layer axis, so activations never touch HBM between
    # sublayers or layers.  The output is written only at the last layer.
    layer = pl.program_id(1)
    n_layers = pl.num_programs(1)
    d = x_scr.shape[-1]

    @pl.when(layer == 0)
    def _():
        x_scr[...] = x_ref[0]                         # (Sq, D) f32

    x = x_scr[...]

    # ---------------- masked self-attention sublayer ----------------
    xn = _layer_norm(x, sa_na_ref[0], sa_nb_ref[0], eps)
    qkv = (jnp.dot(xn.astype(_MATMUL_DTYPE), sa_wqkv_ref[0],
                   preferred_element_type=jnp.float32) + sa_bqkv_ref[0])
    _mha_into(attn_scr, qkv[:, :d], qkv[:, d:2 * d], qkv[:, 2 * d:],
              tmask_ref[0, 0], num_heads, scale_inv)
    attn_out = (jnp.dot(attn_scr[...].astype(_MATMUL_DTYPE), sa_wo_ref[0],
                        preferred_element_type=jnp.float32) + sa_bo_ref[0])
    x = x + attn_out

    # ---------------- cross-attention over encoder memory ----------------
    mem = mem_ref[0]                                  # (Sk, D) f32
    xn = _layer_norm(x, ca_na_ref[0], ca_nb_ref[0], eps)
    q = (jnp.dot(xn.astype(_MATMUL_DTYPE), ca_wq_ref[0],
                 preferred_element_type=jnp.float32) + ca_bq_ref[0])
    kv = (jnp.dot(mem.astype(_MATMUL_DTYPE), ca_wkv_ref[0],
                  preferred_element_type=jnp.float32) + ca_bkv_ref[0])
    _mha_into(attn_scr, q, kv[:, :d], kv[:, d:], smask_ref[0, 0],
              num_heads, scale_inv)
    attn_out = (jnp.dot(attn_scr[...].astype(_MATMUL_DTYPE), ca_wo_ref[0],
                        preferred_element_type=jnp.float32) + ca_bo_ref[0])
    x = x + attn_out

    # ---------------- position-wise feed-forward ----------------
    xn = _layer_norm(x, ff_na_ref[0], ff_nb_ref[0], eps)
    h = jnp.maximum(
        jnp.dot(xn.astype(_MATMUL_DTYPE), ff_w1_ref[0],
                preferred_element_type=jnp.float32) + ff_b1_ref[0], 0.0)
    ff = (jnp.dot(h.astype(_MATMUL_DTYPE), ff_w2_ref[0],
                  preferred_element_type=jnp.float32) + ff_b2_ref[0])
    x = x + ff

    x_scr[...] = x                                    # carry residual stream

    @pl.when(layer == n_layers - 1)
    def _():
        o_ref[0] = _layer_norm(x, fn_a_ref[...], fn_b_ref[...], eps)


# --------------------------------- wrapper ------------------------------------

def _layer_spec(*dims):
    """BlockSpec for a per-layer-stacked parameter of shape (N, *dims)."""
    zeros = (0,) * len(dims)
    return pl.BlockSpec((1,) + tuple(dims), lambda b, l, _z=zeros: (l,) + _z)


def transformer_decoder_forward(x, memory, source_mask, target_mask, params,
                                *, num_heads, eps=1e-6):
    b, sq, d = x.shape
    sk = memory.shape[1]
    n_layers = params["sa_wqkv"].shape[0]
    d_ff = params["ff_w1"].shape[-1]
    scale_inv = 1.0 / math.sqrt(d // num_heads)

    kern = functools.partial(_decoder_stack_kernel, num_heads=num_heads,
                             scale_inv=scale_inv, eps=eps)

    in_specs = [
        pl.BlockSpec((1, sq, d), lambda bb, l: (bb, 0, 0)),            # x
        pl.BlockSpec((1, sk, d), lambda bb, l: (bb, 0, 0)),            # memory
        pl.BlockSpec((1, 1, sq, sq), lambda bb, l: (bb, 0, 0, 0)),     # tgt mask
        pl.BlockSpec((1, 1, sq, sk), lambda bb, l: (bb, 0, 0, 0)),     # src mask
        # self-attention params (stacked over layers)
        _layer_spec(1, d), _layer_spec(1, d),                          # na, nb
        _layer_spec(d, 3 * d), _layer_spec(1, 3 * d),                  # Wqkv, b
        _layer_spec(d, d), _layer_spec(1, d),                          # Wo, bo
        # cross-attention params
        _layer_spec(1, d), _layer_spec(1, d),                          # na, nb
        _layer_spec(d, d), _layer_spec(1, d),                          # Wq, bq
        _layer_spec(d, 2 * d), _layer_spec(1, 2 * d),                  # Wkv, bkv
        _layer_spec(d, d), _layer_spec(1, d),                          # Wo, bo
        # FFN params
        _layer_spec(1, d), _layer_spec(1, d),                          # na, nb
        _layer_spec(d, d_ff), _layer_spec(1, d_ff),                    # W1, b1
        _layer_spec(d_ff, d), _layer_spec(1, d),                       # W2, b2
        # final NormLayer (grid-constant)
        pl.BlockSpec((1, d), lambda bb, l: (0, 0)),                    # a
        pl.BlockSpec((1, d), lambda bb, l: (0, 0)),                    # b
    ]

    return pl.pallas_call(
        kern,
        out_shape=jax.ShapeDtypeStruct((b, sq, d), jnp.float32),
        grid=(b, n_layers),
        in_specs=in_specs,
        out_specs=pl.BlockSpec((1, sq, d), lambda bb, l: (bb, 0, 0)),
        scratch_shapes=[
            pltpu.VMEM((sq, d), jnp.float32),   # residual stream carry
            pltpu.VMEM((sq, d), jnp.float32),   # per-head attention outputs
        ],
        compiler_params=_compiler_params(),
    )(x, memory, target_mask, source_mask,
      params["sa_na"], params["sa_nb"], params["sa_wqkv"], params["sa_bqkv"],
      params["sa_wo"], params["sa_bo"],
      params["ca_na"], params["ca_nb"], params["ca_wq"], params["ca_bq"],
      params["ca_wkv"], params["ca_bkv"], params["ca_wo"], params["ca_bo"],
      params["ff_na"], params["ff_nb"], params["ff_w1"], params["ff_b1"],
      params["ff_w2"], params["ff_b2"],
      params["fn_a"], params["fn_b"])


# --------------------------- parameter construction ---------------------------

def init_decoder_params(key, n_layers, d_model, d_ff):
    ks = jax.random.split(key, 7)

    def w(kk, shape, fan_in):
        # Weights are stored bf16 (deliberate MXU-operand choice).
        return (jax.random.normal(kk, (n_layers,) + shape, jnp.float32)
                / math.sqrt(fan_in)).astype(_MATMUL_DTYPE)

    ones_d = jnp.ones((n_layers, 1, d_model), jnp.float32)
    zeros_d = jnp.zeros((n_layers, 1, d_model), jnp.float32)
    return dict(
        # self-attention
        sa_na=ones_d, sa_nb=zeros_d,
        sa_wqkv=w(ks[0], (d_model, 3 * d_model), d_model),
        sa_bqkv=jnp.zeros((n_layers, 1, 3 * d_model), jnp.float32),
        sa_wo=w(ks[1], (d_model, d_model), d_model),
        sa_bo=zeros_d,
        # cross-attention
        ca_na=ones_d, ca_nb=zeros_d,
        ca_wq=w(ks[2], (d_model, d_model), d_model),
        ca_bq=zeros_d,
        ca_wkv=w(ks[3], (d_model, 2 * d_model), d_model),
        ca_bkv=jnp.zeros((n_layers, 1, 2 * d_model), jnp.float32),
        ca_wo=w(ks[4], (d_model, d_model), d_model),
        ca_bo=zeros_d,
        # FFN
        ff_na=ones_d, ff_nb=zeros_d,
        ff_w1=w(ks[5], (d_model, d_ff), d_model),
        ff_b1=jnp.zeros((n_layers, 1, d_ff), jnp.float32),
        ff_w2=w(ks[6], (d_ff, d_model), d_ff),
        ff_b2=zeros_d,
        # final NormLayer
        fn_a=jnp.ones((1, d_model), jnp.float32),
        fn_b=jnp.zeros((1, d_model), jnp.float32),
    )


# ------------------------------------ main -------------------------------------

if __name__ == "__main__":
    B, S_TGT, S_SRC = 2, 8, 8
    D_MODEL, D_FF, N_HEADS, N_LAYERS = 32, 64, 4, 2

    root = jax.random.PRNGKey(0)
    k_x, k_mem, k_params = jax.random.split(root, 3)

    x = jax.random.normal(k_x, (B, S_TGT, D_MODEL), jnp.float32)
    memory = jax.random.normal(k_mem, (B, S_SRC, D_MODEL), jnp.float32)

    # target mask: causal (B, 1, S_tgt, S_tgt); source mask: all valid.
    causal = jnp.tril(jnp.ones((S_TGT, S_TGT), jnp.float32))
    target_mask = jnp.broadcast_to(causal, (B, 1, S_TGT, S_TGT))
    source_mask = jnp.ones((B, 1, S_TGT, S_SRC), jnp.float32)

    params = init_decoder_params(k_params, N_LAYERS, D_MODEL, D_FF)

    fwd = jax.jit(functools.partial(transformer_decoder_forward,
                                    num_heads=N_HEADS))
    out = jax.block_until_ready(fwd(x, memory, source_mask, target_mask, params))

    assert out.shape == (B, S_TGT, D_MODEL)
    assert bool(jnp.all(jnp.isfinite(out)))
    print("KERNEL_OK")
</pallas_src>

<mosaic_0001>
module attributes {stable_mosaic.version = 11 : i64} {
  func.func @_decoder_stack_kernel(%arg0: i32, %arg1: i32, %arg2: memref<1x8x32xf32, #tpu.memory_space<vmem>>, %arg3: memref<1x8x32xf32, #tpu.memory_space<vmem>>, %arg4: memref<1x1x8x8xf32, #tpu.memory_space<vmem>>, %arg5: memref<1x1x8x8xf32, #tpu.memory_space<vmem>>, %arg6: memref<1x1x32xf32, #tpu.memory_space<vmem>>, %arg7: memref<1x1x32xf32, #tpu.memory_space<vmem>>, %arg8: memref<1x32x96xbf16, #tpu.memory_space<vmem>>, %arg9: memref<1x1x96xf32, #tpu.memory_space<vmem>>, %arg10: memref<1x32x32xbf16, #tpu.memory_space<vmem>>, %arg11: memref<1x1x32xf32, #tpu.memory_space<vmem>>, %arg12: memref<1x1x32xf32, #tpu.memory_space<vmem>>, %arg13: memref<1x1x32xf32, #tpu.memory_space<vmem>>, %arg14: memref<1x32x32xbf16, #tpu.memory_space<vmem>>, %arg15: memref<1x1x32xf32, #tpu.memory_space<vmem>>, %arg16: memref<1x32x64xbf16, #tpu.memory_space<vmem>>, %arg17: memref<1x1x64xf32, #tpu.memory_space<vmem>>, %arg18: memref<1x32x32xbf16, #tpu.memory_space<vmem>>, %arg19: memref<1x1x32xf32, #tpu.memory_space<vmem>>, %arg20: memref<1x1x32xf32, #tpu.memory_space<vmem>>, %arg21: memref<1x1x32xf32, #tpu.memory_space<vmem>>, %arg22: memref<1x32x64xbf16, #tpu.memory_space<vmem>>, %arg23: memref<1x1x64xf32, #tpu.memory_space<vmem>>, %arg24: memref<1x64x32xbf16, #tpu.memory_space<vmem>>, %arg25: memref<1x1x32xf32, #tpu.memory_space<vmem>>, %arg26: memref<1x32xf32, #tpu.memory_space<vmem>>, %arg27: memref<1x32xf32, #tpu.memory_space<vmem>>, %arg28: memref<1x8x32xf32, #tpu.memory_space<vmem>>, %arg29: memref<8x32xf32, #tpu.memory_space<vmem>>, %arg30: memref<8x32xf32, #tpu.memory_space<vmem>>) attributes {dimension_semantics = [#tpu.dimension_semantics<parallel>, #tpu.dimension_semantics<arbitrary>], iteration_bounds = array<i64: 2, 2>, scalar_prefetch = 0 : i64, scratch_operands = 2 : i64, tpu.core_type = #tpu.core_type<tc>, window_params = [{transform_indices = @transform_0, window_bounds = array<i64: 1, 8, 32>}, {transform_indices = @transform_1, window_bounds = array<i64: 1, 8, 32>}, {transform_indices = @transform_2, window_bounds = array<i64: 1, 1, 8, 8>}, {transform_indices = @transform_3, window_bounds = array<i64: 1, 1, 8, 8>}, {transform_indices = @transform_4, window_bounds = array<i64: 1, 1, 32>}, {transform_indices = @transform_5, window_bounds = array<i64: 1, 1, 32>}, {transform_indices = @transform_6, window_bounds = array<i64: 1, 32, 96>}, {transform_indices = @transform_7, window_bounds = array<i64: 1, 1, 96>}, {transform_indices = @transform_8, window_bounds = array<i64: 1, 32, 32>}, {transform_indices = @transform_9, window_bounds = array<i64: 1, 1, 32>}, {transform_indices = @transform_10, window_bounds = array<i64: 1, 1, 32>}, {transform_indices = @transform_11, window_bounds = array<i64: 1, 1, 32>}, {transform_indices = @transform_12, window_bounds = array<i64: 1, 32, 32>}, {transform_indices = @transform_13, window_bounds = array<i64: 1, 1, 32>}, {transform_indices = @transform_14, window_bounds = array<i64: 1, 32, 64>}, {transform_indices = @transform_15, window_bounds = array<i64: 1, 1, 64>}, {transform_indices = @transform_16, window_bounds = array<i64: 1, 32, 32>}, {transform_indices = @transform_17, window_bounds = array<i64: 1, 1, 32>}, {transform_indices = @transform_18, window_bounds = array<i64: 1, 1, 32>}, {transform_indices = @transform_19, window_bounds = array<i64: 1, 1, 32>}, {transform_indices = @transform_20, window_bounds = array<i64: 1, 32, 64>}, {transform_indices = @transform_21, window_bounds = array<i64: 1, 1, 64>}, {transform_indices = @transform_22, window_bounds = array<i64: 1, 64, 32>}, {transform_indices = @transform_23, window_bounds = array<i64: 1, 1, 32>}, {pipeline_mode = #tpu.pipeline_mode<synchronous>, transform_indices = @transform_24, window_bounds = array<i64: 1, 32>}, {pipeline_mode = #tpu.pipeline_mode<synchronous>, transform_indices = @transform_25, window_bounds = array<i64: 1, 32>}, {transform_indices = @transform_26, window_bounds = array<i64: 1, 8, 32>}]} {
    %c0_i32 = arith.constant 0 : i32
    %0 = arith.cmpi eq, %arg1, %c0_i32 : i32
    %1 = arith.extui %0 : i1 to i32
    %c0_i32_0 = arith.constant 0 : i32
    %2 = arith.cmpi ne, %1, %c0_i32_0 : i32
    scf.if %2 {
      %c0_165 = arith.constant 0 : index
      %c0_166 = arith.constant 0 : index
      %c0_167 = arith.constant 0 : index
      %353 = vector.load %arg2[%c0_165, %c0_166, %c0_167] : memref<1x8x32xf32, #tpu.memory_space<vmem>>, vector<1x8x32xf32>
      %354 = vector.shape_cast %353 : vector<1x8x32xf32> to vector<8x32xf32>
      %c0_168 = arith.constant 0 : index
      %c0_169 = arith.constant 0 : index
      %355 = vector.load %arg29[%c0_168, %c0_169] : memref<8x32xf32, #tpu.memory_space<vmem>>, vector<8x32xf32>
      tpu.vector_store %arg29[%c0_168, %c0_169], %354 {strides = array<i32>} : memref<8x32xf32, #tpu.memory_space<vmem>>, vector<8x32xf32>,
    } else {
    }
    %c0 = arith.constant 0 : index
    %c0_1 = arith.constant 0 : index
    %3 = vector.load %arg29[%c0, %c0_1] : memref<8x32xf32, #tpu.memory_space<vmem>>, vector<8x32xf32>
    %c0_2 = arith.constant 0 : index
    %c0_3 = arith.constant 0 : index
    %c0_4 = arith.constant 0 : index
    %4 = vector.load %arg6[%c0_2, %c0_3, %c0_4] : memref<1x1x32xf32, #tpu.memory_space<vmem>>, vector<1x1x32xf32>
    %5 = vector.shape_cast %4 : vector<1x1x32xf32> to vector<1x32xf32>
    %c0_5 = arith.constant 0 : index
    %c0_6 = arith.constant 0 : index
    %c0_7 = arith.constant 0 : index
    %6 = vector.load %arg7[%c0_5, %c0_6, %c0_7] : memref<1x1x32xf32, #tpu.memory_space<vmem>>, vector<1x1x32xf32>
    %7 = vector.shape_cast %6 : vector<1x1x32xf32> to vector<1x32xf32>
    %cst = arith.constant dense<0.000000e+00> : vector<8xf32>
    %8 = vector.multi_reduction <add>, %3, %cst [1] : vector<8x32xf32> to vector<8xf32>
    %9 = vector.shape_cast %8 : vector<8xf32> to vector<8x1xf32>
    %cst_8 = arith.constant 3.200000e+01 : f32
    %10 = vector.broadcast %cst_8 : f32 to vector<8x1xf32>
    %11 = arith.divf %9, %10 : vector<8x1xf32>
    %12 = vector.broadcast %11 : vector<8x1xf32> to vector<8x32xf32>
    %13 = arith.subf %3, %12 : vector<8x32xf32>
    %14 = arith.mulf %13, %13 : vector<8x32xf32>
    %cst_9 = arith.constant dense<0.000000e+00> : vector<8xf32>
    %15 = vector.multi_reduction <add>, %14, %cst_9 [1] : vector<8x32xf32> to vector<8xf32>
    %16 = vector.shape_cast %15 : vector<8xf32> to vector<8x1xf32>
    %cst_10 = arith.constant 0.0322580636 : f32
    %17 = vector.broadcast %cst_10 : f32 to vector<8x1xf32>
    %18 = arith.mulf %16, %17 : vector<8x1xf32>
    %19 = math.sqrt %18 : vector<8x1xf32>
    %cst_11 = arith.constant 9.99999997E-7 : f32
    %20 = vector.broadcast %cst_11 : f32 to vector<8x1xf32>
    %21 = arith.addf %19, %20 : vector<8x1xf32>
    %22 = tpu.reciprocal %21 : vector<8x1xf32> -> vector<8x1xf32>
    %23 = vector.broadcast %22 : vector<8x1xf32> to vector<8x32xf32>
    %24 = arith.mulf %13, %23 : vector<8x32xf32>
    %25 = vector.broadcast %5 : vector<1x32xf32> to vector<8x32xf32>
    %26 = arith.mulf %25, %24 : vector<8x32xf32>
    %27 = vector.broadcast %7 : vector<1x32xf32> to vector<8x32xf32>
    %28 = arith.addf %26, %27 : vector<8x32xf32>
    %29 = arith.truncf %28 : vector<8x32xf32> to vector<8x32xbf16>
    %c0_12 = arith.constant 0 : index
    %c0_13 = arith.constant 0 : index
    %c0_14 = arith.constant 0 : index
    %30 = vector.load %arg8[%c0_12, %c0_13, %c0_14] : memref<1x32x96xbf16, #tpu.memory_space<vmem>>, vector<1x32x96xbf16>
    %31 = vector.shape_cast %30 : vector<1x32x96xbf16> to vector<32x96xbf16>
    %cst_15 = arith.constant dense<0.000000e+00> : vector<8x96xf32>
    %32 = tpu.matmul %29, %31, %cst_15 {dimension_numbers = #tpu.dot_dimension_numbers<[1], [0], [0], [1], [0, 0, 1, 1], [], []>} : vector<8x32xbf16>, vector<32x96xbf16>, vector<8x96xf32> -> vector<8x96xf32>
    %c0_16 = arith.constant 0 : index
    %c0_17 = arith.constant 0 : index
    %c0_18 = arith.constant 0 : index
    %33 = vector.load %arg9[%c0_16, %c0_17, %c0_18] : memref<1x1x96xf32, #tpu.memory_space<vmem>>, vector<1x1x96xf32>
    %34 = vector.shape_cast %33 : vector<1x1x96xf32> to vector<1x96xf32>
    %35 = vector.broadcast %34 : vector<1x96xf32> to vector<8x96xf32>
    %36 = arith.addf %32, %35 : vector<8x96xf32>
    %37 = vector.extract_strided_slice %36 {offsets = [0, 0], sizes = [8, 32], strides = [1, 1]} : vector<8x96xf32> to vector<8x32xf32>
    %38 = vector.extract_strided_slice %36 {offsets = [0, 32], sizes = [8, 32], strides = [1, 1]} : vector<8x96xf32> to vector<8x32xf32>
    %39 = vector.extract_strided_slice %36 {offsets = [0, 64], sizes = [8, 32], strides = [1, 1]} : vector<8x96xf32> to vector<8x32xf32>
    %c0_19 = arith.constant 0 : index
    %c0_20 = arith.constant 0 : index
    %c0_21 = arith.constant 0 : index
    %c0_22 = arith.constant 0 : index
    %40 = vector.load %arg4[%c0_19, %c0_20, %c0_21, %c0_22] : memref<1x1x8x8xf32, #tpu.memory_space<vmem>>, vector<1x1x8x8xf32>
    %41 = vector.shape_cast %40 : vector<1x1x8x8xf32> to vector<8x8xf32>
    %cst_23 = arith.constant 0.000000e+00 : f32
    %42 = vector.broadcast %cst_23 : f32 to vector<8x8xf32>
    %43 = arith.cmpf ogt, %41, %42 : vector<8x8xf32>
    %44 = vector.extract_strided_slice %37 {offsets = [0, 0], sizes = [8, 8], strides = [1, 1]} : vector<8x32xf32> to vector<8x8xf32>
    %cst_24 = arith.constant 0.353553385 : f32
    %45 = vector.broadcast %cst_24 : f32 to vector<8x8xf32>
    %46 = arith.mulf %44, %45 : vector<8x8xf32>
    %47 = arith.truncf %46 : vector<8x8xf32> to vector<8x8xbf16>
    %48 = vector.extract_strided_slice %38 {offsets = [0, 0], sizes = [8, 8], strides = [1, 1]} : vector<8x32xf32> to vector<8x8xf32>
    %49 = arith.truncf %48 : vector<8x8xf32> to vector<8x8xbf16>
    %50 = vector.extract_strided_slice %39 {offsets = [0, 0], sizes = [8, 8], strides = [1, 1]} : vector<8x32xf32> to vector<8x8xf32>
    %51 = arith.truncf %50 : vector<8x8xf32> to vector<8x8xbf16>
    %cst_25 = arith.constant dense<0.000000e+00> : vector<8x8xf32>
    %52 = tpu.matmul %47, %49, %cst_25 {dimension_numbers = #tpu.dot_dimension_numbers<[1], [1], [0], [0], [0, 0, 1, 0], [], []>} : vector<8x8xbf16>, vector<8x8xbf16>, vector<8x8xf32> -> vector<8x8xf32>
    %cst_26 = arith.constant -1.000000e+09 : f32
    %53 = vector.broadcast %cst_26 : f32 to vector<8x8xf32>
    %54 = arith.select %43, %52, %53 : vector<8x8xi1>, vector<8x8xf32>
    %cst_27 = arith.constant dense<0xFF800000> : vector<8xf32>
    %55 = vector.multi_reduction <maximumf>, %54, %cst_27 [1] : vector<8x8xf32> to vector<8xf32>
    %56 = vector.shape_cast %55 : vector<8xf32> to vector<8x1xf32>
    %57 = vector.broadcast %56 : vector<8x1xf32> to vector<8x8xf32>
    %58 = arith.subf %54, %57 : vector<8x8xf32>
    %59 = math.exp %58 : vector<8x8xf32>
    %cst_28 = arith.constant dense<0.000000e+00> : vector<8xf32>
    %60 = vector.multi_reduction <add>, %59, %cst_28 [1] : vector<8x8xf32> to vector<8xf32>
    %61 = vector.shape_cast %60 : vector<8xf32> to vector<8x1xf32>
    %62 = tpu.reciprocal %61 {approx = true} : vector<8x1xf32> -> vector<8x1xf32>
    %63 = vector.broadcast %62 : vector<8x1xf32> to vector<8x8xf32>
    %64 = arith.mulf %59, %63 : vector<8x8xf32>
    %65 = arith.truncf %64 : vector<8x8xf32> to vector<8x8xbf16>
    %cst_29 = arith.constant dense<0.000000e+00> : vector<8x8xf32>
    %66 = tpu.matmul %65, %51, %cst_29 {dimension_numbers = #tpu.dot_dimension_numbers<[1], [0], [0], [1], [0, 0, 1, 1], [], []>} : vector<8x8xbf16>, vector<8x8xbf16>, vector<8x8xf32> -> vector<8x8xf32>
    %c0_30 = arith.constant 0 : index
    %c0_31 = arith.constant 0 : index
    %67 = vector.load %arg30[%c0_30, %c0_31] : memref<8x32xf32, #tpu.memory_space<vmem>>, vector<8x8xf32>
    tpu.vector_store %arg30[%c0_30, %c0_31], %66 {strides = array<i32>} : memref<8x32xf32, #tpu.memory_space<vmem>>, vector<8x8xf32>,
    %68 = vector.extract_strided_slice %37 {offsets = [0, 8], sizes = [8, 8], strides = [1, 1]} : vector<8x32xf32> to vector<8x8xf32>
    %cst_32 = arith.constant 0.353553385 : f32
    %69 = vector.broadcast %cst_32 : f32 to vector<8x8xf32>
    %70 = arith.mulf %68, %69 : vector<8x8xf32>
    %71 = arith.truncf %70 : vector<8x8xf32> to vector<8x8xbf16>
    %72 = vector.extract_strided_slice %38 {offsets = [0, 8], sizes = [8, 8], strides = [1, 1]} : vector<8x32xf32> to vector<8x8xf32>
    %73 = arith.truncf %72 : vector<8x8xf32> to vector<8x8xbf16>
    %74 = vector.extract_strided_slice %39 {offsets = [0, 8], sizes = [8, 8], strides = [1, 1]} : vector<8x32xf32> to vector<8x8xf32>
    %75 = arith.truncf %74 : vector<8x8xf32> to vector<8x8xbf16>
    %cst_33 = arith.constant dense<0.000000e+00> : vector<8x8xf32>
    %76 = tpu.matmul %71, %73, %cst_33 {dimension_numbers = #tpu.dot_dimension_numbers<[1], [1], [0], [0], [0, 0, 1, 0], [], []>} : vector<8x8xbf16>, vector<8x8xbf16>, vector<8x8xf32> -> vector<8x8xf32>
    %cst_34 = arith.constant -1.000000e+09 : f32
    %77 = vector.broadcast %cst_34 : f32 to vector<8x8xf32>
    %78 = arith.select %43, %76, %77 : vector<8x8xi1>, vector<8x8xf32>
    %cst_35 = arith.constant dense<0xFF800000> : vector<8xf32>
    %79 = vector.multi_reduction <maximumf>, %78, %cst_35 [1] : vector<8x8xf32> to vector<8xf32>
    %80 = vector.shape_cast %79 : vector<8xf32> to vector<8x1xf32>
    %81 = vector.broadcast %80 : vector<8x1xf32> to vector<8x8xf32>
    %82 = arith.subf %78, %81 : vector<8x8xf32>
    %83 = math.exp %82 : vector<8x8xf32>
    %cst_36 = arith.constant dense<0.000000e+00> : vector<8xf32>
    %84 = vector.multi_reduction <add>, %83, %cst_36 [1] : vector<8x8xf32> to vector<8xf32>
    %85 = vector.shape_cast %84 : vector<8xf32> to vector<8x1xf32>
    %86 = tpu.reciprocal %85 {approx = true} : vector<8x1xf32> -> vector<8x1xf32>
    %87 = vector.broadcast %86 : vector<8x1xf32> to vector<8x8xf32>
    %88 = arith.mulf %83, %87 : vector<8x8xf32>
    %89 = arith.truncf %88 : vector<8x8xf32> to vector<8x8xbf16>
    %cst_37 = arith.constant dense<0.000000e+00> : vector<8x8xf32>
    %90 = tpu.matmul %89, %75, %cst_37 {dimension_numbers = #tpu.dot_dimension_numbers<[1], [0], [0], [1], [0, 0, 1, 1], [], []>} : vector<8x8xbf16>, vector<8x8xbf16>, vector<8x8xf32> -> vector<8x8xf32>
    %c0_38 = arith.constant 0 : index
    %c8 = arith.constant 8 : index
    %91 = vector.load %arg30[%c0_38, %c8] : memref<8x32xf32, #tpu.memory_space<vmem>>, vector<8x8xf32>
    tpu.vector_store %arg30[%c0_38, %c8], %90 {strides = array<i32>} : memref<8x32xf32, #tpu.memory_space<vmem>>, vector<8x8xf32>,
    %92 = vector.extract_strided_slice %37 {offsets = [0, 16], sizes = [8, 8], strides = [1, 1]} : vector<8x32xf32> to vector<8x8xf32>
    %cst_39 = arith.constant 0.353553385 : f32
    %93 = vector.broadcast %cst_39 : f32 to vector<8x8xf32>
    %94 = arith.mulf %92, %93 : vector<8x8xf32>
    %95 = arith.truncf %94 : vector<8x8xf32> to vector<8x8xbf16>
    %96 = vector.extract_strided_slice %38 {offsets = [0, 16], sizes = [8, 8], strides = [1, 1]} : vector<8x32xf32> to vector<8x8xf32>
    %97 = arith.truncf %96 : vector<8x8xf32> to vector<8x8xbf16>
    %98 = vector.extract_strided_slice %39 {offsets = [0, 16], sizes = [8, 8], strides = [1, 1]} : vector<8x32xf32> to vector<8x8xf32>
    %99 = arith.truncf %98 : vector<8x8xf32> to vector<8x8xbf16>
    %cst_40 = arith.constant dense<0.000000e+00> : vector<8x8xf32>
    %100 = tpu.matmul %95, %97, %cst_40 {dimension_numbers = #tpu.dot_dimension_numbers<[1], [1], [0], [0], [0, 0, 1, 0], [], []>} : vector<8x8xbf16>, vector<8x8xbf16>, vector<8x8xf32> -> vector<8x8xf32>
    %cst_41 = arith.constant -1.000000e+09 : f32
    %101 = vector.broadcast %cst_41 : f32 to vector<8x8xf32>
    %102 = arith.select %43, %100, %101 : vector<8x8xi1>, vector<8x8xf32>
    %cst_42 = arith.constant dense<0xFF800000> : vector<8xf32>
    %103 = vector.multi_reduction <maximumf>, %102, %cst_42 [1] : vector<8x8xf32> to vector<8xf32>
    %104 = vector.shape_cast %103 : vector<8xf32> to vector<8x1xf32>
    %105 = vector.broadcast %104 : vector<8x1xf32> to vector<8x8xf32>
    %106 = arith.subf %102, %105 : vector<8x8xf32>
    %107 = math.exp %106 : vector<8x8xf32>
    %cst_43 = arith.constant dense<0.000000e+00> : vector<8xf32>
    %108 = vector.multi_reduction <add>, %107, %cst_43 [1] : vector<8x8xf32> to vector<8xf32>
    %109 = vector.shape_cast %108 : vector<8xf32> to vector<8x1xf32>
    %110 = tpu.reciprocal %109 {approx = true} : vector<8x1xf32> -> vector<8x1xf32>
    %111 = vector.broadcast %110 : vector<8x1xf32> to vector<8x8xf32>
    %112 = arith.mulf %107, %111 : vector<8x8xf32>
    %113 = arith.truncf %112 : vector<8x8xf32> to vector<8x8xbf16>
    %cst_44 = arith.constant dense<0.000000e+00> : vector<8x8xf32>
    %114 = tpu.matmul %113, %99, %cst_44 {dimension_numbers = #tpu.dot_dimension_numbers<[1], [0], [0], [1], [0, 0, 1, 1], [], []>} : vector<8x8xbf16>, vector<8x8xbf16>, vector<8x8xf32> -> vector<8x8xf32>
    %c0_45 = arith.constant 0 : index
    %c16 = arith.constant 16 : index
    %115 = vector.load %arg30[%c0_45, %c16] : memref<8x32xf32, #tpu.memory_space<vmem>>, vector<8x8xf32>
    tpu.vector_store %arg30[%c0_45, %c16], %114 {strides = array<i32>} : memref<8x32xf32, #tpu.memory_space<vmem>>, vector<8x8xf32>,
    %116 = vector.extract_strided_slice %37 {offsets = [0, 24], sizes = [8, 8], strides = [1, 1]} : vector<8x32xf32> to vector<8x8xf32>
    %cst_46 = arith.constant 0.353553385 : f32
    %117 = vector.broadcast %cst_46 : f32 to vector<8x8xf32>
    %118 = arith.mulf %116, %117 : vector<8x8xf32>
    %119 = arith.truncf %118 : vector<8x8xf32> to vector<8x8xbf16>
    %120 = vector.extract_strided_slice %38 {offsets = [0, 24], sizes = [8, 8], strides = [1, 1]} : vector<8x32xf32> to vector<8x8xf32>
    %121 = arith.truncf %120 : vector<8x8xf32> to vector<8x8xbf16>
    %122 = vector.extract_strided_slice %39 {offsets = [0, 24], sizes = [8, 8], strides = [1, 1]} : vector<8x32xf32> to vector<8x8xf32>
    %123 = arith.truncf %122 : vector<8x8xf32> to vector<8x8xbf16>
    %cst_47 = arith.constant dense<0.000000e+00> : vector<8x8xf32>
    %124 = tpu.matmul %119, %121, %cst_47 {dimension_numbers = #tpu.dot_dimension_numbers<[1], [1], [0], [0], [0, 0, 1, 0], [], []>} : vector<8x8xbf16>, vector<8x8xbf16>, vector<8x8xf32> -> vector<8x8xf32>
    %cst_48 = arith.constant -1.000000e+09 : f32
    %125 = vector.broadcast %cst_48 : f32 to vector<8x8xf32>
    %126 = arith.select %43, %124, %125 : vector<8x8xi1>, vector<8x8xf32>
    %cst_49 = arith.constant dense<0xFF800000> : vector<8xf32>
    %127 = vector.multi_reduction <maximumf>, %126, %cst_49 [1] : vector<8x8xf32> to vector<8xf32>
    %128 = vector.shape_cast %127 : vector<8xf32> to vector<8x1xf32>
    %129 = vector.broadcast %128 : vector<8x1xf32> to vector<8x8xf32>
    %130 = arith.subf %126, %129 : vector<8x8xf32>
    %131 = math.exp %130 : vector<8x8xf32>
    %cst_50 = arith.constant dense<0.000000e+00> : vector<8xf32>
    %132 = vector.multi_reduction <add>, %131, %cst_50 [1] : vector<8x8xf32> to vector<8xf32>
    %133 = vector.shape_cast %132 : vector<8xf32> to vector<8x1xf32>
    %134 = tpu.reciprocal %133 {approx = true} : vector<8x1xf32> -> vector<8x1xf32>
    %135 = vector.broadcast %134 : vector<8x1xf32> to vector<8x8xf32>
    %136 = arith.mulf %131, %135 : vector<8x8xf32>
    %137 = arith.truncf %136 : vector<8x8xf32> to vector<8x8xbf16>
    %cst_51 = arith.constant dense<0.000000e+00> : vector<8x8xf32>
    %138 = tpu.matmul %137, %123, %cst_51 {dimension_numbers = #tpu.dot_dimension_numbers<[1], [0], [0], [1], [0, 0, 1, 1], [], []>} : vector<8x8xbf16>, vector<8x8xbf16>, vector<8x8xf32> -> vector<8x8xf32>
    %c0_52 = arith.constant 0 : index
    %c24 = arith.constant 24 : index
    %139 = vector.load %arg30[%c0_52, %c24] : memref<8x32xf32, #tpu.memory_space<vmem>>, vector<8x8xf32>
    tpu.vector_store %arg30[%c0_52, %c24], %138 {strides = array<i32>} : memref<8x32xf32, #tpu.memory_space<vmem>>, vector<8x8xf32>,
    %c0_53 = arith.constant 0 : index
    %c0_54 = arith.constant 0 : index
    %140 = vector.load %arg30[%c0_53, %c0_54] : memref<8x32xf32, #tpu.memory_space<vmem>>, vector<8x32xf32>
    %141 = arith.truncf %140 : vector<8x32xf32> to vector<8x32xbf16>
    %c0_55 = arith.constant 0 : index
    %c0_56 = arith.constant 0 : index
    %c0_57 = arith.constant 0 : index
    %142 = vector.load %arg10[%c0_55, %c0_56, %c0_57] : memref<1x32x32xbf16, #tpu.memory_space<vmem>>, vector<1x32x32xbf16>
    %143 = vector.shape_cast %142 : vector<1x32x32xbf16> to vector<32x32xbf16>
    %cst_58 = arith.constant dense<0.000000e+00> : vector<8x32xf32>
    %144 = tpu.matmul %141, %143, %cst_58 {dimension_numbers = #tpu.dot_dimension_numbers<[1], [0], [0], [1], [0, 0, 1, 1], [], []>} : vector<8x32xbf16>, vector<32x32xbf16>, vector<8x32xf32> -> vector<8x32xf32>
    %c0_59 = arith.constant 0 : index
    %c0_60 = arith.constant 0 : index
    %c0_61 = arith.constant 0 : index
    %145 = vector.load %arg11[%c0_59, %c0_60, %c0_61] : memref<1x1x32xf32, #tpu.memory_space<vmem>>, vector<1x1x32xf32>
    %146 = vector.shape_cast %145 : vector<1x1x32xf32> to vector<1x32xf32>
    %147 = vector.broadcast %146 : vector<1x32xf32> to vector<8x32xf32>
    %148 = arith.addf %144, %147 : vector<8x32xf32>
    %149 = arith.addf %3, %148 : vector<8x32xf32>
    %c0_62 = arith.constant 0 : index
    %c0_63 = arith.constant 0 : index
    %c0_64 = arith.constant 0 : index
    %150 = vector.load %arg3[%c0_62, %c0_63, %c0_64] : memref<1x8x32xf32, #tpu.memory_space<vmem>>, vector<1x8x32xf32>
    %151 = vector.shape_cast %150 : vector<1x8x32xf32> to vector<8x32xf32>
    %c0_65 = arith.constant 0 : index
    %c0_66 = arith.constant 0 : index
    %c0_67 = arith.constant 0 : index
    %152 = vector.load %arg12[%c0_65, %c0_66, %c0_67] : memref<1x1x32xf32, #tpu.memory_space<vmem>>, vector<1x1x32xf32>
    %153 = vector.shape_cast %152 : vector<1x1x32xf32> to vector<1x32xf32>
    %c0_68 = arith.constant 0 : index
    %c0_69 = arith.constant 0 : index
    %c0_70 = arith.constant 0 : index
    %154 = vector.load %arg13[%c0_68, %c0_69, %c0_70] : memref<1x1x32xf32, #tpu.memory_space<vmem>>, vector<1x1x32xf32>
    %155 = vector.shape_cast %154 : vector<1x1x32xf32> to vector<1x32xf32>
    %cst_71 = arith.constant dense<0.000000e+00> : vector<8xf32>
    %156 = vector.multi_reduction <add>, %149, %cst_71 [1] : vector<8x32xf32> to vector<8xf32>
    %157 = vector.shape_cast %156 : vector<8xf32> to vector<8x1xf32>
    %cst_72 = arith.constant 3.200000e+01 : f32
    %158 = vector.broadcast %cst_72 : f32 to vector<8x1xf32>
    %159 = arith.divf %157, %158 : vector<8x1xf32>
    %160 = vector.broadcast %159 : vector<8x1xf32> to vector<8x32xf32>
    %161 = arith.subf %149, %160 : vector<8x32xf32>
    %162 = arith.mulf %161, %161 : vector<8x32xf32>
    %cst_73 = arith.constant dense<0.000000e+00> : vector<8xf32>
    %163 = vector.multi_reduction <add>, %162, %cst_73 [1] : vector<8x32xf32> to vector<8xf32>
    %164 = vector.shape_cast %163 : vector<8xf32> to vector<8x1xf32>
    %cst_74 = arith.constant 0.0322580636 : f32
    %165 = vector.broadcast %cst_74 : f32 to vector<8x1xf32>
    %166 = arith.mulf %164, %165 : vector<8x1xf32>
    %167 = math.sqrt %166 : vector<8x1xf32>
    %cst_75 = arith.constant 9.99999997E-7 : f32
    %168 = vector.broadcast %cst_75 : f32 to vector<8x1xf32>
    %169 = arith.addf %167, %168 : vector<8x1xf32>
    %170 = tpu.reciprocal %169 : vector<8x1xf32> -> vector<8x1xf32>
    %171 = vector.broadcast %170 : vector<8x1xf32> to vector<8x32xf32>
    %172 = arith.mulf %161, %171 : vector<8x32xf32>
    %173 = vector.broadcast %153 : vector<1x32xf32> to vector<8x32xf32>
    %174 = arith.mulf %173, %172 : vector<8x32xf32>
    %175 = vector.broadcast %155 : vector<1x32xf32> to vector<8x32xf32>
    %176 = arith.addf %174, %175 : vector<8x32xf32>
    %177 = arith.truncf %176 : vector<8x32xf32> to vector<8x32xbf16>
    %c0_76 = arith.constant 0 : index
    %c0_77 = arith.constant 0 : index
    %c0_78 = arith.constant 0 : index
    %178 = vector.load %arg14[%c0_76, %c0_77, %c0_78] : memref<1x32x32xbf16, #tpu.memory_space<vmem>>, vector<1x32x32xbf16>
    %179 = vector.shape_cast %178 : vector<1x32x32xbf16> to vector<32x32xbf16>
    %cst_79 = arith.constant dense<0.000000e+00> : vector<8x32xf32>
    %180 = tpu.matmul %177, %179, %cst_79 {dimension_numbers = #tpu.dot_dimension_numbers<[1], [0], [0], [1], [0, 0, 1, 1], [], []>} : vector<8x32xbf16>, vector<32x32xbf16>, vector<8x32xf32> -> vector<8x32xf32>
    %c0_80 = arith.constant 0 : index
    %c0_81 = arith.constant 0 : index
    %c0_82 = arith.constant 0 : index
    %181 = vector.load %arg15[%c0_80, %c0_81, %c0_82] : memref<1x1x32xf32, #tpu.memory_space<vmem>>, vector<1x1x32xf32>
    %182 = vector.shape_cast %181 : vector<1x1x32xf32> to vector<1x32xf32>
    %183 = vector.broadcast %182 : vector<1x32xf32> to vector<8x32xf32>
    %184 = arith.addf %180, %183 : vector<8x32xf32>
    %185 = arith.truncf %151 : vector<8x32xf32> to vector<8x32xbf16>
    %c0_83 = arith.constant 0 : index
    %c0_84 = arith.constant 0 : index
    %c0_85 = arith.constant 0 : index
    %186 = vector.load %arg16[%c0_83, %c0_84, %c0_85] : memref<1x32x64xbf16, #tpu.memory_space<vmem>>, vector<1x32x64xbf16>
    %187 = vector.shape_cast %186 : vector<1x32x64xbf16> to vector<32x64xbf16>
    %cst_86 = arith.constant dense<0.000000e+00> : vector<8x64xf32>
    %188 = tpu.matmul %185, %187, %cst_86 {dimension_numbers = #tpu.dot_dimension_numbers<[1], [0], [0], [1], [0, 0, 1, 1], [], []>} : vector<8x32xbf16>, vector<32x64xbf16>, vector<8x64xf32> -> vector<8x64xf32>
    %c0_87 = arith.constant 0 : index
    %c0_88 = arith.constant 0 : index
    %c0_89 = arith.constant 0 : index
    %189 = vector.load %arg17[%c0_87, %c0_88, %c0_89] : memref<1x1x64xf32, #tpu.memory_space<vmem>>, vector<1x1x64xf32>
    %190 = vector.shape_cast %189 : vector<1x1x64xf32> to vector<1x64xf32>
    %191 = vector.broadcast %190 : vector<1x64xf32> to vector<8x64xf32>
    %192 = arith.addf %188, %191 : vector<8x64xf32>
    %193 = vector.extract_strided_slice %192 {offsets = [0, 0], sizes = [8, 32], strides = [1, 1]} : vector<8x64xf32> to vector<8x32xf32>
    %194 = vector.extract_strided_slice %192 {offsets = [0, 32], sizes = [8, 32], strides = [1, 1]} : vector<8x64xf32> to vector<8x32xf32>
    %c0_90 = arith.constant 0 : index
    %c0_91 = arith.constant 0 : index
    %c0_92 = arith.constant 0 : index
    %c0_93 = arith.constant 0 : index
    %195 = vector.load %arg5[%c0_90, %c0_91, %c0_92, %c0_93] : memref<1x1x8x8xf32, #tpu.memory_space<vmem>>, vector<1x1x8x8xf32>
    %196 = vector.shape_cast %195 : vector<1x1x8x8xf32> to vector<8x8xf32>
    %cst_94 = arith.constant 0.000000e+00 : f32
    %197 = vector.broadcast %cst_94 : f32 to vector<8x8xf32>
    %198 = arith.cmpf ogt, %196, %197 : vector<8x8xf32>
    %199 = vector.extract_strided_slice %184 {offsets = [0, 0], sizes = [8, 8], strides = [1, 1]} : vector<8x32xf32> to vector<8x8xf32>
    %cst_95 = arith.constant 0.353553385 : f32
    %200 = vector.broadcast %cst_95 : f32 to vector<8x8xf32>
    %201 = arith.mulf %199, %200 : vector<8x8xf32>
    %202 = arith.truncf %201 : vector<8x8xf32> to vector<8x8xbf16>
    %203 = vector.extract_strided_slice %193 {offsets = [0, 0], sizes = [8, 8], strides = [1, 1]} : vector<8x32xf32> to vector<8x8xf32>
    %204 = arith.truncf %203 : vector<8x8xf32> to vector<8x8xbf16>
    %205 = vector.extract_strided_slice %194 {offsets = [0, 0], sizes = [8, 8], strides = [1, 1]} : vector<8x32xf32> to vector<8x8xf32>
    %206 = arith.truncf %205 : vector<8x8xf32> to vector<8x8xbf16>
    %cst_96 = arith.constant dense<0.000000e+00> : vector<8x8xf32>
    %207 = tpu.matmul %202, %204, %cst_96 {dimension_numbers = #tpu.dot_dimension_numbers<[1], [1], [0], [0], [0, 0, 1, 0], [], []>} : vector<8x8xbf16>, vector<8x8xbf16>, vector<8x8xf32> -> vector<8x8xf32>
    %cst_97 = arith.constant -1.000000e+09 : f32
    %208 = vector.broadcast %cst_97 : f32 to vector<8x8xf32>
    %209 = arith.select %198, %207, %208 : vector<8x8xi1>, vector<8x8xf32>
    %cst_98 = arith.constant dense<0xFF800000> : vector<8xf32>
    %210 = vector.multi_reduction <maximumf>, %209, %cst_98 [1] : vector<8x8xf32> to vector<8xf32>
    %211 = vector.shape_cast %210 : vector<8xf32> to vector<8x1xf32>
    %212 = vector.broadcast %211 : vector<8x1xf32> to vector<8x8xf32>
    %213 = arith.subf %209, %212 : vector<8x8xf32>
    %214 = math.exp %213 : vector<8x8xf32>
    %cst_99 = arith.constant dense<0.000000e+00> : vector<8xf32>
    %215 = vector.multi_reduction <add>, %214, %cst_99 [1] : vector<8x8xf32> to vector<8xf32>
    %216 = vector.shape_cast %215 : vector<8xf32> to vector<8x1xf32>
    %217 = tpu.reciprocal %216 {approx = true} : vector<8x1xf32> -> vector<8x1xf32>
    %218 = vector.broadcast %217 : vector<8x1xf32> to vector<8x8xf32>
    %219 = arith.mulf %214, %218 : vector<8x8xf32>
    %220 = arith.truncf %219 : vector<8x8xf32> to vector<8x8xbf16>
    %cst_100 = arith.constant dense<0.000000e+00> : vector<8x8xf32>
    %221 = tpu.matmul %220, %206, %cst_100 {dimension_numbers = #tpu.dot_dimension_numbers<[1], [0], [0], [1], [0, 0, 1, 1], [], []>} : vector<8x8xbf16>, vector<8x8xbf16>, vector<8x8xf32> -> vector<8x8xf32>
    %c0_101 = arith.constant 0 : index
    %c0_102 = arith.constant 0 : index
    %222 = vector.load %arg30[%c0_101, %c0_102] : memref<8x32xf32, #tpu.memory_space<vmem>>, vector<8x8xf32>
    tpu.vector_store %arg30[%c0_101, %c0_102], %221 {strides = array<i32>} : memref<8x32xf32, #tpu.memory_space<vmem>>, vector<8x8xf32>,
    %223 = vector.extract_strided_slice %184 {offsets = [0, 8], sizes = [8, 8], strides = [1, 1]} : vector<8x32xf32> to vector<8x8xf32>
    %cst_103 = arith.constant 0.353553385 : f32
    %224 = vector.broadcast %cst_103 : f32 to vector<8x8xf32>
    %225 = arith.mulf %223, %224 : vector<8x8xf32>
    %226 = arith.truncf %225 : vector<8x8xf32> to vector<8x8xbf16>
    %227 = vector.extract_strided_slice %193 {offsets = [0, 8], sizes = [8, 8], strides = [1, 1]} : vector<8x32xf32> to vector<8x8xf32>
    %228 = arith.truncf %227 : vector<8x8xf32> to vector<8x8xbf16>
    %229 = vector.extract_strided_slice %194 {offsets = [0, 8], sizes = [8, 8], strides = [1, 1]} : vector<8x32xf32> to vector<8x8xf32>
    %230 = arith.truncf %229 : vector<8x8xf32> to vector<8x8xbf16>
    %cst_104 = arith.constant dense<0.000000e+00> : vector<8x8xf32>
    %231 = tpu.matmul %226, %228, %cst_104 {dimension_numbers = #tpu.dot_dimension_numbers<[1], [1], [0], [0], [0, 0, 1, 0], [], []>} : vector<8x8xbf16>, vector<8x8xbf16>, vector<8x8xf32> -> vector<8x8xf32>
    %cst_105 = arith.constant -1.000000e+09 : f32
    %232 = vector.broadcast %cst_105 : f32 to vector<8x8xf32>
    %233 = arith.select %198, %231, %232 : vector<8x8xi1>, vector<8x8xf32>
    %cst_106 = arith.constant dense<0xFF800000> : vector<8xf32>
    %234 = vector.multi_reduction <maximumf>, %233, %cst_106 [1] : vector<8x8xf32> to vector<8xf32>
    %235 = vector.shape_cast %234 : vector<8xf32> to vector<8x1xf32>
    %236 = vector.broadcast %235 : vector<8x1xf32> to vector<8x8xf32>
    %237 = arith.subf %233, %236 : vector<8x8xf32>
    %238 = math.exp %237 : vector<8x8xf32>
    %cst_107 = arith.constant dense<0.000000e+00> : vector<8xf32>
    %239 = vector.multi_reduction <add>, %238, %cst_107 [1] : vector<8x8xf32> to vector<8xf32>
    %240 = vector.shape_cast %239 : vector<8xf32> to vector<8x1xf32>
    %241 = tpu.reciprocal %240 {approx = true} : vector<8x1xf32> -> vector<8x1xf32>
    %242 = vector.broadcast %241 : vector<8x1xf32> to vector<8x8xf32>
    %243 = arith.mulf %238, %242 : vector<8x8xf32>
    %244 = arith.truncf %243 : vector<8x8xf32> to vector<8x8xbf16>
    %cst_108 = arith.constant dense<0.000000e+00> : vector<8x8xf32>
    %245 = tpu.matmul %244, %230, %cst_108 {dimension_numbers = #tpu.dot_dimension_numbers<[1], [0], [0], [1], [0, 0, 1, 1], [], []>} : vector<8x8xbf16>, vector<8x8xbf16>, vector<8x8xf32> -> vector<8x8xf32>
    %c0_109 = arith.constant 0 : index
    %c8_110 = arith.constant 8 : index
    %246 = vector.load %arg30[%c0_109, %c8_110] : memref<8x32xf32, #tpu.memory_space<vmem>>, vector<8x8xf32>
    tpu.vector_store %arg30[%c0_109, %c8_110], %245 {strides = array<i32>} : memref<8x32xf32, #tpu.memory_space<vmem>>, vector<8x8xf32>,
    %247 = vector.extract_strided_slice %184 {offsets = [0, 16], sizes = [8, 8], strides = [1, 1]} : vector<8x32xf32> to vector<8x8xf32>
    %cst_111 = arith.constant 0.353553385 : f32
    %248 = vector.broadcast %cst_111 : f32 to vector<8x8xf32>
    %249 = arith.mulf %247, %248 : vector<8x8xf32>
    %250 = arith.truncf %249 : vector<8x8xf32> to vector<8x8xbf16>
    %251 = vector.extract_strided_slice %193 {offsets = [0, 16], sizes = [8, 8], strides = [1, 1]} : vector<8x32xf32> to vector<8x8xf32>
    %252 = arith.truncf %251 : vector<8x8xf32> to vector<8x8xbf16>
    %253 = vector.extract_strided_slice %194 {offsets = [0, 16], sizes = [8, 8], strides = [1, 1]} : vector<8x32xf32> to vector<8x8xf32>
    %254 = arith.truncf %253 : vector<8x8xf32> to vector<8x8xbf16>
    %cst_112 = arith.constant dense<0.000000e+00> : vector<8x8xf32>
    %255 = tpu.matmul %250, %252, %cst_112 {dimension_numbers = #tpu.dot_dimension_numbers<[1], [1], [0], [0], [0, 0, 1, 0], [], []>} : vector<8x8xbf16>, vector<8x8xbf16>, vector<8x8xf32> -> vector<8x8xf32>
    %cst_113 = arith.constant -1.000000e+09 : f32
    %256 = vector.broadcast %cst_113 : f32 to vector<8x8xf32>
    %257 = arith.select %198, %255, %256 : vector<8x8xi1>, vector<8x8xf32>
    %cst_114 = arith.constant dense<0xFF800000> : vector<8xf32>
    %258 = vector.multi_reduction <maximumf>, %257, %cst_114 [1] : vector<8x8xf32> to vector<8xf32>
    %259 = vector.shape_cast %258 : vector<8xf32> to vector<8x1xf32>
    %260 = vector.broadcast %259 : vector<8x1xf32> to vector<8x8xf32>
    %261 = arith.subf %257, %260 : vector<8x8xf32>
    %262 = math.exp %261 : vector<8x8xf32>
    %cst_115 = arith.constant dense<0.000000e+00> : vector<8xf32>
    %263 = vector.multi_reduction <add>, %262, %cst_115 [1] : vector<8x8xf32> to vector<8xf32>
    %264 = vector.shape_cast %263 : vector<8xf32> to vector<8x1xf32>
    %265 = tpu.reciprocal %264 {approx = true} : vector<8x1xf32> -> vector<8x1xf32>
    %266 = vector.broadcast %265 : vector<8x1xf32> to vector<8x8xf32>
    %267 = arith.mulf %262, %266 : vector<8x8xf32>
    %268 = arith.truncf %267 : vector<8x8xf32> to vector<8x8xbf16>
    %cst_116 = arith.constant dense<0.000000e+00> : vector<8x8xf32>
    %269 = tpu.matmul %268, %254, %cst_116 {dimension_numbers = #tpu.dot_dimension_numbers<[1], [0], [0], [1], [0, 0, 1, 1], [], []>} : vector<8x8xbf16>, vector<8x8xbf16>, vector<8x8xf32> -> vector<8x8xf32>
    %c0_117 = arith.constant 0 : index
    %c16_118 = arith.constant 16 : index
    %270 = vector.load %arg30[%c0_117, %c16_118] : memref<8x32xf32, #tpu.memory_space<vmem>>, vector<8x8xf32>
    tpu.vector_store %arg30[%c0_117, %c16_118], %269 {strides = array<i32>} : memref<8x32xf32, #tpu.memory_space<vmem>>, vector<8x8xf32>,
    %271 = vector.extract_strided_slice %184 {offsets = [0, 24], sizes = [8, 8], strides = [1, 1]} : vector<8x32xf32> to vector<8x8xf32>
    %cst_119 = arith.constant 0.353553385 : f32
    %272 = vector.broadcast %cst_119 : f32 to vector<8x8xf32>
    %273 = arith.mulf %271, %272 : vector<8x8xf32>
    %274 = arith.truncf %273 : vector<8x8xf32> to vector<8x8xbf16>
    %275 = vector.extract_strided_slice %193 {offsets = [0, 24], sizes = [8, 8], strides = [1, 1]} : vector<8x32xf32> to vector<8x8xf32>
    %276 = arith.truncf %275 : vector<8x8xf32> to vector<8x8xbf16>
    %277 = vector.extract_strided_slice %194 {offsets = [0, 24], sizes = [8, 8], strides = [1, 1]} : vector<8x32xf32> to vector<8x8xf32>
    %278 = arith.truncf %277 : vector<8x8xf32> to vector<8x8xbf16>
    %cst_120 = arith.constant dense<0.000000e+00> : vector<8x8xf32>
    %279 = tpu.matmul %274, %276, %cst_120 {dimension_numbers = #tpu.dot_dimension_numbers<[1], [1], [0], [0], [0, 0, 1, 0], [], []>} : vector<8x8xbf16>, vector<8x8xbf16>, vector<8x8xf32> -> vector<8x8xf32>
    %cst_121 = arith.constant -1.000000e+09 : f32
    %280 = vector.broadcast %cst_121 : f32 to vector<8x8xf32>
    %281 = arith.select %198, %279, %280 : vector<8x8xi1>, vector<8x8xf32>
    %cst_122 = arith.constant dense<0xFF800000> : vector<8xf32>
    %282 = vector.multi_reduction <maximumf>, %281, %cst_122 [1] : vector<8x8xf32> to vector<8xf32>
    %283 = vector.shape_cast %282 : vector<8xf32> to vector<8x1xf32>
    %284 = vector.broadcast %283 : vector<8x1xf32> to vector<8x8xf32>
    %285 = arith.subf %281, %284 : vector<8x8xf32>
    %286 = math.exp %285 : vector<8x8xf32>
    %cst_123 = arith.constant dense<0.000000e+00> : vector<8xf32>
    %287 = vector.multi_reduction <add>, %286, %cst_123 [1] : vector<8x8xf32> to vector<8xf32>
    %288 = vector.shape_cast %287 : vector<8xf32> to vector<8x1xf32>
    %289 = tpu.reciprocal %288 {approx = true} : vector<8x1xf32> -> vector<8x1xf32>
    %290 = vector.broadcast %289 : vector<8x1xf32> to vector<8x8xf32>
    %291 = arith.mulf %286, %290 : vector<8x8xf32>
    %292 = arith.truncf %291 : vector<8x8xf32> to vector<8x8xbf16>
    %cst_124 = arith.constant dense<0.000000e+00> : vector<8x8xf32>
    %293 = tpu.matmul %292, %278, %cst_124 {dimension_numbers = #tpu.dot_dimension_numbers<[1], [0], [0], [1], [0, 0, 1, 1], [], []>} : vector<8x8xbf16>, vector<8x8xbf16>, vector<8x8xf32> -> vector<8x8xf32>
    %c0_125 = arith.constant 0 : index
    %c24_126 = arith.constant 24 : index
    %294 = vector.load %arg30[%c0_125, %c24_126] : memref<8x32xf32, #tpu.memory_space<vmem>>, vector<8x8xf32>
    tpu.vector_store %arg30[%c0_125, %c24_126], %293 {strides = array<i32>} : memref<8x32xf32, #tpu.memory_space<vmem>>, vector<8x8xf32>,
    %c0_127 = arith.constant 0 : index
    %c0_128 = arith.constant 0 : index
    %295 = vector.load %arg30[%c0_127, %c0_128] : memref<8x32xf32, #tpu.memory_space<vmem>>, vector<8x32xf32>
    %296 = arith.truncf %295 : vector<8x32xf32> to vector<8x32xbf16>
    %c0_129 = arith.constant 0 : index
    %c0_130 = arith.constant 0 : index
    %c0_131 = arith.constant 0 : index
    %297 = vector.load %arg18[%c0_129, %c0_130, %c0_131] : memref<1x32x32xbf16, #tpu.memory_space<vmem>>, vector<1x32x32xbf16>
    %298 = vector.shape_cast %297 : vector<1x32x32xbf16> to vector<32x32xbf16>
    %cst_132 = arith.constant dense<0.000000e+00> : vector<8x32xf32>
    %299 = tpu.matmul %296, %298, %cst_132 {dimension_numbers = #tpu.dot_dimension_numbers<[1], [0], [0], [1], [0, 0, 1, 1], [], []>} : vector<8x32xbf16>, vector<32x32xbf16>, vector<8x32xf32> -> vector<8x32xf32>
    %c0_133 = arith.constant 0 : index
    %c0_134 = arith.constant 0 : index
    %c0_135 = arith.constant 0 : index
    %300 = vector.load %arg19[%c0_133, %c0_134, %c0_135] : memref<1x1x32xf32, #tpu.memory_space<vmem>>, vector<1x1x32xf32>
    %301 = vector.shape_cast %300 : vector<1x1x32xf32> to vector<1x32xf32>
    %302 = vector.broadcast %301 : vector<1x32xf32> to vector<8x32xf32>
    %303 = arith.addf %299, %302 : vector<8x32xf32>
    %304 = arith.addf %149, %303 : vector<8x32xf32>
    %c0_136 = arith.constant 0 : index
    %c0_137 = arith.constant 0 : index
    %c0_138 = arith.constant 0 : index
    %305 = vector.load %arg20[%c0_136, %c0_137, %c0_138] : memref<1x1x32xf32, #tpu.memory_space<vmem>>, vector<1x1x32xf32>
    %306 = vector.shape_cast %305 : vector<1x1x32xf32> to vector<1x32xf32>
    %c0_139 = arith.constant 0 : index
    %c0_140 = arith.constant 0 : index
    %c0_141 = arith.constant 0 : index
    %307 = vector.load %arg21[%c0_139, %c0_140, %c0_141] : memref<1x1x32xf32, #tpu.memory_space<vmem>>, vector<1x1x32xf32>
    %308 = vector.shape_cast %307 : vector<1x1x32xf32> to vector<1x32xf32>
    %cst_142 = arith.constant dense<0.000000e+00> : vector<8xf32>
    %309 = vector.multi_reduction <add>, %304, %cst_142 [1] : vector<8x32xf32> to vector<8xf32>
    %310 = vector.shape_cast %309 : vector<8xf32> to vector<8x1xf32>
    %cst_143 = arith.constant 3.200000e+01 : f32
    %311 = vector.broadcast %cst_143 : f32 to vector<8x1xf32>
    %312 = arith.divf %310, %311 : vector<8x1xf32>
    %313 = vector.broadcast %312 : vector<8x1xf32> to vector<8x32xf32>
    %314 = arith.subf %304, %313 : vector<8x32xf32>
    %315 = arith.mulf %314, %314 : vector<8x32xf32>
    %cst_144 = arith.constant dense<0.000000e+00> : vector<8xf32>
    %316 = vector.multi_reduction <add>, %315, %cst_144 [1] : vector<8x32xf32> to vector<8xf32>
    %317 = vector.shape_cast %316 : vector<8xf32> to vector<8x1xf32>
    %cst_145 = arith.constant 0.0322580636 : f32
    %318 = vector.broadcast %cst_145 : f32 to vector<8x1xf32>
    %319 = arith.mulf %317, %318 : vector<8x1xf32>
    %320 = math.sqrt %319 : vector<8x1xf32>
    %cst_146 = arith.constant 9.99999997E-7 : f32
    %321 = vector.broadcast %cst_146 : f32 to vector<8x1xf32>
    %322 = arith.addf %320, %321 : vector<8x1xf32>
    %323 = tpu.reciprocal %322 : vector<8x1xf32> -> vector<8x1xf32>
    %324 = vector.broadcast %323 : vector<8x1xf32> to vector<8x32xf32>
    %325 = arith.mulf %314, %324 : vector<8x32xf32>
    %326 = vector.broadcast %306 : vector<1x32xf32> to vector<8x32xf32>
    %327 = arith.mulf %326, %325 : vector<8x32xf32>
    %328 = vector.broadcast %308 : vector<1x32xf32> to vector<8x32xf32>
    %329 = arith.addf %327, %328 : vector<8x32xf32>
    %330 = arith.truncf %329 : vector<8x32xf32> to vector<8x32xbf16>
    %c0_147 = arith.constant 0 : index
    %c0_148 = arith.constant 0 : index
    %c0_149 = arith.constant 0 : index
    %331 = vector.load %arg22[%c0_147, %c0_148, %c0_149] : memref<1x32x64xbf16, #tpu.memory_space<vmem>>, vector<1x32x64xbf16>
    %332 = vector.shape_cast %331 : vector<1x32x64xbf16> to vector<32x64xbf16>
    %cst_150 = arith.constant dense<0.000000e+00> : vector<8x64xf32>
    %333 = tpu.matmul %330, %332, %cst_150 {dimension_numbers = #tpu.dot_dimension_numbers<[1], [0], [0], [1], [0, 0, 1, 1], [], []>} : vector<8x32xbf16>, vector<32x64xbf16>, vector<8x64xf32> -> vector<8x64xf32>
    %c0_151 = arith.constant 0 : index
    %c0_152 = arith.constant 0 : index
    %c0_153 = arith.constant 0 : index
    %334 = vector.load %arg23[%c0_151, %c0_152, %c0_153] : memref<1x1x64xf32, #tpu.memory_space<vmem>>, vector<1x1x64xf32>
    %335 = vector.shape_cast %334 : vector<1x1x64xf32> to vector<1x64xf32>
    %336 = vector.broadcast %335 : vector<1x64xf32> to vector<8x64xf32>
    %337 = arith.addf %333, %336 : vector<8x64xf32>
    %cst_154 = arith.constant 0.000000e+00 : f32
    %338 = vector.broadcast %cst_154 : f32 to vector<8x64xf32>
    %339 = arith.maximumf %337, %338 : vector<8x64xf32>
    %340 = arith.truncf %339 : vector<8x64xf32> to vector<8x64xbf16>
    %c0_155 = arith.constant 0 : index
    %c0_156 = arith.constant 0 : index
    %c0_157 = arith.constant 0 : index
    %341 = vector.load %arg24[%c0_155, %c0_156, %c0_157] : memref<1x64x32xbf16, #tpu.memory_space<vmem>>, vector<1x64x32xbf16>
    %342 = vector.shape_cast %341 : vector<1x64x32xbf16> to vector<64x32xbf16>
    %cst_158 = arith.constant dense<0.000000e+00> : vector<8x32xf32>
    %343 = tpu.matmul %340, %342, %cst_158 {dimension_numbers = #tpu.dot_dimension_numbers<[1], [0], [0], [1], [0, 0, 1, 1], [], []>} : vector<8x64xbf16>, vector<64x32xbf16>, vector<8x32xf32> -> vector<8x32xf32>
    %c0_159 = arith.constant 0 : index
    %c0_160 = arith.constant 0 : index
    %c0_161 = arith.constant 0 : index
    %344 = vector.load %arg25[%c0_159, %c0_160, %c0_161] : memref<1x1x32xf32, #tpu.memory_space<vmem>>, vector<1x1x32xf32>
    %345 = vector.shape_cast %344 : vector<1x1x32xf32> to vector<1x32xf32>
    %346 = vector.broadcast %345 : vector<1x32xf32> to vector<8x32xf32>
    %347 = arith.addf %343, %346 : vector<8x32xf32>
    %348 = arith.addf %304, %347 : vector<8x32xf32>
    %c0_162 = arith.constant 0 : index
    %c0_163 = arith.constant 0 : index
    %349 = vector.load %arg29[%c0_162, %c0_163] : memref<8x32xf32, #tpu.memory_space<vmem>>, vector<8x32xf32>
    tpu.vector_store %arg29[%c0_162, %c0_163], %348 {strides = array<i32>} : memref<8x32xf32, #tpu.memory_space<vmem>>, vector<8x32xf32>,
    %c1_i32 = arith.constant 1 : i32
    %350 = arith.cmpi eq, %arg1, %c1_i32 : i32
    %351 = arith.extui %350 : i1 to i32
    %c0_i32_164 = arith.constant 0 : i32
    %352 = arith.cmpi ne, %351, %c0_i32_164 : i32
    scf.if %352 {
      %c0_165 = arith.constant 0 : index
      %c0_166 = arith.constant 0 : index
      %353 = vector.load %arg26[%c0_165, %c0_166] : memref<1x32xf32, #tpu.memory_space<vmem>>, vector<1x32xf32>
      %c0_167 = arith.constant 0 : index
      %c0_168 = arith.constant 0 : index
      %354 = vector.load %arg27[%c0_167, %c0_168] : memref<1x32xf32, #tpu.memory_space<vmem>>, vector<1x32xf32>
      %cst_169 = arith.constant dense<0.000000e+00> : vector<8xf32>
      %355 = vector.multi_reduction <add>, %348, %cst_169 [1] : vector<8x32xf32> to vector<8xf32>
      %356 = vector.shape_cast %355 : vector<8xf32> to vector<8x1xf32>
      %cst_170 = arith.constant 3.200000e+01 : f32
      %357 = vector.broadcast %cst_170 : f32 to vector<8x1xf32>
      %358 = arith.divf %356, %357 : vector<8x1xf32>
      %359 = vector.broadcast %358 : vector<8x1xf32> to vector<8x32xf32>
      %360 = arith.subf %348, %359 : vector<8x32xf32>
      %361 = arith.mulf %360, %360 : vector<8x32xf32>
      %cst_171 = arith.constant dense<0.000000e+00> : vector<8xf32>
      %362 = vector.multi_reduction <add>, %361, %cst_171 [1] : vector<8x32xf32> to vector<8xf32>
      %363 = vector.shape_cast %362 : vector<8xf32> to vector<8x1xf32>
      %cst_172 = arith.constant 0.0322580636 : f32
      %364 = vector.broadcast %cst_172 : f32 to vector<8x1xf32>
      %365 = arith.mulf %363, %364 : vector<8x1xf32>
      %366 = math.sqrt %365 : vector<8x1xf32>
      %cst_173 = arith.constant 9.99999997E-7 : f32
      %367 = vector.broadcast %cst_173 : f32 to vector<8x1xf32>
      %368 = arith.addf %366, %367 : vector<8x1xf32>
      %369 = tpu.reciprocal %368 : vector<8x1xf32> -> vector<8x1xf32>
      %370 = vector.broadcast %369 : vector<8x1xf32> to vector<8x32xf32>
      %371 = arith.mulf %360, %370 : vector<8x32xf32>
      %372 = vector.broadcast %353 : vector<1x32xf32> to vector<8x32xf32>
      %373 = arith.mulf %372, %371 : vector<8x32xf32>
      %374 = vector.broadcast %354 : vector<1x32xf32> to vector<8x32xf32>
      %375 = arith.addf %373, %374 : vector<8x32xf32>
      %c0_174 = arith.constant 0 : index
      %c0_175 = arith.constant 0 : index
      %c0_176 = arith.constant 0 : index
      %376 = vector.load %arg28[%c0_174, %c0_175, %c0_176] : memref<1x8x32xf32, #tpu.memory_space<vmem>>, vector<1x8x32xf32>
      %377 = vector.shape_cast %376 : vector<1x8x32xf32> to vector<8x32xf32>
      %378 = vector.shape_cast %375 : vector<8x32xf32> to vector<1x8x32xf32>
      tpu.vector_store %arg28[%c0_174, %c0_175, %c0_176], %378 {strides = array<i32>} : memref<1x8x32xf32, #tpu.memory_space<vmem>>, vector<1x8x32xf32>,
    } else {
    }
    return
  }
  func.func @transform_0(%arg0: i32, %arg1: i32) -> (i32, i32, i32) {
    %c0_i32 = arith.constant 0 : i32
    %c0_i32_0 = arith.constant 0 : i32
    %c0_i32_1 = arith.constant 0 : i32
    return %arg0, %c0_i32, %c0_i32_0 : i32, i32, i32
  }
  func.func @transform_1(%arg0: i32, %arg1: i32) -> (i32, i32, i32) {
    %c0_i32 = arith.constant 0 : i32
    %c0_i32_0 = arith.constant 0 : i32
    %c0_i32_1 = arith.constant 0 : i32
    return %arg0, %c0_i32, %c0_i32_0 : i32, i32, i32
  }
  func.func @transform_2(%arg0: i32, %arg1: i32) -> (i32, i32, i32, i32) {
    %c0_i32 = arith.constant 0 : i32
    %c0_i32_0 = arith.constant 0 : i32
    %c0_i32_1 = arith.constant 0 : i32
    %c0_i32_2 = arith.constant 0 : i32
    return %arg0, %c0_i32, %c0_i32_0, %c0_i32_1 : i32, i32, i32, i32
  }
  func.func @transform_3(%arg0: i32, %arg1: i32) -> (i32, i32, i32, i32) {
    %c0_i32 = arith.constant 0 : i32
    %c0_i32_0 = arith.constant 0 : i32
    %c0_i32_1 = arith.constant 0 : i32
    %c0_i32_2 = arith.constant 0 : i32
    return %arg0, %c0_i32, %c0_i32_0, %c0_i32_1 : i32, i32, i32, i32
  }
  func.func @transform_4(%arg0: i32, %arg1: i32) -> (i32, i32, i32) {
    %c0_i32 = arith.constant 0 : i32
    %c0_i32_0 = arith.constant 0 : i32
    %c0_i32_1 = arith.constant 0 : i32
    return %arg1, %c0_i32, %c0_i32_0 : i32, i32, i32
  }
  func.func @transform_5(%arg0: i32, %arg1: i32) -> (i32, i32, i32) {
    %c0_i32 = arith.constant 0 : i32
    %c0_i32_0 = arith.constant 0 : i32
    %c0_i32_1 = arith.constant 0 : i32
    return %arg1, %c0_i32, %c0_i32_0 : i32, i32, i32
  }
  func.func @transform_6(%arg0: i32, %arg1: i32) -> (i32, i32, i32) {
    %c0_i32 = arith.constant 0 : i32
    %c0_i32_0 = arith.constant 0 : i32
    %c0_i32_1 = arith.constant 0 : i32
    return %arg1, %c0_i32, %c0_i32_0 : i32, i32, i32
  }
  func.func @transform_7(%arg0: i32, %arg1: i32) -> (i32, i32, i32) {
    %c0_i32 = arith.constant 0 : i32
    %c0_i32_0 = arith.constant 0 : i32
    %c0_i32_1 = arith.constant 0 : i32
    return %arg1, %c0_i32, %c0_i32_0 : i32, i32, i32
  }
  func.func @transform_8(%arg0: i32, %arg1: i32) -> (i32, i32, i32) {
    %c0_i32 = arith.constant 0 : i32
    %c0_i32_0 = arith.constant 0 : i32
    %c0_i32_1 = arith.constant 0 : i32
    return %arg1, %c0_i32, %c0_i32_0 : i32, i32, i32
  }
  func.func @transform_9(%arg0: i32, %arg1: i32) -> (i32, i32, i32) {
    %c0_i32 = arith.constant 0 : i32
    %c0_i32_0 = arith.constant 0 : i32
    %c0_i32_1 = arith.constant 0 : i32
    return %arg1, %c0_i32, %c0_i32_0 : i32, i32, i32
  }
  func.func @transform_10(%arg0: i32, %arg1: i32) -> (i32, i32, i32) {
    %c0_i32 = arith.constant 0 : i32
    %c0_i32_0 = arith.constant 0 : i32
    %c0_i32_1 = arith.constant 0 : i32
    return %arg1, %c0_i32, %c0_i32_0 : i32, i32, i32
  }
  func.func @transform_11(%arg0: i32, %arg1: i32) -> (i32, i32, i32) {
    %c0_i32 = arith.constant 0 : i32
    %c0_i32_0 = arith.constant 0 : i32
    %c0_i32_1 = arith.constant 0 : i32
    return %arg1, %c0_i32, %c0_i32_0 : i32, i32, i32
  }
  func.func @transform_12(%arg0: i32, %arg1: i32) -> (i32, i32, i32) {
    %c0_i32 = arith.constant 0 : i32
    %c0_i32_0 = arith.constant 0 : i32
    %c0_i32_1 = arith.constant 0 : i32
    return %arg1, %c0_i32, %c0_i32_0 : i32, i32, i32
  }
  func.func @transform_13(%arg0: i32, %arg1: i32) -> (i32, i32, i32) {
    %c0_i32 = arith.constant 0 : i32
    %c0_i32_0 = arith.constant 0 : i32
    %c0_i32_1 = arith.constant 0 : i32
    return %arg1, %c0_i32, %c0_i32_0 : i32, i32, i32
  }
  func.func @transform_14(%arg0: i32, %arg1: i32) -> (i32, i32, i32) {
    %c0_i32 = arith.constant 0 : i32
    %c0_i32_0 = arith.constant 0 : i32
    %c0_i32_1 = arith.constant 0 : i32
    return %arg1, %c0_i32, %c0_i32_0 : i32, i32, i32
  }
  func.func @transform_15(%arg0: i32, %arg1: i32) -> (i32, i32, i32) {
    %c0_i32 = arith.constant 0 : i32
    %c0_i32_0 = arith.constant 0 : i32
    %c0_i32_1 = arith.constant 0 : i32
    return %arg1, %c0_i32, %c0_i32_0 : i32, i32, i32
  }
  func.func @transform_16(%arg0: i32, %arg1: i32) -> (i32, i32, i32) {
    %c0_i32 = arith.constant 0 : i32
    %c0_i32_0 = arith.constant 0 : i32
    %c0_i32_1 = arith.constant 0 : i32
    return %arg1, %c0_i32, %c0_i32_0 : i32, i32, i32
  }
  func.func @transform_17(%arg0: i32, %arg1: i32) -> (i32, i32, i32) {
    %c0_i32 = arith.constant 0 : i32
    %c0_i32_0 = arith.constant 0 : i32
    %c0_i32_1 = arith.constant 0 : i32
    return %arg1, %c0_i32, %c0_i32_0 : i32, i32, i32
  }
  func.func @transform_18(%arg0: i32, %arg1: i32) -> (i32, i32, i32) {
    %c0_i32 = arith.constant 0 : i32
    %c0_i32_0 = arith.constant 0 : i32
    %c0_i32_1 = arith.constant 0 : i32
    return %arg1, %c0_i32, %c0_i32_0 : i32, i32, i32
  }
  func.func @transform_19(%arg0: i32, %arg1: i32) -> (i32, i32, i32) {
    %c0_i32 = arith.constant 0 : i32
    %c0_i32_0 = arith.constant 0 : i32
    %c0_i32_1 = arith.constant 0 : i32
    return %arg1, %c0_i32, %c0_i32_0 : i32, i32, i32
  }
  func.func @transform_20(%arg0: i32, %arg1: i32) -> (i32, i32, i32) {
    %c0_i32 = arith.constant 0 : i32
    %c0_i32_0 = arith.constant 0 : i32
    %c0_i32_1 = arith.constant 0 : i32
    return %arg1, %c0_i32, %c0_i32_0 : i32, i32, i32
  }
  func.func @transform_21(%arg0: i32, %arg1: i32) -> (i32, i32, i32) {
    %c0_i32 = arith.constant 0 : i32
    %c0_i32_0 = arith.constant 0 : i32
    %c0_i32_1 = arith.constant 0 : i32
    return %arg1, %c0_i32, %c0_i32_0 : i32, i32, i32
  }
  func.func @transform_22(%arg0: i32, %arg1: i32) -> (i32, i32, i32) {
    %c0_i32 = arith.constant 0 : i32
    %c0_i32_0 = arith.constant 0 : i32
    %c0_i32_1 = arith.constant 0 : i32
    return %arg1, %c0_i32, %c0_i32_0 : i32, i32, i32
  }
  func.func @transform_23(%arg0: i32, %arg1: i32) -> (i32, i32, i32) {
    %c0_i32 = arith.constant 0 : i32
    %c0_i32_0 = arith.constant 0 : i32
    %c0_i32_1 = arith.constant 0 : i32
    return %arg1, %c0_i32, %c0_i32_0 : i32, i32, i32
  }
  func.func @transform_24(%arg0: i32, %arg1: i32) -> (i32, i32) {
    %c0_i32 = arith.constant 0 : i32
    %c0_i32_0 = arith.constant 0 : i32
    %c0_i32_1 = arith.constant 0 : i32
    return %c0_i32, %c0_i32_0 : i32, i32
  }
  func.func @transform_25(%arg0: i32, %arg1: i32) -> (i32, i32) {
    %c0_i32 = arith.constant 0 : i32
    %c0_i32_0 = arith.constant 0 : i32
    %c0_i32_1 = arith.constant 0 : i32
    return %c0_i32, %c0_i32_0 : i32, i32
  }
  func.func @transform_26(%arg0: i32, %arg1: i32) -> (i32, i32, i32) {
    %c0_i32 = arith.constant 0 : i32
    %c0_i32_0 = arith.constant 0 : i32
    %c0_i32_1 = arith.constant 0 : i32
    return %arg0, %c0_i32, %c0_i32_0 : i32, i32, i32
  }
}

</mosaic_0001>

<llo_original>
// kernel: transformer_decoder_forward.1
$region0: #{transformer_decoder_forward.1}
  #allocation0 [shape = 'u32[]', space=smem, size = 0x4, offset = 0x4, fixed_abs, tag = 'smem constant byte address 0x4 - core index']
  #allocation1 [shape = 'u32[144,128]{1,0:T(1,128)}', space=vmem, size = 0x12000, scoped, tag = 'internal scratch']
  #allocation2 [shape = 'f32[8,32]{1,0:T(8,128)}', space=vmem, size = 0x1000, scoped, tag = 'scratch operand']
  #allocation3 [shape = 'f32[8,32]{1,0:T(8,128)}', space=vmem, size = 0x1000, scoped, tag = 'scratch operand']
  %s0 = inlined_call_operand.hbm [shape: f32[2,8,32], index: 0, kind: input, shape index: {}]
  %s1 = inlined_call_operand.hbm [shape: f32[2,8,32], index: 1, kind: input, shape index: {}]
  %s2 = inlined_call_operand.hbm [shape: f32[2,1,8,8], index: 2, kind: input, shape index: {}]
  %s3 = inlined_call_operand.hbm [shape: f32[2,1,8,8], index: 3, kind: input, shape index: {}]
  %s4 = inlined_call_operand.vmem [shape: f32[2,1,32], index: 4, kind: input, shape index: {}]
  %s5 = inlined_call_operand.vmem [shape: f32[2,1,32], index: 5, kind: input, shape index: {}]
  %s6 = inlined_call_operand.vmem [shape: bf16[2,32,96], index: 6, kind: input, shape index: {}]
  %s7 = inlined_call_operand.vmem [shape: f32[2,1,96], index: 7, kind: input, shape index: {}]
  %s8 = inlined_call_operand.vmem [shape: bf16[2,32,32], index: 8, kind: input, shape index: {}]
  %s9 = inlined_call_operand.vmem [shape: f32[2,1,32], index: 9, kind: input, shape index: {}]
  %s10 = inlined_call_operand.hbm [shape: f32[2,1,32], index: 10, kind: input, shape index: {}]
  %s11 = inlined_call_operand.hbm [shape: f32[2,1,32], index: 11, kind: input, shape index: {}]
  %s12 = inlined_call_operand.vmem [shape: bf16[2,32,32], index: 12, kind: input, shape index: {}]
  %s13 = inlined_call_operand.hbm [shape: f32[2,1,32], index: 13, kind: input, shape index: {}]
  %s14 = inlined_call_operand.vmem [shape: bf16[2,32,64], index: 14, kind: input, shape index: {}]
  %s15 = inlined_call_operand.hbm [shape: f32[2,1,64], index: 15, kind: input, shape index: {}]
  %s16 = inlined_call_operand.hbm [shape: bf16[2,32,32], index: 16, kind: input, shape index: {}]
  %s17 = inlined_call_operand.hbm [shape: f32[2,1,32], index: 17, kind: input, shape index: {}]
  %s18 = inlined_call_operand.hbm [shape: f32[2,1,32], index: 18, kind: input, shape index: {}]
  %s19 = inlined_call_operand.hbm [shape: f32[2,1,32], index: 19, kind: input, shape index: {}]
  %s20 = inlined_call_operand.hbm [shape: bf16[2,32,64], index: 20, kind: input, shape index: {}]
  %s21 = inlined_call_operand.hbm [shape: f32[2,1,64], index: 21, kind: input, shape index: {}]
  %s22 = inlined_call_operand.vmem [shape: bf16[2,64,32], index: 22, kind: input, shape index: {}]
  %s23 = inlined_call_operand.hbm [shape: f32[2,1,32], index: 23, kind: input, shape index: {}]
  %s24 = inlined_call_operand.hbm [shape: f32[1,32], index: 24, kind: input, shape index: {}]
  %s25 = inlined_call_operand.vmem [shape: f32[1,32], index: 25, kind: input, shape index: {}]
  %s26 = inlined_call_operand.hbm [shape: f32[2,8,32], index: 26, kind: output, shape index: {}]
  %s27 = sld [smem:[#allocation0]]
  $region209: #{transformer_decoder_forward.1} parent=0
    _
  %s29 = ssub.s32 1, %s27
  %s30 = scalar_select 0, %s29, %s27
  $region1: #{transformer_decoder_forward.1} parent=0
    #allocation4 [shape = 'u8[8192]{0}', space=vmem, size = 0x2000, scoped, tag = 'input window, operand 0']
    #allocation5 [shape = 's32[2]{0}', space=sflag, size = 0x8, scoped, tag = 'scoped memory for transformer_decoder_forward.1']
    #allocation6 [shape = 's32[2]{0}', space=sflag, size = 0x8, scoped, tag = 'scoped memory for transformer_decoder_forward.1']
    #allocation7 [shape = 'u8[8192]{0}', space=vmem, size = 0x2000, scoped, tag = 'input window, operand 1']
    #allocation8 [shape = 's32[2]{0}', space=sflag, size = 0x8, scoped, tag = 'scoped memory for transformer_decoder_forward.1']
    #allocation9 [shape = 'u8[8192]{0}', space=vmem, size = 0x2000, scoped, tag = 'input window, operand 2']
    #allocation10 [shape = 'u8[8192]{0}', space=vmem, size = 0x2000, scoped, tag = 'input window, operand 3']
    #allocation11 [shape = 's32[2]{0}', space=sflag, size = 0x8, scoped, tag = 'scoped memory for transformer_decoder_forward.1']
    #allocation12 [shape = 'u8[1024]{0}', space=vmem, size = 0x400, scoped, tag = 'input window, operand 10']
    #allocation13 [shape = 'u8[1024]{0}', space=vmem, size = 0x400, scoped, tag = 'input window, operand 11']
    #allocation14 [shape = 's32[2]{0}', space=sflag, size = 0x8, scoped, tag = 'scoped memory for transformer_decoder_forward.1']
    #allocation15 [shape = 'u8[1024]{0}', space=vmem, size = 0x400, scoped, tag = 'input window, operand 13']
    #allocation16 [shape = 'u8[1024]{0}', space=vmem, size = 0x400, scoped, tag = 'input window, operand 15']
    #allocation17 [shape = 's32[2]{0}', space=sflag, size = 0x8, scoped, tag = 'scoped memory for transformer_decoder_forward.1']
    #allocation18 [shape = 'u8[16384]{0}', space=vmem, size = 0x4000, scoped, tag = 'input window, operand 16']
    #allocation19 [shape = 'u8[1024]{0}', space=vmem, size = 0x400, scoped, tag = 'input window, operand 17']
    #allocation20 [shape = 's32[2]{0}', space=sflag, size = 0x8, scoped, tag = 'scoped memory for transformer_decoder_forward.1']
    #allocation21 [shape = 'u8[1024]{0}', space=vmem, size = 0x400, scoped, tag = 'input window, operand 18']
    #allocation22 [shape = 'u8[1024]{0}', space=vmem, size = 0x400, scoped, tag = 'input window, operand 19']
    #allocation23 [shape = 's32[2]{0}', space=sflag, size = 0x8, scoped, tag = 'scoped memory for transformer_decoder_forward.1']
    #allocation24 [shape = 'u8[16384]{0}', space=vmem, size = 0x4000, scoped, tag = 'input window, operand 20']
    #allocation25 [shape = 'u8[1024]{0}', space=vmem, size = 0x400, scoped, tag = 'input window, operand 21']
    #allocation26 [shape = 's32[2]{0}', space=sflag, size = 0x8, scoped, tag = 'scoped memory for transformer_decoder_forward.1']
    #allocation27 [shape = 'u8[1024]{0}', space=vmem, size = 0x400, scoped, tag = 'input window, operand 23']
    #allocation28 [shape = 'u8[512]{0}', space=vmem, size = 0x400, scoped, tag = 'input window, operand 24, single buffered']
    #allocation29 [shape = 's32[1]{0}', space=sflag, size = 0x4, scoped, tag = 'scoped memory for transformer_decoder_forward.1']
    #allocation30 [shape = 'u8[8192]{0}', space=vmem, size = 0x2000, scoped, tag = 'output window, operand 0']
    %31 = vsyncpa [#allocation5], 0
    %s32 = scalar_lea.sflag [#allocation5], 1
    %33 = vsyncpa %s32, 0
    %34 = vsyncpa [#allocation8], 0
    %s35 = scalar_lea.sflag [#allocation8], 1
    %36 = vsyncpa %s35, 0
    %37 = vsyncpa [#allocation11], 0
    %s38 = scalar_lea.sflag [#allocation11], 1
    %39 = vsyncpa %s38, 0
    %40 = vsyncpa [#allocation14], 0
    %s41 = scalar_lea.sflag [#allocation14], 1
    %42 = vsyncpa %s41, 0
    %43 = vsyncpa [#allocation17], 0
    %s44 = scalar_lea.sflag [#allocation17], 1
    %45 = vsyncpa %s44, 0
    %46 = vsyncpa [#allocation20], 0
    %s47 = scalar_lea.sflag [#allocation20], 1
    %48 = vsyncpa %s47, 0
    %49 = vsyncpa [#allocation23], 0
    %s50 = scalar_lea.sflag [#allocation23], 1
    %51 = vsyncpa %s50, 0
    %52 = vsyncpa [#allocation26], 0
    %s53 = scalar_lea.sflag [#allocation26], 1
    %54 = vsyncpa %s53, 0
    %55 = vsyncpa [#allocation29], 0
    %56 = vsyncpa [#allocation6], 0
    %s57 = scalar_lea.sflag [#allocation6], 1
    %58 = vsyncpa %s57, 0
    loop: start=0, step=1, limit=6
    $region2: #{transformer_decoder_forward.1} parent=1 // loop_pre_header
      _
    $region3: #{transformer_decoder_forward.1} parent=1 // loop_header
      %s60 = sphi 0, %s64
      %p61 = scmp.ge.s32.totalorder %s60, 6
      %s67 = sphi 0, %s79
      %s68 = sphi 0, %s75
      %s69 = sphi 0, %s67
      %s70 = sphi 0, %s68
      %s71 = sphi 0, %s69
      %s72 = sphi 0, %s70
      %s82 = sphi 0, %s84
      %s85 = sphi 0, %s82
      %s86 = sphi 0, %s85
      %s102 = sphi 0, %s86
      %s108 = sphi 0, %s110
      %s111 = sphi 0, %s108
      %s112 = sphi 0, %s111
      %s128 = sphi 0, %s112
      %s134 = sphi 0, %s136
      %s137 = sphi 0, %s134
      %s138 = sphi 0, %s137
      %s154 = sphi 0, %s138
      %s160 = sphi 0, %s162
      %s163 = sphi 0, %s160
      %s164 = sphi 0, %s163
      %s180 = sphi 0, %s164
      %s186 = sphi 0, %s188
      %s189 = sphi 0, %s186
      %s190 = sphi 0, %s189
      %s206 = sphi 0, %s190
      %s212 = sphi 0, %s214
      %s215 = sphi 0, %s212
      %s216 = sphi 0, %s215
      %s232 = sphi 0, %s216
      %s238 = sphi 0, %s240
      %s241 = sphi 0, %s238
      %s242 = sphi 0, %s241
      %s258 = sphi 0, %s242
      %s264 = sphi 0, %s266
      %s267 = sphi 0, %s264
      %s268 = sphi 0, %s267
      %s284 = sphi 0, %s268
      %s290 = sphi 0, %s292
      %s293 = sphi 0, %s290
      %s294 = sphi 0, %s293
      %s310 = sphi 0, %s294
      %s316 = sphi 0, %s318
      %s319 = sphi 0, %s316
      %s320 = sphi 0, %s319
      %s336 = sphi 0, %s320
      %s342 = sphi 0, %s344
      %s345 = sphi 0, %s342
      %s346 = sphi 0, %s345
      %s362 = sphi 0, %s346
      %s368 = sphi 0, %s370
      %s371 = sphi 0, %s368
      %s372 = sphi 0, %s371
      %s388 = sphi 0, %s372
      %s394 = sphi 0, %s396
      %s397 = sphi 0, %s394
      %s398 = sphi 0, %s397
      %s414 = sphi 0, %s398
      %s420 = sphi 0, %s422
      %s423 = sphi 0, %s420
      %s424 = sphi 0, %s423
      %s440 = sphi 0, %s424
      %s446 = sphi 0, %s448
      %s449 = sphi 0, %s446
      %s450 = sphi 0, %s449
      %s466 = sphi 0, %s450
      %s472 = sphi 0, %s474
      %s475 = sphi 0, %s472
      %s476 = sphi 0, %s475
      %s492 = sphi 0, %s476
      %s498 = sphi 0, %s500
      %s501 = sphi 0, %s498
      %s502 = sphi 0, %s501
      %s518 = sphi 0, %s502
      %s524 = sphi 0, %s526
      %s527 = sphi 0, %s524
      %s528 = sphi 0, %s527
      %s544 = sphi 0, %s528
      %s550 = sphi 0, %s552
      %s553 = sphi 0, %s550
      %s554 = sphi 0, %s553
      %s570 = sphi 0, %s554
      %s576 = sphi 0, %s578
      %s579 = sphi 0, %s576
      %s580 = sphi 0, %s579
      %s596 = sphi 0, %s580
      %s602 = sphi 0, %s604
      %s605 = sphi 0, %s602
      %s606 = sphi 0, %s605
      %s622 = sphi 0, %s606
      %s628 = sphi 0, %s630
      %s631 = sphi 0, %s628
      %s632 = sphi 0, %s631
      %s648 = sphi 0, %s632
      %s654 = sphi 0, %s656
      %s657 = sphi 0, %s654
      %s658 = sphi 0, %s657
      %s674 = sphi 0, %s658
      %s680 = sphi 0, %s682
      %s683 = sphi 0, %s680
      %s684 = sphi 0, %s683
      %s700 = sphi 0, %s684
      %s704 = sphi 0, %s704
      %s706 = sphi 0, %s704
      %s707 = sphi 0, %s706
      %s721 = sphi 0, %s707
      %s725 = sphi 0, %s725
      %s727 = sphi 0, %s725
      %s728 = sphi 0, %s727
      %s742 = sphi 0, %s728
      %s748 = sphi 0, %s750
      %s751 = sphi 0, %s748
      %s752 = sphi 0, %s751
      %s768 = sphi 0, %s752
    $region4: #{transformer_decoder_forward.1} parent=1 // loop_header_branch
      %63 = sbr.rel (%p61) target = $region8
    $region5: #{transformer_decoder_forward.1} parent=1 // loop_body
      %s65 = ssub.s32 %s60, 1
      %s66 = ssub.s32 %s60, 2
      %s73 = sadd.s32 1, %s68
      %p74 = scmp.ge.s32.totalorder %s73, 2
      %s75 = scalar_select %p74, 0, %s73
      %s76 = sadd.s32 1, %s67
      %s77 = scalar_select %p74, %s76, %s67
      %p78 = scmp.ge.s32.totalorder %s77, 2
      %s79 = scalar_select %p78, 0, %s77
      %s80 = ssub.s32 %s67, %s79
      %p81 = scmp.eq.s32.totalorder %s80, 0
      %s83 = sadd.s32 %s82, 1
      %s84 = scalar_select %p81, %s82, %s83
      %p87 = pneg %p81
      %p88 = scmp.eq.s32.totalorder %s60, 3
      %p89 = por %p87, %p88
      %p90 = scmp.ne.s32.totalorder %s82, %s85
      %p91 = scmp.eq.s32.totalorder %s60, 0
      %p92 = por %p90, %p91
      %p93 = scmp.ne.s32.totalorder %s82, %s85
      %p94 = scmp.eq.s32.totalorder %s65, 3
      %p95 = por %p93, %p94
      %p96 = scmp.ne.s32.totalorder %s85, %s86
      %p97 = scmp.eq.s32.totalorder %s65, 0
      %p98 = por %p96, %p97
      %p99 = scmp.ne.s32.totalorder %s85, %s86
      %p100 = scmp.eq.s32.totalorder %s66, 3
      %p101 = por %p99, %p100
      %p103 = scmp.ne.s32.totalorder %s86, %s102
      %p104 = scmp.eq.s32.totalorder %s66, 0
      %p105 = por %p103, %p104
      %s106 = ssub.s32 %s67, %s79
      %p107 = scmp.eq.s32.totalorder %s106, 0
      %s109 = sadd.s32 %s108, 1
      %s110 = scalar_select %p107, %s108, %s109
      %p113 = pneg %p107
      %p114 = scmp.eq.s32.totalorder %s60, 3
      %p115 = por %p113, %p114
      %p116 = scmp.ne.s32.totalorder %s108, %s111
      %p117 = scmp.eq.s32.totalorder %s60, 0
      %p118 = por %p116, %p117
      %p119 = scmp.ne.s32.totalorder %s108, %s111
      %p120 = scmp.eq.s32.totalorder %s65, 3
      %p121 = por %p119, %p120
      %p122 = scmp.ne.s32.totalorder %s111, %s112
      %p123 = scmp.eq.s32.totalorder %s65, 0
      %p124 = por %p122, %p123
      %p125 = scmp.ne.s32.totalorder %s111, %s112
      %p126 = scmp.eq.s32.totalorder %s66, 3
      %p127 = por %p125, %p126
      %p129 = scmp.ne.s32.totalorder %s112, %s128
      %p130 = scmp.eq.s32.totalorder %s66, 0
      %p131 = por %p129, %p130
      %s132 = ssub.s32 %s67, %s79
      %p133 = scmp.eq.s32.totalorder %s132, 0
      %s135 = sadd.s32 %s134, 1
      %s136 = scalar_select %p133, %s134, %s135
      %p139 = pneg %p133
      %p140 = scmp.eq.s32.totalorder %s60, 3
      %p141 = por %p139, %p140
      %p142 = scmp.ne.s32.totalorder %s134, %s137
      %p143 = scmp.eq.s32.totalorder %s60, 0
      %p144 = por %p142, %p143
      %p145 = scmp.ne.s32.totalorder %s134, %s137
      %p146 = scmp.eq.s32.totalorder %s65, 3
      %p147 = por %p145, %p146
      %p148 = scmp.ne.s32.totalorder %s137, %s138
      %p149 = scmp.eq.s32.totalorder %s65, 0
      %p150 = por %p148, %p149
      %p151 = scmp.ne.s32.totalorder %s137, %s138
      %p152 = scmp.eq.s32.totalorder %s66, 3
      %p153 = por %p151, %p152
      %p155 = scmp.ne.s32.totalorder %s138, %s154
      %p156 = scmp.eq.s32.totalorder %s66, 0
      %p157 = por %p155, %p156
      %s158 = ssub.s32 %s67, %s79
      %p159 = scmp.eq.s32.totalorder %s158, 0
      %s161 = sadd.s32 %s160, 1
      %s162 = scalar_select %p159, %s160, %s161
      %p165 = pneg %p159
      %p166 = scmp.eq.s32.totalorder %s60, 3
      %p167 = por %p165, %p166
      %p168 = scmp.ne.s32.totalorder %s160, %s163
      %p169 = scmp.eq.s32.totalorder %s60, 0
      %p170 = por %p168, %p169
      %p171 = scmp.ne.s32.totalorder %s160, %s163
      %p172 = scmp.eq.s32.totalorder %s65, 3
      %p173 = por %p171, %p172
      %p174 = scmp.ne.s32.totalorder %s163, %s164
      %p175 = scmp.eq.s32.totalorder %s65, 0
      %p176 = por %p174, %p175
      %p177 = scmp.ne.s32.totalorder %s163, %s164
      %p178 = scmp.eq.s32.totalorder %s66, 3
      %p179 = por %p177, %p178
      %p181 = scmp.ne.s32.totalorder %s164, %s180
      %p182 = scmp.eq.s32.totalorder %s66, 0
      %p183 = por %p181, %p182
      %s184 = ssub.s32 %s68, %s75
      %p185 = scmp.eq.s32.totalorder %s184, 0
      %s187 = sadd.s32 %s186, 1
      %s188 = scalar_select %p185, %s186, %s187
      %p191 = pneg %p185
      %p192 = scmp.eq.s32.totalorder %s60, 3
      %p193 = por %p191, %p192
      %p194 = scmp.ne.s32.totalorder %s186, %s189
      %p195 = scmp.eq.s32.totalorder %s60, 0
      %p196 = por %p194, %p195
      %p197 = scmp.ne.s32.totalorder %s186, %s189
      %p198 = scmp.eq.s32.totalorder %s65, 3
      %p199 = por %p197, %p198
      %p200 = scmp.ne.s32.totalorder %s189, %s190
      %p201 = scmp.eq.s32.totalorder %s65, 0
      %p202 = por %p200, %p201
      %p203 = scmp.ne.s32.totalorder %s189, %s190
      %p204 = scmp.eq.s32.totalorder %s66, 3
      %p205 = por %p203, %p204
      %p207 = scmp.ne.s32.totalorder %s190, %s206
      %p208 = scmp.eq.s32.totalorder %s66, 0
      %p209 = por %p207, %p208
      %s210 = ssub.s32 %s68, %s75
      %p211 = scmp.eq.s32.totalorder %s210, 0
      %s213 = sadd.s32 %s212, 1
      %s214 = scalar_select %p211, %s212, %s213
      %p217 = pneg %p211
      %p218 = scmp.eq.s32.totalorder %s60, 3
      %p219 = por %p217, %p218
      %p220 = scmp.ne.s32.totalorder %s212, %s215
      %p221 = scmp.eq.s32.totalorder %s60, 0
      %p222 = por %p220, %p221
      %p223 = scmp.ne.s32.totalorder %s212, %s215
      %p224 = scmp.eq.s32.totalorder %s65, 3
      %p225 = por %p223, %p224
      %p226 = scmp.ne.s32.totalorder %s215, %s216
      %p227 = scmp.eq.s32.totalorder %s65, 0
      %p228 = por %p226, %p227
      %p229 = scmp.ne.s32.totalorder %s215, %s216
      %p230 = scmp.eq.s32.totalorder %s66, 3
      %p231 = por %p229, %p230
      %p233 = scmp.ne.s32.totalorder %s216, %s232
      %p234 = scmp.eq.s32.totalorder %s66, 0
      %p235 = por %p233, %p234
      %s236 = ssub.s32 %s68, %s75
      %p237 = scmp.eq.s32.totalorder %s236, 0
      %s239 = sadd.s32 %s238, 1
      %s240 = scalar_select %p237, %s238, %s239
      %p243 = pneg %p237
      %p244 = scmp.eq.s32.totalorder %s60, 3
      %p245 = por %p243, %p244
      %p246 = scmp.ne.s32.totalorder %s238, %s241
      %p247 = scmp.eq.s32.totalorder %s60, 0
      %p248 = por %p246, %p247
      %p249 = scmp.ne.s32.totalorder %s238, %s241
      %p250 = scmp.eq.s32.totalorder %s65, 3
      %p251 = por %p249, %p250
      %p252 = scmp.ne.s32.totalorder %s241, %s242
      %p253 = scmp.eq.s32.totalorder %s65, 0
      %p254 = por %p252, %p253
      %p255 = scmp.ne.s32.totalorder %s241, %s242
      %p256 = scmp.eq.s32.totalorder %s66, 3
      %p257 = por %p255, %p256
      %p259 = scmp.ne.s32.totalorder %s242, %s258
      %p260 = scmp.eq.s32.totalorder %s66, 0
      %p261 = por %p259, %p260
      %s262 = ssub.s32 %s68, %s75
      %p263 = scmp.eq.s32.totalorder %s262, 0
      %s265 = sadd.s32 %s264, 1
      %s266 = scalar_select %p263, %s264, %s265
      %p269 = pneg %p263
      %p270 = scmp.eq.s32.totalorder %s60, 3
      %p271 = por %p269, %p270
      %p272 = scmp.ne.s32.totalorder %s264, %s267
      %p273 = scmp.eq.s32.totalorder %s60, 0
      %p274 = por %p272, %p273
      %p275 = scmp.ne.s32.totalorder %s264, %s267
      %p276 = scmp.eq.s32.totalorder %s65, 3
      %p277 = por %p275, %p276
      %p278 = scmp.ne.s32.totalorder %s267, %s268
      %p279 = scmp.eq.s32.totalorder %s65, 0
      %p280 = por %p278, %p279
      %p281 = scmp.ne.s32.totalorder %s267, %s268
      %p282 = scmp.eq.s32.totalorder %s66, 3
      %p283 = por %p281, %p282
      %p285 = scmp.ne.s32.totalorder %s268, %s284
      %p286 = scmp.eq.s32.totalorder %s66, 0
      %p287 = por %p285, %p286
      %s288 = ssub.s32 %s68, %s75
      %p289 = scmp.eq.s32.totalorder %s288, 0
      %s291 = sadd.s32 %s290, 1
      %s292 = scalar_select %p289, %s290, %s291
      %p295 = pneg %p289
      %p296 = scmp.eq.s32.totalorder %s60, 3
      %p297 = por %p295, %p296
      %p298 = scmp.ne.s32.totalorder %s290, %s293
      %p299 = scmp.eq.s32.totalorder %s60, 0
      %p300 = por %p298, %p299
      %p301 = scmp.ne.s32.totalorder %s290, %s293
      %p302 = scmp.eq.s32.totalorder %s65, 3
      %p303 = por %p301, %p302
      %p304 = scmp.ne.s32.totalorder %s293, %s294
      %p305 = scmp.eq.s32.totalorder %s65, 0
      %p306 = por %p304, %p305
      %p307 = scmp.ne.s32.totalorder %s293, %s294
      %p308 = scmp.eq.s32.totalorder %s66, 3
      %p309 = por %p307, %p308
      %p311 = scmp.ne.s32.totalorder %s294, %s310
      %p312 = scmp.eq.s32.totalorder %s66, 0
      %p313 = por %p311, %p312
      %s314 = ssub.s32 %s68, %s75
      %p315 = scmp.eq.s32.totalorder %s314, 0
      %s317 = sadd.s32 %s316, 1
      %s318 = scalar_select %p315, %s316, %s317
      %p321 = pneg %p315
      %p322 = scmp.eq.s32.totalorder %s60, 3
      %p323 = por %p321, %p322
      %p324 = scmp.ne.s32.totalorder %s316, %s319
      %p325 = scmp.eq.s32.totalorder %s60, 0
      %p326 = por %p324, %p325
      %p327 = scmp.ne.s32.totalorder %s316, %s319
      %p328 = scmp.eq.s32.totalorder %s65, 3
      %p329 = por %p327, %p328
      %p330 = scmp.ne.s32.totalorder %s319, %s320
      %p331 = scmp.eq.s32.totalorder %s65, 0
      %p332 = por %p330, %p331
      %p333 = scmp.ne.s32.totalorder %s319, %s320
      %p334 = scmp.eq.s32.totalorder %s66, 3
      %p335 = por %p333, %p334
      %p337 = scmp.ne.s32.totalorder %s320, %s336
      %p338 = scmp.eq.s32.totalorder %s66, 0
      %p339 = por %p337, %p338
      %s340 = ssub.s32 %s68, %s75
      %p341 = scmp.eq.s32.totalorder %s340, 0
      %s343 = sadd.s32 %s342, 1
      %s344 = scalar_select %p341, %s342, %s343
      %p347 = pneg %p341
      %p348 = scmp.eq.s32.totalorder %s60, 3
      %p349 = por %p347, %p348
      %p350 = scmp.ne.s32.totalorder %s342, %s345
      %p351 = scmp.eq.s32.totalorder %s60, 0
      %p352 = por %p350, %p351
      %p353 = scmp.ne.s32.totalorder %s342, %s345
      %p354 = scmp.eq.s32.totalorder %s65, 3
      %p355 = por %p353, %p354
      %p356 = scmp.ne.s32.totalorder %s345, %s346
      %p357 = scmp.eq.s32.totalorder %s65, 0
      %p358 = por %p356, %p357
      %p359 = scmp.ne.s32.totalorder %s345, %s346
      %p360 = scmp.eq.s32.totalorder %s66, 3
      %p361 = por %p359, %p360
      %p363 = scmp.ne.s32.totalorder %s346, %s362
      %p364 = scmp.eq.s32.totalorder %s66, 0
      %p365 = por %p363, %p364
      %s366 = ssub.s32 %s68, %s75
      %p367 = scmp.eq.s32.totalorder %s366, 0
      %s369 = sadd.s32 %s368, 1
      %s370 = scalar_select %p367, %s368, %s369
      %p373 = pneg %p367
      %p374 = scmp.eq.s32.totalorder %s60, 3
      %p375 = por %p373, %p374
      %p376 = scmp.ne.s32.totalorder %s368, %s371
      %p377 = scmp.eq.s32.totalorder %s60, 0
      %p378 = por %p376, %p377
      %p379 = scmp.ne.s32.totalorder %s368, %s371
      %p380 = scmp.eq.s32.totalorder %s65, 3
      %p381 = por %p379, %p380
      %p382 = scmp.ne.s32.totalorder %s371, %s372
      %p383 = scmp.eq.s32.totalorder %s65, 0
      %p384 = por %p382, %p383
      %p385 = scmp.ne.s32.totalorder %s371, %s372
      %p386 = scmp.eq.s32.totalorder %s66, 3
      %p387 = por %p385, %p386
      %p389 = scmp.ne.s32.totalorder %s372, %s388
      %p390 = scmp.eq.s32.totalorder %s66, 0
      %p391 = por %p389, %p390
      %s392 = ssub.s32 %s68, %s75
      %p393 = scmp.eq.s32.totalorder %s392, 0
      %s395 = sadd.s32 %s394, 1
      %s396 = scalar_select %p393, %s394, %s395
      %p399 = pneg %p393
      %p400 = scmp.eq.s32.totalorder %s60, 3
      %p401 = por %p399, %p400
      %p402 = scmp.ne.s32.totalorder %s394, %s397
      %p403 = scmp.eq.s32.totalorder %s60, 0
      %p404 = por %p402, %p403
      %p405 = scmp.ne.s32.totalorder %s394, %s397
      %p406 = scmp.eq.s32.totalorder %s65, 3
      %p407 = por %p405, %p406
      %p408 = scmp.ne.s32.totalorder %s397, %s398
      %p409 = scmp.eq.s32.totalorder %s65, 0
      %p410 = por %p408, %p409
      %p411 = scmp.ne.s32.totalorder %s397, %s398
      %p412 = scmp.eq.s32.totalorder %s66, 3
      %p413 = por %p411, %p412
      %p415 = scmp.ne.s32.totalorder %s398, %s414
      %p416 = scmp.eq.s32.totalorder %s66, 0
      %p417 = por %p415, %p416
      %s418 = ssub.s32 %s68, %s75
      %p419 = scmp.eq.s32.totalorder %s418, 0
      %s421 = sadd.s32 %s420, 1
      %s422 = scalar_select %p419, %s420, %s421
      %p425 = pneg %p419
      %p426 = scmp.eq.s32.totalorder %s60, 3
      %p427 = por %p425, %p426
      %p428 = scmp.ne.s32.totalorder %s420, %s423
      %p429 = scmp.eq.s32.totalorder %s60, 0
      %p430 = por %p428, %p429
      %p431 = scmp.ne.s32.totalorder %s420, %s423
      %p432 = scmp.eq.s32.totalorder %s65, 3
      %p433 = por %p431, %p432
      %p434 = scmp.ne.s32.totalorder %s423, %s424
      %p435 = scmp.eq.s32.totalorder %s65, 0
      %p436 = por %p434, %p435
      %p437 = scmp.ne.s32.totalorder %s423, %s424
      %p438 = scmp.eq.s32.totalorder %s66, 3
      %p439 = por %p437, %p438
      %p441 = scmp.ne.s32.totalorder %s424, %s440
      %p442 = scmp.eq.s32.totalorder %s66, 0
      %p443 = por %p441, %p442
      %s444 = ssub.s32 %s68, %s75
      %p445 = scmp.eq.s32.totalorder %s444, 0
      %s447 = sadd.s32 %s446, 1
      %s448 = scalar_select %p445, %s446, %s447
      %p451 = pneg %p445
      %p452 = scmp.eq.s32.totalorder %s60, 3
      %p453 = por %p451, %p452
      %p454 = scmp.ne.s32.totalorder %s446, %s449
      %p455 = scmp.eq.s32.totalorder %s60, 0
      %p456 = por %p454, %p455
      %p457 = scmp.ne.s32.totalorder %s446, %s449
      %p458 = scmp.eq.s32.totalorder %s65, 3
      %p459 = por %p457, %p458
      %p460 = scmp.ne.s32.totalorder %s449, %s450
      %p461 = scmp.eq.s32.totalorder %s65, 0
      %p462 = por %p460, %p461
      %p463 = scmp.ne.s32.totalorder %s449, %s450
      %p464 = scmp.eq.s32.totalorder %s66, 3
      %p465 = por %p463, %p464
      %p467 = scmp.ne.s32.totalorder %s450, %s466
      %p468 = scmp.eq.s32.totalorder %s66, 0
      %p469 = por %p467, %p468
      %s470 = ssub.s32 %s68, %s75
      %p471 = scmp.eq.s32.totalorder %s470, 0
      %s473 = sadd.s32 %s472, 1
      %s474 = scalar_select %p471, %s472, %s473
      %p477 = pneg %p471
      %p478 = scmp.eq.s32.totalorder %s60, 3
      %p479 = por %p477, %p478
      %p480 = scmp.ne.s32.totalorder %s472, %s475
      %p481 = scmp.eq.s32.totalorder %s60, 0
      %p482 = por %p480, %p481
      %p483 = scmp.ne.s32.totalorder %s472, %s475
      %p484 = scmp.eq.s32.totalorder %s65, 3
      %p485 = por %p483, %p484
      %p486 = scmp.ne.s32.totalorder %s475, %s476
      %p487 = scmp.eq.s32.totalorder %s65, 0
      %p488 = por %p486, %p487
      %p489 = scmp.ne.s32.totalorder %s475, %s476
      %p490 = scmp.eq.s32.totalorder %s66, 3
      %p491 = por %p489, %p490
      %p493 = scmp.ne.s32.totalorder %s476, %s492
      %p494 = scmp.eq.s32.totalorder %s66, 0
      %p495 = por %p493, %p494
      %s496 = ssub.s32 %s68, %s75
      %p497 = scmp.eq.s32.totalorder %s496, 0
      %s499 = sadd.s32 %s498, 1
      %s500 = scalar_select %p497, %s498, %s499
      %p503 = pneg %p497
      %p504 = scmp.eq.s32.totalorder %s60, 3
      %p505 = por %p503, %p504
      %p506 = scmp.ne.s32.totalorder %s498, %s501
      %p507 = scmp.eq.s32.totalorder %s60, 0
      %p508 = por %p506, %p507
      %p509 = scmp.ne.s32.totalorder %s498, %s501
      %p510 = scmp.eq.s32.totalorder %s65, 3
      %p511 = por %p509, %p510
      %p512 = scmp.ne.s32.totalorder %s501, %s502
      %p513 = scmp.eq.s32.totalorder %s65, 0
      %p514 = por %p512, %p513
      %p515 = scmp.ne.s32.totalorder %s501, %s502
      %p516 = scmp.eq.s32.totalorder %s66, 3
      %p517 = por %p515, %p516
      %p519 = scmp.ne.s32.totalorder %s502, %s518
      %p520 = scmp.eq.s32.totalorder %s66, 0
      %p521 = por %p519, %p520
      %s522 = ssub.s32 %s68, %s75
      %p523 = scmp.eq.s32.totalorder %s522, 0
      %s525 = sadd.s32 %s524, 1
      %s526 = scalar_select %p523, %s524, %s525
      %p529 = pneg %p523
      %p530 = scmp.eq.s32.totalorder %s60, 3
      %p531 = por %p529, %p530
      %p532 = scmp.ne.s32.totalorder %s524, %s527
      %p533 = scmp.eq.s32.totalorder %s60, 0
      %p534 = por %p532, %p533
      %p535 = scmp.ne.s32.totalorder %s524, %s527
      %p536 = scmp.eq.s32.totalorder %s65, 3
      %p537 = por %p535, %p536
      %p538 = scmp.ne.s32.totalorder %s527, %s528
      %p539 = scmp.eq.s32.totalorder %s65, 0
      %p540 = por %p538, %p539
      %p541 = scmp.ne.s32.totalorder %s527, %s528
      %p542 = scmp.eq.s32.totalorder %s66, 3
      %p543 = por %p541, %p542
      %p545 = scmp.ne.s32.totalorder %s528, %s544
      %p546 = scmp.eq.s32.totalorder %s66, 0
      %p547 = por %p545, %p546
      %s548 = ssub.s32 %s68, %s75
      %p549 = scmp.eq.s32.totalorder %s548, 0
      %s551 = sadd.s32 %s550, 1
      %s552 = scalar_select %p549, %s550, %s551
      %p555 = pneg %p549
      %p556 = scmp.eq.s32.totalorder %s60, 3
      %p557 = por %p555, %p556
      %p558 = scmp.ne.s32.totalorder %s550, %s553
      %p559 = scmp.eq.s32.totalorder %s60, 0
      %p560 = por %p558, %p559
      %p561 = scmp.ne.s32.totalorder %s550, %s553
      %p562 = scmp.eq.s32.totalorder %s65, 3
      %p563 = por %p561, %p562
      %p564 = scmp.ne.s32.totalorder %s553, %s554
      %p565 = scmp.eq.s32.totalorder %s65, 0
      %p566 = por %p564, %p565
      %p567 = scmp.ne.s32.totalorder %s553, %s554
      %p568 = scmp.eq.s32.totalorder %s66, 3
      %p569 = por %p567, %p568
      %p571 = scmp.ne.s32.totalorder %s554, %s570
      %p572 = scmp.eq.s32.totalorder %s66, 0
      %p573 = por %p571, %p572
      %s574 = ssub.s32 %s68, %s75
      %p575 = scmp.eq.s32.totalorder %s574, 0
      %s577 = sadd.s32 %s576, 1
      %s578 = scalar_select %p575, %s576, %s577
      %p581 = pneg %p575
      %p582 = scmp.eq.s32.totalorder %s60, 3
      %p583 = por %p581, %p582
      %p584 = scmp.ne.s32.totalorder %s576, %s579
      %p585 = scmp.eq.s32.totalorder %s60, 0
      %p586 = por %p584, %p585
      %p587 = scmp.ne.s32.totalorder %s576, %s579
      %p588 = scmp.eq.s32.totalorder %s65, 3
      %p589 = por %p587, %p588
      %p590 = scmp.ne.s32.totalorder %s579, %s580
      %p591 = scmp.eq.s32.totalorder %s65, 0
      %p592 = por %p590, %p591
      %p593 = scmp.ne.s32.totalorder %s579, %s580
      %p594 = scmp.eq.s32.totalorder %s66, 3
      %p595 = por %p593, %p594
      %p597 = scmp.ne.s32.totalorder %s580, %s596
      %p598 = scmp.eq.s32.totalorder %s66, 0
      %p599 = por %p597, %p598
      %s600 = ssub.s32 %s68, %s75
      %p601 = scmp.eq.s32.totalorder %s600, 0
      %s603 = sadd.s32 %s602, 1
      %s604 = scalar_select %p601, %s602, %s603
      %p607 = pneg %p601
      %p608 = scmp.eq.s32.totalorder %s60, 3
      %p609 = por %p607, %p608
      %p610 = scmp.ne.s32.totalorder %s602, %s605
      %p611 = scmp.eq.s32.totalorder %s60, 0
      %p612 = por %p610, %p611
      %p613 = scmp.ne.s32.totalorder %s602, %s605
      %p614 = scmp.eq.s32.totalorder %s65, 3
      %p615 = por %p613, %p614
      %p616 = scmp.ne.s32.totalorder %s605, %s606
      %p617 = scmp.eq.s32.totalorder %s65, 0
      %p618 = por %p616, %p617
      %p619 = scmp.ne.s32.totalorder %s605, %s606
      %p620 = scmp.eq.s32.totalorder %s66, 3
      %p621 = por %p619, %p620
      %p623 = scmp.ne.s32.totalorder %s606, %s622
      %p624 = scmp.eq.s32.totalorder %s66, 0
      %p625 = por %p623, %p624
      %s626 = ssub.s32 %s68, %s75
      %p627 = scmp.eq.s32.totalorder %s626, 0
      %s629 = sadd.s32 %s628, 1
      %s630 = scalar_select %p627, %s628, %s629
      %p633 = pneg %p627
      %p634 = scmp.eq.s32.totalorder %s60, 3
      %p635 = por %p633, %p634
      %p636 = scmp.ne.s32.totalorder %s628, %s631
      %p637 = scmp.eq.s32.totalorder %s60, 0
      %p638 = por %p636, %p637
      %p639 = scmp.ne.s32.totalorder %s628, %s631
      %p640 = scmp.eq.s32.totalorder %s65, 3
      %p641 = por %p639, %p640
      %p642 = scmp.ne.s32.totalorder %s631, %s632
      %p643 = scmp.eq.s32.totalorder %s65, 0
      %p644 = por %p642, %p643
      %p645 = scmp.ne.s32.totalorder %s631, %s632
      %p646 = scmp.eq.s32.totalorder %s66, 3
      %p647 = por %p645, %p646
      %p649 = scmp.ne.s32.totalorder %s632, %s648
      %p650 = scmp.eq.s32.totalorder %s66, 0
      %p651 = por %p649, %p650
      %s652 = ssub.s32 %s68, %s75
      %p653 = scmp.eq.s32.totalorder %s652, 0
      %s655 = sadd.s32 %s654, 1
      %s656 = scalar_select %p653, %s654, %s655
      %p659 = pneg %p653
      %p660 = scmp.eq.s32.totalorder %s60, 3
      %p661 = por %p659, %p660
      %p662 = scmp.ne.s32.totalorder %s654, %s657
      %p663 = scmp.eq.s32.totalorder %s60, 0
      %p664 = por %p662, %p663
      %p665 = scmp.ne.s32.totalorder %s654, %s657
      %p666 = scmp.eq.s32.totalorder %s65, 3
      %p667 = por %p665, %p666
      %p668 = scmp.ne.s32.totalorder %s657, %s658
      %p669 = scmp.eq.s32.totalorder %s65, 0
      %p670 = por %p668, %p669
      %p671 = scmp.ne.s32.totalorder %s657, %s658
      %p672 = scmp.eq.s32.totalorder %s66, 3
      %p673 = por %p671, %p672
      %p675 = scmp.ne.s32.totalorder %s658, %s674
      %p676 = scmp.eq.s32.totalorder %s66, 0
      %p677 = por %p675, %p676
      %s678 = ssub.s32 %s68, %s75
      %p679 = scmp.eq.s32.totalorder %s678, 0
      %s681 = sadd.s32 %s680, 1
      %s682 = scalar_select %p679, %s680, %s681
      %p685 = pneg %p679
      %p686 = scmp.eq.s32.totalorder %s60, 3
      %p687 = por %p685, %p686
      %p688 = scmp.ne.s32.totalorder %s680, %s683
      %p689 = scmp.eq.s32.totalorder %s60, 0
      %p690 = por %p688, %p689
      %p691 = scmp.ne.s32.totalorder %s680, %s683
      %p692 = scmp.eq.s32.totalorder %s65, 3
      %p693 = por %p691, %p692
      %p694 = scmp.ne.s32.totalorder %s683, %s684
      %p695 = scmp.eq.s32.totalorder %s65, 0
      %p696 = por %p694, %p695
      %p697 = scmp.ne.s32.totalorder %s683, %s684
      %p698 = scmp.eq.s32.totalorder %s66, 3
      %p699 = por %p697, %p698
      %p701 = scmp.ne.s32.totalorder %s684, %s700
      %p702 = scmp.eq.s32.totalorder %s66, 0
      %p703 = por %p701, %p702
      %s705 = sadd.s32 %s704, 1
      %p708 = scmp.eq.s32.totalorder %s60, 3
      %p709 = scmp.ne.s32.totalorder %s704, %s706
      %p710 = scmp.eq.s32.totalorder %s60, 0
      %p711 = por %p709, %p710
      %p712 = scmp.ne.s32.totalorder %s704, %s706
      %p713 = scmp.eq.s32.totalorder %s65, 3
      %p714 = por %p712, %p713
      %p715 = scmp.ne.s32.totalorder %s706, %s707
      %p716 = scmp.eq.s32.totalorder %s65, 0
      %p717 = por %p715, %p716
      %p718 = scmp.ne.s32.totalorder %s706, %s707
      %p719 = scmp.eq.s32.totalorder %s66, 3
      %p720 = por %p718, %p719
      %p722 = scmp.ne.s32.totalorder %s707, %s721
      %p723 = scmp.eq.s32.totalorder %s66, 0
      %p724 = por %p722, %p723
      %s726 = sadd.s32 %s725, 1
      %p729 = scmp.eq.s32.totalorder %s60, 3
      %p730 = scmp.ne.s32.totalorder %s725, %s727
      %p731 = scmp.eq.s32.totalorder %s60, 0
      %p732 = por %p730, %p731
      %p733 = scmp.ne.s32.totalorder %s725, %s727
      %p734 = scmp.eq.s32.totalorder %s65, 3
      %p735 = por %p733, %p734
      %p736 = scmp.ne.s32.totalorder %s727, %s728
      %p737 = scmp.eq.s32.totalorder %s65, 0
      %p738 = por %p736, %p737
      %p739 = scmp.ne.s32.totalorder %s727, %s728
      %p740 = scmp.eq.s32.totalorder %s66, 3
      %p741 = por %p739, %p740
      %p743 = scmp.ne.s32.totalorder %s728, %s742
      %p744 = scmp.eq.s32.totalorder %s66, 0
      %p745 = por %p743, %p744
      %s746 = ssub.s32 %s67, %s79
      %p747 = scmp.eq.s32.totalorder %s746, 0
      %s749 = sadd.s32 %s748, 1
      %s750 = scalar_select %p747, %s748, %s749
      %p753 = pneg %p747
      %p754 = scmp.eq.s32.totalorder %s60, 3
      %p755 = por %p753, %p754
      %p756 = scmp.ne.s32.totalorder %s748, %s751
      %p757 = scmp.eq.s32.totalorder %s60, 0
      %p758 = por %p756, %p757
      %p759 = scmp.ne.s32.totalorder %s748, %s751
      %p760 = scmp.eq.s32.totalorder %s65, 3
      %p761 = por %p759, %p760
      %p762 = scmp.ne.s32.totalorder %s751, %s752
      %p763 = scmp.eq.s32.totalorder %s65, 0
      %p764 = por %p762, %p763
      %p765 = scmp.ne.s32.totalorder %s751, %s752
      %p766 = scmp.eq.s32.totalorder %s66, 3
      %p767 = por %p765, %p766
      %p769 = scmp.ne.s32.totalorder %s752, %s768
      %p770 = scmp.eq.s32.totalorder %s66, 0
      %p771 = por %p769, %p770
      %p772 = scmp.le.s32.totalorder 1, %s60
      %p773 = scmp.lt.s32.totalorder %s60, 5
      %p774 = pnand %p772, %p773
      %p775 = pneg %p774
      // Predicated region
      $region9: #{transformer_decoder_forward.1} parent=5 // pred_check
        _
      $region10: #{transformer_decoder_forward.1} parent=5 // pred_check_branch
        %777 = sbr.rel (%p774) target = $region12
      $region11: #{transformer_decoder_forward.1} parent=5 // pred_region
        %s778 = ssub.s32 %s60, 1
        // Predicated region
        $region13: #{transformer_decoder_forward.1} parent=11 // pred_check
          %p779 = pneg %p717
        $region14: #{transformer_decoder_forward.1} parent=11 // pred_check_branch
          %781 = sbr.rel (%p779) target = $region16
        $region15: #{transformer_decoder_forward.1} parent=11 // pred_region
          %s783 = ssub.s32 16, 16
          %784 = vsyncadd [#allocation29], %s783
          %s786 = sshll.u32 [#allocation28], 4
          %s787 = int_to_ptr.vmem [resolvable:$true] %s786
          %789 = dma.hbm_to_vmem [thread:$0]  %s24, 16, %s787, [#allocation29]
        $region16: #{transformer_decoder_forward.1} parent=11 // pred_fallthru
          _
        // Predicated region
        $region17: #{transformer_decoder_forward.1} parent=11 // pred_check
          %p790 = pneg %p738
        $region18: #{transformer_decoder_forward.1} parent=11 // pred_check_branch
          %792 = sbr.rel (%p790) target = $region20
        $region19: #{transformer_decoder_forward.1} parent=11 // pred_region
          _
        $region20: #{transformer_decoder_forward.1} parent=11 // pred_fallthru
          _
      $region12: #{transformer_decoder_forward.1} parent=5 // pred_fallthru
        _
      %p793 = scmp.lt.s32.totalorder %s60, 4
      // Predicated region
      $region21: #{transformer_decoder_forward.1} parent=5 // pred_check
        %p794 = pneg %p793
      $region22: #{transformer_decoder_forward.1} parent=5 // pred_check_branch
        %796 = sbr.rel (%p794) target = $region24
      $region23: #{transformer_decoder_forward.1} parent=5 // pred_region
        // Predicated region
        $region25: #{transformer_decoder_forward.1} parent=23 // pred_check
          %p797 = pneg %p92
        $region26: #{transformer_decoder_forward.1} parent=23 // pred_check_branch
          %799 = sbr.rel (%p797) target = $region28
        $region27: #{transformer_decoder_forward.1} parent=23 // pred_region
          %s800 = sand.u32 %s82, 1
          %s801 = scalar_lea.sflag [#allocation5], %s800
          %s802 = sand.u32 %s82, 1
          %s803 = smul.addr %s802, 8
          %s804 = scalar_lea.vmem [#allocation4], %s803
          %s806 = ssub.s32 128, 128
          %807 = vsyncadd %s801, %s806
          %s808 = smul.addr %s67, 128
          %s809 = scalar_lea.hbm %s0, %s808
          %s811 = sshll.u32 %s804, 4
          %s812 = int_to_ptr.vmem [resolvable:$true] %s811
          %814 = dma.hbm_to_vmem [thread:$0]  %s809, 128, %s812, %s801
        $region28: #{transformer_decoder_forward.1} parent=23 // pred_fallthru
          _
        // Predicated region
        $region29: #{transformer_decoder_forward.1} parent=23 // pred_check
          %p815 = pneg %p118
        $region30: #{transformer_decoder_forward.1} parent=23 // pred_check_branch
          %817 = sbr.rel (%p815) target = $region32
        $region31: #{transformer_decoder_forward.1} parent=23 // pred_region
          %s818 = sand.u32 %s60, 1
          %s819 = scalar_lea.sflag [#allocation8], %s818
          %s820 = sand.u32 %s108, 1
          %s821 = smul.addr %s820, 8
          %s822 = scalar_lea.vmem [#allocation7], %s821
          %s824 = ssub.s32 128, 128
          %825 = vsyncadd %s819, %s824
          %s826 = smul.addr %s67, 128
          %s827 = scalar_lea.hbm %s1, %s826
          %s829 = sshll.u32 %s822, 4
          %s830 = int_to_ptr.vmem [resolvable:$true] %s829
          %832 = dma.hbm_to_vmem [thread:$0]  %s827, 128, %s830, %s819
        $region32: #{transformer_decoder_forward.1} parent=23 // pred_fallthru
          _
        // Predicated region
        $region33: #{transformer_decoder_forward.1} parent=23 // pred_check
          %p833 = pneg %p144
        $region34: #{transformer_decoder_forward.1} parent=23 // pred_check_branch
          %835 = sbr.rel (%p833) target = $region36
        $region35: #{transformer_decoder_forward.1} parent=23 // pred_region
          %s836 = sand.u32 %s60, 1
          %s837 = scalar_lea.sflag [#allocation8], %s836
          %s838 = sand.u32 %s134, 1
          %s839 = smul.addr %s838, 8
          %s840 = scalar_lea.vmem [#allocation9], %s839
          %s842 = ssub.s32 128, 128
          %843 = vsyncadd %s837, %s842
          %s844 = smul.addr %s67, 128
          %s845 = scalar_lea.hbm %s2, %s844
          %s847 = sshll.u32 %s840, 4
          %s848 = int_to_ptr.vmem [resolvable:$true] %s847
          %850 = dma.hbm_to_vmem [thread:$0]  %s845, 128, %s848, %s837
        $region36: #{transformer_decoder_forward.1} parent=23 // pred_fallthru
          _
        // Predicated region
        $region37: #{transformer_decoder_forward.1} parent=23 // pred_check
          %p851 = pneg %p170
        $region38: #{transformer_decoder_forward.1} parent=23 // pred_check_branch
          %853 = sbr.rel (%p851) target = $region40
        $region39: #{transformer_decoder_forward.1} parent=23 // pred_region
          %s854 = sand.u32 %s60, 1
          %s855 = scalar_lea.sflag [#allocation11], %s854
          %s856 = sand.u32 %s160, 1
          %s857 = smul.addr %s856, 8
          %s858 = scalar_lea.vmem [#allocation10], %s857
          %s860 = ssub.s32 128, 128
          %861 = vsyncadd %s855, %s860
          %s862 = smul.addr %s67, 128
          %s863 = scalar_lea.hbm %s3, %s862
          %s865 = sshll.u32 %s858, 4
          %s866 = int_to_ptr.vmem [resolvable:$true] %s865
          %868 = dma.hbm_to_vmem [thread:$0]  %s863, 128, %s866, %s855
        $region40: #{transformer_decoder_forward.1} parent=23 // pred_fallthru
          _
        // Predicated region
        $region41: #{transformer_decoder_forward.1} parent=23 // pred_check
          %p869 = pneg %p196
        $region42: #{transformer_decoder_forward.1} parent=23 // pred_check_branch
          %871 = sbr.rel (%p869) target = $region44
        $region43: #{transformer_decoder_forward.1} parent=23 // pred_region
          %p872 = scmp.lt.s32.totalorder %s68, 1
          %s873 = scalar_select %p872, %s68, 1
          %s874 = scalar_lea.vmem %s4, %s873
        $region44: #{transformer_decoder_forward.1} parent=23 // pred_fallthru
          _
        // Predicated region
        $region45: #{transformer_decoder_forward.1} parent=23 // pred_check
          %p875 = pneg %p222
        $region46: #{transformer_decoder_forward.1} parent=23 // pred_check_branch
          %877 = sbr.rel (%p875) target = $region48
        $region47: #{transformer_decoder_forward.1} parent=23 // pred_region
          %p878 = scmp.lt.s32.totalorder %s68, 1
          %s879 = scalar_select %p878, %s68, 1
          %s880 = scalar_lea.vmem %s5, %s879
        $region48: #{transformer_decoder_forward.1} parent=23 // pred_fallthru
          _
        // Predicated region
        $region49: #{transformer_decoder_forward.1} parent=23 // pred_check
          %p881 = pneg %p248
        $region50: #{transformer_decoder_forward.1} parent=23 // pred_check_branch
          %883 = sbr.rel (%p881) target = $region52
        $region51: #{transformer_decoder_forward.1} parent=23 // pred_region
          %p884 = scmp.lt.s32.totalorder %s68, 1
          %s885 = scalar_select %p884, %s68, 1
          %s886 = smul.addr %s885, 4
          %s887 = smul.addr %s886, 4
          %s888 = scalar_lea.vmem %s6, %s887
        $region52: #{transformer_decoder_forward.1} parent=23 // pred_fallthru
          _
        // Predicated region
        $region53: #{transformer_decoder_forward.1} parent=23 // pred_check
          %p889 = pneg %p274
        $region54: #{transformer_decoder_forward.1} parent=23 // pred_check_branch
          %891 = sbr.rel (%p889) target = $region56
        $region55: #{transformer_decoder_forward.1} parent=23 // pred_region
          %p892 = scmp.lt.s32.totalorder %s68, 1
          %s893 = scalar_select %p892, %s68, 1
          %s894 = scalar_lea.vmem %s7, %s893
        $region56: #{transformer_decoder_forward.1} parent=23 // pred_fallthru
          _
        // Predicated region
        $region57: #{transformer_decoder_forward.1} parent=23 // pred_check
          %p895 = pneg %p300
        $region58: #{transformer_decoder_forward.1} parent=23 // pred_check_branch
          %897 = sbr.rel (%p895) target = $region60
        $region59: #{transformer_decoder_forward.1} parent=23 // pred_region
          %p898 = scmp.lt.s32.totalorder %s68, 1
          %s899 = scalar_select %p898, %s68, 1
          %s900 = smul.addr %s899, 4
          %s901 = smul.addr %s900, 4
          %s902 = scalar_lea.vmem %s8, %s901
        $region60: #{transformer_decoder_forward.1} parent=23 // pred_fallthru
          _
        // Predicated region
        $region61: #{transformer_decoder_forward.1} parent=23 // pred_check
          %p903 = pneg %p326
        $region62: #{transformer_decoder_forward.1} parent=23 // pred_check_branch
          %905 = sbr.rel (%p903) target = $region64
        $region63: #{transformer_decoder_forward.1} parent=23 // pred_region
          %p906 = scmp.lt.s32.totalorder %s68, 1
          %s907 = scalar_select %p906, %s68, 1
          %s908 = scalar_lea.vmem %s9, %s907
        $region64: #{transformer_decoder_forward.1} parent=23 // pred_fallthru
          _
        // Predicated region
        $region65: #{transformer_decoder_forward.1} parent=23 // pred_check
          %p909 = pneg %p352
        $region66: #{transformer_decoder_forward.1} parent=23 // pred_check_branch
          %911 = sbr.rel (%p909) target = $region68
        $region67: #{transformer_decoder_forward.1} parent=23 // pred_region
          %s912 = sand.u32 %s60, 1
          %s913 = scalar_lea.sflag [#allocation11], %s912
          %s914 = sand.u32 %s342, 1
          %s915 = scalar_lea.vmem [#allocation12], %s914
          %s917 = ssub.s32 16, 16
          %918 = vsyncadd %s913, %s917
          %s919 = smul.addr %s68, 16
          %s920 = scalar_lea.hbm %s10, %s919
          %s922 = sshll.u32 %s915, 4
          %s923 = int_to_ptr.vmem [resolvable:$true] %s922
          %925 = dma.hbm_to_vmem [thread:$0]  %s920, 16, %s923, %s913
        $region68: #{transformer_decoder_forward.1} parent=23 // pred_fallthru
          _
        // Predicated region
        $region69: #{transformer_decoder_forward.1} parent=23 // pred_check
          %p926 = pneg %p378
        $region70: #{transformer_decoder_forward.1} parent=23 // pred_check_branch
          %928 = sbr.rel (%p926) target = $region72
        $region71: #{transformer_decoder_forward.1} parent=23 // pred_region
          %s929 = sand.u32 %s60, 1
          %s930 = scalar_lea.sflag [#allocation14], %s929
          %s931 = sand.u32 %s368, 1
          %s932 = scalar_lea.vmem [#allocation13], %s931
          %s934 = ssub.s32 16, 16
          %935 = vsyncadd %s930, %s934
          %s936 = smul.addr %s68, 16
          %s937 = scalar_lea.hbm %s11, %s936
          %s939 = sshll.u32 %s932, 4
          %s940 = int_to_ptr.vmem [resolvable:$true] %s939
          %942 = dma.hbm_to_vmem [thread:$0]  %s937, 16, %s940, %s930
        $region72: #{transformer_decoder_forward.1} parent=23 // pred_fallthru
          _
        // Predicated region
        $region73: #{transformer_decoder_forward.1} parent=23 // pred_check
          %p943 = pneg %p404
        $region74: #{transformer_decoder_forward.1} parent=23 // pred_check_branch
          %945 = sbr.rel (%p943) target = $region76
        $region75: #{transformer_decoder_forward.1} parent=23 // pred_region
          %p946 = scmp.lt.s32.totalorder %s68, 1
          %s947 = scalar_select %p946, %s68, 1
          %s948 = smul.addr %s947, 4
          %s949 = smul.addr %s948, 4
          %s950 = scalar_lea.vmem %s12, %s949
        $region76: #{transformer_decoder_forward.1} parent=23 // pred_fallthru
          _
        // Predicated region
        $region77: #{transformer_decoder_forward.1} parent=23 // pred_check
          %p951 = pneg %p430
        $region78: #{transformer_decoder_forward.1} parent=23 // pred_check_branch
          %953 = sbr.rel (%p951) target = $region80
        $region79: #{transformer_decoder_forward.1} parent=23 // pred_region
          %s954 = sand.u32 %s60, 1
          %s955 = scalar_lea.sflag [#allocation14], %s954
          %s956 = sand.u32 %s420, 1
          %s957 = scalar_lea.vmem [#allocation15], %s956
          %s959 = ssub.s32 16, 16
          %960 = vsyncadd %s955, %s959
          %s961 = smul.addr %s68, 16
          %s962 = scalar_lea.hbm %s13, %s961
          %s964 = sshll.u32 %s957, 4
          %s965 = int_to_ptr.vmem [resolvable:$true] %s964
          %967 = dma.hbm_to_vmem [thread:$0]  %s962, 16, %s965, %s955
        $region80: #{transformer_decoder_forward.1} parent=23 // pred_fallthru
          _
        // Predicated region
        $region81: #{transformer_decoder_forward.1} parent=23 // pred_check
          %p968 = pneg %p456
        $region82: #{transformer_decoder_forward.1} parent=23 // pred_check_branch
          %970 = sbr.rel (%p968) target = $region84
        $region83: #{transformer_decoder_forward.1} parent=23 // pred_region
          %p971 = scmp.lt.s32.totalorder %s68, 1
          %s972 = scalar_select %p971, %s68, 1
          %s973 = smul.addr %s972, 4
          %s974 = smul.addr %s973, 4
          %s975 = scalar_lea.vmem %s14, %s974
        $region84: #{transformer_decoder_forward.1} parent=23 // pred_fallthru
          _
        // Predicated region
        $region85: #{transformer_decoder_forward.1} parent=23 // pred_check
          %p976 = pneg %p482
        $region86: #{transformer_decoder_forward.1} parent=23 // pred_check_branch
          %978 = sbr.rel (%p976) target = $region88
        $region87: #{transformer_decoder_forward.1} parent=23 // pred_region
          %s979 = sand.u32 %s60, 1
          %s980 = scalar_lea.sflag [#allocation17], %s979
          %s981 = sand.u32 %s472, 1
          %s982 = scalar_lea.vmem [#allocation16], %s981
          %s984 = ssub.s32 16, 16
          %985 = vsyncadd %s980, %s984
          %s986 = smul.addr %s68, 16
          %s987 = scalar_lea.hbm %s15, %s986
          %s989 = sshll.u32 %s982, 4
          %s990 = int_to_ptr.vmem [resolvable:$true] %s989
          %992 = dma.hbm_to_vmem [thread:$0]  %s987, 16, %s990, %s980
        $region88: #{transformer_decoder_forward.1} parent=23 // pred_fallthru
          _
        // Predicated region
        $region89: #{transformer_decoder_forward.1} parent=23 // pred_check
          %p993 = pneg %p508
        $region90: #{transformer_decoder_forward.1} parent=23 // pred_check_branch
          %995 = sbr.rel (%p993) target = $region92
        $region91: #{transformer_decoder_forward.1} parent=23 // pred_region
          %s996 = sand.u32 %s60, 1
          %s997 = scalar_lea.sflag [#allocation17], %s996
          %s998 = sand.u32 %s498, 1
          %s999 = smul.addr %s998, 16
          %s1000 = scalar_lea.vmem [#allocation18], %s999
          %s1002 = ssub.s32 256, 256
          %1003 = vsyncadd %s997, %s1002
          %s1004 = smul.addr %s68, 4
          %s1005 = smul.addr %s1004, 64
          %s1006 = scalar_lea.hbm %s16, %s1005
          %s1007 = sshll.u32 %s1000, 4
          %s1008 = int_to_ptr.vmem [resolvable:$true] %s1007
          %1013 = dma.hbm_to_vmem [thread:$0]  %s1006, 256, %s1008, %s997, 64, 64, 4
        $region92: #{transformer_decoder_forward.1} parent=23 // pred_fallthru
          _
        // Predicated region
        $region93: #{transformer_decoder_forward.1} parent=23 // pred_check
          %p1014 = pneg %p534
        $region94: #{transformer_decoder_forward.1} parent=23 // pred_check_branch
          %1016 = sbr.rel (%p1014) target = $region96
        $region95: #{transformer_decoder_forward.1} parent=23 // pred_region
          %s1017 = sand.u32 %s60, 1
          %s1018 = scalar_lea.sflag [#allocation20], %s1017
          %s1019 = sand.u32 %s524, 1
          %s1020 = scalar_lea.vmem [#allocation19], %s1019
          %s1022 = ssub.s32 16, 16
          %1023 = vsyncadd %s1018, %s1022
          %s1024 = smul.addr %s68, 16
          %s1025 = scalar_lea.hbm %s17, %s1024
          %s1027 = sshll.u32 %s1020, 4
          %s1028 = int_to_ptr.vmem [resolvable:$true] %s1027
          %1030 = dma.hbm_to_vmem [thread:$0]  %s1025, 16, %s1028, %s1018
        $region96: #{transformer_decoder_forward.1} parent=23 // pred_fallthru
          _
        // Predicated region
        $region97: #{transformer_decoder_forward.1} parent=23 // pred_check
          %p1031 = pneg %p560
        $region98: #{transformer_decoder_forward.1} parent=23 // pred_check_branch
          %1033 = sbr.rel (%p1031) target = $region100
        $region99: #{transformer_decoder_forward.1} parent=23 // pred_region
          %s1034 = sand.u32 %s60, 1
          %s1035 = scalar_lea.sflag [#allocation20], %s1034
          %s1036 = sand.u32 %s550, 1
          %s1037 = scalar_lea.vmem [#allocation21], %s1036
          %s1039 = ssub.s32 16, 16
          %1040 = vsyncadd %s1035, %s1039
          %s1041 = smul.addr %s68, 16
          %s1042 = scalar_lea.hbm %s18, %s1041
          %s1044 = sshll.u32 %s1037, 4
          %s1045 = int_to_ptr.vmem [resolvable:$true] %s1044
          %1047 = dma.hbm_to_vmem [thread:$0]  %s1042, 16, %s1045, %s1035
        $region100: #{transformer_decoder_forward.1} parent=23 // pred_fallthru
          _
        // Predicated region
        $region101: #{transformer_decoder_forward.1} parent=23 // pred_check
          %p1048 = pneg %p586
        $region102: #{transformer_decoder_forward.1} parent=23 // pred_check_branch
          %1050 = sbr.rel (%p1048) target = $region104
        $region103: #{transformer_decoder_forward.1} parent=23 // pred_region
          %s1051 = sand.u32 %s60, 1
          %s1052 = scalar_lea.sflag [#allocation23], %s1051
          %s1053 = sand.u32 %s576, 1
          %s1054 = scalar_lea.vmem [#allocation22], %s1053
          %s1056 = ssub.s32 16, 16
          %1057 = vsyncadd %s1052, %s1056
          %s1058 = smul.addr %s68, 16
          %s1059 = scalar_lea.hbm %s19, %s1058
          %s1061 = sshll.u32 %s1054, 4
          %s1062 = int_to_ptr.vmem [resolvable:$true] %s1061
          %1064 = dma.hbm_to_vmem [thread:$0]  %s1059, 16, %s1062, %s1052
        $region104: #{transformer_decoder_forward.1} parent=23 // pred_fallthru
          _
        // Predicated region
        $region105: #{transformer_decoder_forward.1} parent=23 // pred_check
          %p1065 = pneg %p612
        $region106: #{transformer_decoder_forward.1} parent=23 // pred_check_branch
          %1067 = sbr.rel (%p1065) target = $region108
        $region107: #{transformer_decoder_forward.1} parent=23 // pred_region
          %s1068 = sand.u32 %s60, 1
          %s1069 = scalar_lea.sflag [#allocation23], %s1068
          %s1070 = sand.u32 %s602, 1
          %s1071 = smul.addr %s1070, 16
          %s1072 = scalar_lea.vmem [#allocation24], %s1071
          %s1074 = ssub.s32 256, 256
          %1075 = vsyncadd %s1069, %s1074
          %s1076 = smul.addr %s68, 4
          %s1077 = smul.addr %s1076, 64
          %s1078 = scalar_lea.hbm %s20, %s1077
          %s1079 = sshll.u32 %s1072, 4
          %s1080 = int_to_ptr.vmem [resolvable:$true] %s1079
          %1085 = dma.hbm_to_vmem [thread:$0]  %s1078, 256, %s1080, %s1069, 64, 64, 4
        $region108: #{transformer_decoder_forward.1} parent=23 // pred_fallthru
          _
        // Predicated region
        $region109: #{transformer_decoder_forward.1} parent=23 // pred_check
          %p1086 = pneg %p638
        $region110: #{transformer_decoder_forward.1} parent=23 // pred_check_branch
          %1088 = sbr.rel (%p1086) target = $region112
        $region111: #{transformer_decoder_forward.1} parent=23 // pred_region
          %s1089 = sand.u32 %s60, 1
          %s1090 = scalar_lea.sflag [#allocation26], %s1089
          %s1091 = sand.u32 %s628, 1
          %s1092 = scalar_lea.vmem [#allocation25], %s1091
          %s1094 = ssub.s32 16, 16
          %1095 = vsyncadd %s1090, %s1094
          %s1096 = smul.addr %s68, 16
          %s1097 = scalar_lea.hbm %s21, %s1096
          %s1099 = sshll.u32 %s1092, 4
          %s1100 = int_to_ptr.vmem [resolvable:$true] %s1099
          %1102 = dma.hbm_to_vmem [thread:$0]  %s1097, 16, %s1100, %s1090
        $region112: #{transformer_decoder_forward.1} parent=23 // pred_fallthru
          _
        // Predicated region
        $region113: #{transformer_decoder_forward.1} parent=23 // pred_check
          %p1103 = pneg %p664
        $region114: #{transformer_decoder_forward.1} parent=23 // pred_check_branch
          %1105 = sbr.rel (%p1103) target = $region116
        $region115: #{transformer_decoder_forward.1} parent=23 // pred_region
          %p1106 = scmp.lt.s32.totalorder %s68, 1
          %s1107 = scalar_select %p1106, %s68, 1
          %s1108 = smul.addr %s1107, 8
          %s1109 = smul.addr %s1108, 4
          %s1110 = scalar_lea.vmem %s22, %s1109
        $region116: #{transformer_decoder_forward.1} parent=23 // pred_fallthru
          _
        // Predicated region
        $region117: #{transformer_decoder_forward.1} parent=23 // pred_check
          %p1111 = pneg %p690
        $region118: #{transformer_decoder_forward.1} parent=23 // pred_check_branch
          %1113 = sbr.rel (%p1111) target = $region120
        $region119: #{transformer_decoder_forward.1} parent=23 // pred_region
          %s1114 = sand.u32 %s60, 1
          %s1115 = scalar_lea.sflag [#allocation26], %s1114
          %s1116 = sand.u32 %s680, 1
          %s1117 = scalar_lea.vmem [#allocation27], %s1116
          %s1119 = ssub.s32 16, 16
          %1120 = vsyncadd %s1115, %s1119
          %s1121 = smul.addr %s68, 16
          %s1122 = scalar_lea.hbm %s23, %s1121
          %s1124 = sshll.u32 %s1117, 4
          %s1125 = int_to_ptr.vmem [resolvable:$true] %s1124
          %1127 = dma.hbm_to_vmem [thread:$0]  %s1122, 16, %s1125, %s1115
        $region120: #{transformer_decoder_forward.1} parent=23 // pred_fallthru
          _
      $region24: #{transformer_decoder_forward.1} parent=5 // pred_fallthru
        _
      %p1128 = scmp.le.s32.totalorder 1, %s60
      %p1129 = scmp.lt.s32.totalorder %s60, 5
      %p1130 = pnand %p1128, %p1129
      %p1131 = pneg %p1130
      // Predicated region
      $region121: #{transformer_decoder_forward.1} parent=5 // pred_check
        _
      $region122: #{transformer_decoder_forward.1} parent=5 // pred_check_branch
        %1133 = sbr.rel (%p1130) target = $region124
      $region123: #{transformer_decoder_forward.1} parent=5 // pred_region
        %s1134 = ssub.s32 %s60, 1
        %s1135 = sand.u32 %s85, 1
        %s1136 = scalar_lea.sflag [#allocation5], %s1135
        %s1137 = sand.u32 %s85, 1
        %s1138 = smul.addr %s1137, 8
        %s1139 = scalar_lea.vmem [#allocation4], %s1138
        // Predicated region
        $region125: #{transformer_decoder_forward.1} parent=123 // pred_check
          %p1140 = pneg %p98
        $region126: #{transformer_decoder_forward.1} parent=123 // pred_check_branch
          %1142 = sbr.rel (%p1140) target = $region128
        $region127: #{transformer_decoder_forward.1} parent=123 // pred_region
          %1143 = dma.done %s1136, 128
        $region128: #{transformer_decoder_forward.1} parent=123 // pred_fallthru
          _
        %s1144 = sand.u32 %s65, 1
        %s1145 = scalar_lea.sflag [#allocation8], %s1144
        %s1146 = sand.u32 %s111, 1
        %s1147 = smul.addr %s1146, 8
        %s1148 = scalar_lea.vmem [#allocation7], %s1147
        // Predicated region
        $region129: #{transformer_decoder_forward.1} parent=123 // pred_check
          %p1149 = pneg %p124
        $region130: #{transformer_decoder_forward.1} parent=123 // pred_check_branch
          %1151 = sbr.rel (%p1149) target = $region132
        $region131: #{transformer_decoder_forward.1} parent=123 // pred_region
          %1152 = dma.done %s1145, 128
        $region132: #{transformer_decoder_forward.1} parent=123 // pred_fallthru
          _
        %s1153 = sand.u32 %s65, 1
        %s1154 = scalar_lea.sflag [#allocation8], %s1153
        %s1155 = sand.u32 %s137, 1
        %s1156 = smul.addr %s1155, 8
        %s1157 = scalar_lea.vmem [#allocation9], %s1156
        // Predicated region
        $region133: #{transformer_decoder_forward.1} parent=123 // pred_check
          %p1158 = pneg %p150
        $region134: #{transformer_decoder_forward.1} parent=123 // pred_check_branch
          %1160 = sbr.rel (%p1158) target = $region136
        $region135: #{transformer_decoder_forward.1} parent=123 // pred_region
          %1161 = dma.done %s1154, 128
        $region136: #{transformer_decoder_forward.1} parent=123 // pred_fallthru
          _
        %s1162 = sand.u32 %s65, 1
        %s1163 = scalar_lea.sflag [#allocation11], %s1162
        %s1164 = sand.u32 %s163, 1
        %s1165 = smul.addr %s1164, 8
        %s1166 = scalar_lea.vmem [#allocation10], %s1165
        // Predicated region
        $region137: #{transformer_decoder_forward.1} parent=123 // pred_check
          %p1167 = pneg %p176
        $region138: #{transformer_decoder_forward.1} parent=123 // pred_check_branch
          %1169 = sbr.rel (%p1167) target = $region140
        $region139: #{transformer_decoder_forward.1} parent=123 // pred_region
          %1170 = dma.done %s1163, 128
        $region140: #{transformer_decoder_forward.1} parent=123 // pred_fallthru
          _
        %s1171 = sand.u32 %s65, 1
        %s1172 = scalar_lea.sflag [#allocation11], %s1171
        %s1173 = sand.u32 %s345, 1
        %s1174 = scalar_lea.vmem [#allocation12], %s1173
        // Predicated region
        $region141: #{transformer_decoder_forward.1} parent=123 // pred_check
          %p1175 = pneg %p358
        $region142: #{transformer_decoder_forward.1} parent=123 // pred_check_branch
          %1177 = sbr.rel (%p1175) target = $region144
        $region143: #{transformer_decoder_forward.1} parent=123 // pred_region
          %1178 = dma.done %s1172, 16
        $region144: #{transformer_decoder_forward.1} parent=123 // pred_fallthru
          _
        %s1179 = sand.u32 %s65, 1
        %s1180 = scalar_lea.sflag [#allocation14], %s1179
        %s1181 = sand.u32 %s371, 1
        %s1182 = scalar_lea.vmem [#allocation13], %s1181
        // Predicated region
        $region145: #{transformer_decoder_forward.1} parent=123 // pred_check
          %p1183 = pneg %p384
        $region146: #{transformer_decoder_forward.1} parent=123 // pred_check_branch
          %1185 = sbr.rel (%p1183) target = $region148
        $region147: #{transformer_decoder_forward.1} parent=123 // pred_region
          %1186 = dma.done %s1180, 16
        $region148: #{transformer_decoder_forward.1} parent=123 // pred_fallthru
          _
        %s1187 = sand.u32 %s65, 1
        %s1188 = scalar_lea.sflag [#allocation14], %s1187
        %s1189 = sand.u32 %s423, 1
        %s1190 = scalar_lea.vmem [#allocation15], %s1189
        // Predicated region
        $region149: #{transformer_decoder_forward.1} parent=123 // pred_check
          %p1191 = pneg %p436
        $region150: #{transformer_decoder_forward.1} parent=123 // pred_check_branch
          %1193 = sbr.rel (%p1191) target = $region152
        $region151: #{transformer_decoder_forward.1} parent=123 // pred_region
          %1194 = dma.done %s1188, 16
        $region152: #{transformer_decoder_forward.1} parent=123 // pred_fallthru
          _
        %s1195 = sand.u32 %s65, 1
        %s1196 = scalar_lea.sflag [#allocation17], %s1195
        %s1197 = sand.u32 %s475, 1
        %s1198 = scalar_lea.vmem [#allocation16], %s1197
        // Predicated region
        $region153: #{transformer_decoder_forward.1} parent=123 // pred_check
          %p1199 = pneg %p488
        $region154: #{transformer_decoder_forward.1} parent=123 // pred_check_branch
          %1201 = sbr.rel (%p1199) target = $region156
        $region155: #{transformer_decoder_forward.1} parent=123 // pred_region
          %1202 = dma.done %s1196, 16
        $region156: #{transformer_decoder_forward.1} parent=123 // pred_fallthru
          _
        %s1203 = sand.u32 %s65, 1
        %s1204 = scalar_lea.sflag [#allocation17], %s1203
        %s1205 = sand.u32 %s501, 1
        %s1206 = smul.addr %s1205, 16
        %s1207 = scalar_lea.vmem [#allocation18], %s1206
        // Predicated region
        $region157: #{transformer_decoder_forward.1} parent=123 // pred_check
          %p1208 = pneg %p514
        $region158: #{transformer_decoder_forward.1} parent=123 // pred_check_branch
          %1210 = sbr.rel (%p1208) target = $region160
        $region159: #{transformer_decoder_forward.1} parent=123 // pred_region
          %1211 = dma.done %s1204, 256
        $region160: #{transformer_decoder_forward.1} parent=123 // pred_fallthru
          _
        %s1212 = sand.u32 %s65, 1
        %s1213 = scalar_lea.sflag [#allocation20], %s1212
        %s1214 = sand.u32 %s527, 1
        %s1215 = scalar_lea.vmem [#allocation19], %s1214
        // Predicated region
        $region161: #{transformer_decoder_forward.1} parent=123 // pred_check
          %p1216 = pneg %p540
        $region162: #{transformer_decoder_forward.1} parent=123 // pred_check_branch
          %1218 = sbr.rel (%p1216) target = $region164
        $region163: #{transformer_decoder_forward.1} parent=123 // pred_region
          %1219 = dma.done %s1213, 16
        $region164: #{transformer_decoder_forward.1} parent=123 // pred_fallthru
          _
        %s1220 = sand.u32 %s65, 1
        %s1221 = scalar_lea.sflag [#allocation20], %s1220
        %s1222 = sand.u32 %s553, 1
        %s1223 = scalar_lea.vmem [#allocation21], %s1222
        // Predicated region
        $region165: #{transformer_decoder_forward.1} parent=123 // pred_check
          %p1224 = pneg %p566
        $region166: #{transformer_decoder_forward.1} parent=123 // pred_check_branch
          %1226 = sbr.rel (%p1224) target = $region168
        $region167: #{transformer_decoder_forward.1} parent=123 // pred_region
          %1227 = dma.done %s1221, 16
        $region168: #{transformer_decoder_forward.1} parent=123 // pred_fallthru
          _
        %s1228 = sand.u32 %s65, 1
        %s1229 = scalar_lea.sflag [#allocation23], %s1228
        %s1230 = sand.u32 %s579, 1
        %s1231 = scalar_lea.vmem [#allocation22], %s1230
        // Predicated region
        $region169: #{transformer_decoder_forward.1} parent=123 // pred_check
          %p1232 = pneg %p592
        $region170: #{transformer_decoder_forward.1} parent=123 // pred_check_branch
          %1234 = sbr.rel (%p1232) target = $region172
        $region171: #{transformer_decoder_forward.1} parent=123 // pred_region
          %1235 = dma.done %s1229, 16
        $region172: #{transformer_decoder_forward.1} parent=123 // pred_fallthru
          _
        %s1236 = sand.u32 %s65, 1
        %s1237 = scalar_lea.sflag [#allocation23], %s1236
        %s1238 = sand.u32 %s605, 1
        %s1239 = smul.addr %s1238, 16
        %s1240 = scalar_lea.vmem [#allocation24], %s1239
        // Predicated region
        $region173: #{transformer_decoder_forward.1} parent=123 // pred_check
          %p1241 = pneg %p618
        $region174: #{transformer_decoder_forward.1} parent=123 // pred_check_branch
          %1243 = sbr.rel (%p1241) target = $region176
        $region175: #{transformer_decoder_forward.1} parent=123 // pred_region
          %1244 = dma.done %s1237, 256
        $region176: #{transformer_decoder_forward.1} parent=123 // pred_fallthru
          _
        %s1245 = sand.u32 %s65, 1
        %s1246 = scalar_lea.sflag [#allocation26], %s1245
        %s1247 = sand.u32 %s631, 1
        %s1248 = scalar_lea.vmem [#allocation25], %s1247
        // Predicated region
        $region177: #{transformer_decoder_forward.1} parent=123 // pred_check
          %p1249 = pneg %p644
        $region178: #{transformer_decoder_forward.1} parent=123 // pred_check_branch
          %1251 = sbr.rel (%p1249) target = $region180
        $region179: #{transformer_decoder_forward.1} parent=123 // pred_region
          %1252 = dma.done %s1246, 16
        $region180: #{transformer_decoder_forward.1} parent=123 // pred_fallthru
          _
        %s1253 = sand.u32 %s65, 1
        %s1254 = scalar_lea.sflag [#allocation26], %s1253
        %s1255 = sand.u32 %s683, 1
        %s1256 = scalar_lea.vmem [#allocation27], %s1255
        // Predicated region
        $region181: #{transformer_decoder_forward.1} parent=123 // pred_check
          %p1257 = pneg %p696
        $region182: #{transformer_decoder_forward.1} parent=123 // pred_check_branch
          %1259 = sbr.rel (%p1257) target = $region184
        $region183: #{transformer_decoder_forward.1} parent=123 // pred_region
          %1260 = dma.done %s1254, 16
        $region184: #{transformer_decoder_forward.1} parent=123 // pred_fallthru
          _
        // Predicated region
        $region185: #{transformer_decoder_forward.1} parent=123 // pred_check
          %p1261 = pneg %p717
        $region186: #{transformer_decoder_forward.1} parent=123 // pred_check_branch
          %1263 = sbr.rel (%p1261) target = $region188
        $region187: #{transformer_decoder_forward.1} parent=123 // pred_region
          %1264 = dma.done [#allocation29], 16
        $region188: #{transformer_decoder_forward.1} parent=123 // pred_fallthru
          _
        %s1265 = sand.u32 %s85, 1
        %s1266 = scalar_lea.sflag [#allocation5], %s1265
        %s1267 = sand.u32 %s85, 1
        %s1268 = smul.addr %s1267, 8
        %s1269 = scalar_lea.vmem [#allocation4], %s1268
        %p1270 = pneg %p98
        %p1271 = pneg %p95
        %s1272 = sand.u32 %s65, 1
        %s1273 = scalar_lea.sflag [#allocation8], %s1272
        %s1274 = sand.u32 %s111, 1
        %s1275 = smul.addr %s1274, 8
        %s1276 = scalar_lea.vmem [#allocation7], %s1275
        %p1277 = pneg %p124
        %p1278 = pneg %p121
        %s1279 = sand.u32 %s65, 1
        %s1280 = scalar_lea.sflag [#allocation8], %s1279
        %s1281 = sand.u32 %s137, 1
        %s1282 = smul.addr %s1281, 8
        %s1283 = scalar_lea.vmem [#allocation9], %s1282
        %p1284 = pneg %p150
        %p1285 = pneg %p147
        %s1286 = sand.u32 %s65, 1
        %s1287 = scalar_lea.sflag [#allocation11], %s1286
        %s1288 = sand.u32 %s163, 1
        %s1289 = smul.addr %s1288, 8
        %s1290 = scalar_lea.vmem [#allocation10], %s1289
        %p1291 = pneg %p176
        %p1292 = pneg %p173
        %p1293 = scmp.lt.s32.totalorder %s70, 1
        %s1294 = scalar_select %p1293, %s70, 1
        %s1295 = scalar_lea.vmem %s4, %s1294
        %p1296 = pneg %p202
        %p1297 = pneg %p199
        %p1298 = scmp.lt.s32.totalorder %s70, 1
        %s1299 = scalar_select %p1298, %s70, 1
        %s1300 = scalar_lea.vmem %s5, %s1299
        %p1301 = pneg %p228
        %p1302 = pneg %p225
        %p1303 = scmp.lt.s32.totalorder %s70, 1
        %s1304 = scalar_select %p1303, %s70, 1
        %s1305 = smul.addr %s1304, 4
        %s1306 = smul.addr %s1305, 4
        %s1307 = scalar_lea.vmem %s6, %s1306
        %p1308 = pneg %p254
        %p1309 = pneg %p251
        %p1310 = scmp.lt.s32.totalorder %s70, 1
        %s1311 = scalar_select %p1310, %s70, 1
        %s1312 = scalar_lea.vmem %s7, %s1311
        %p1313 = pneg %p280
        %p1314 = pneg %p277
        %p1315 = scmp.lt.s32.totalorder %s70, 1
        %s1316 = scalar_select %p1315, %s70, 1
        %s1317 = smul.addr %s1316, 4
        %s1318 = smul.addr %s1317, 4
        %s1319 = scalar_lea.vmem %s8, %s1318
        %p1320 = pneg %p306
        %p1321 = pneg %p303
        %p1322 = scmp.lt.s32.totalorder %s70, 1
        %s1323 = scalar_select %p1322, %s70, 1
        %s1324 = scalar_lea.vmem %s9, %s1323
        %p1325 = pneg %p332
        %p1326 = pneg %p329
        %s1327 = sand.u32 %s65, 1
        %s1328 = scalar_lea.sflag [#allocation11], %s1327
        %s1329 = sand.u32 %s345, 1
        %s1330 = scalar_lea.vmem [#allocation12], %s1329
        %p1331 = pneg %p358
        %p1332 = pneg %p355
        %s1333 = sand.u32 %s65, 1
        %s1334 = scalar_lea.sflag [#allocation14], %s1333
        %s1335 = sand.u32 %s371, 1
        %s1336 = scalar_lea.vmem [#allocation13], %s1335
        %p1337 = pneg %p384
        %p1338 = pneg %p381
        %p1339 = scmp.lt.s32.totalorder %s70, 1
        %s1340 = scalar_select %p1339, %s70, 1
        %s1341 = smul.addr %s1340, 4
        %s1342 = smul.addr %s1341, 4
        %s1343 = scalar_lea.vmem %s12, %s1342
        %p1344 = pneg %p410
        %p1345 = pneg %p407
        %s1346 = sand.u32 %s65, 1
        %s1347 = scalar_lea.sflag [#allocation14], %s1346
        %s1348 = sand.u32 %s423, 1
        %s1349 = scalar_lea.vmem [#allocation15], %s1348
        %p1350 = pneg %p436
        %p1351 = pneg %p433
        %p1352 = scmp.lt.s32.totalorder %s70, 1
        %s1353 = scalar_select %p1352, %s70, 1
        %s1354 = smul.addr %s1353, 4
        %s1355 = smul.addr %s1354, 4
        %s1356 = scalar_lea.vmem %s14, %s1355
        %p1357 = pneg %p462
        %p1358 = pneg %p459
        %s1359 = sand.u32 %s65, 1
        %s1360 = scalar_lea.sflag [#allocation17], %s1359
        %s1361 = sand.u32 %s475, 1
        %s1362 = scalar_lea.vmem [#allocation16], %s1361
        %p1363 = pneg %p488
        %p1364 = pneg %p485
        %s1365 = sand.u32 %s65, 1
        %s1366 = scalar_lea.sflag [#allocation17], %s1365
        %s1367 = sand.u32 %s501, 1
        %s1368 = smul.addr %s1367, 16
        %s1369 = scalar_lea.vmem [#allocation18], %s1368
        %p1370 = pneg %p514
        %p1371 = pneg %p511
        %s1372 = sand.u32 %s65, 1
        %s1373 = scalar_lea.sflag [#allocation20], %s1372
        %s1374 = sand.u32 %s527, 1
        %s1375 = scalar_lea.vmem [#allocation19], %s1374
        %p1376 = pneg %p540
        %p1377 = pneg %p537
        %s1378 = sand.u32 %s65, 1
        %s1379 = scalar_lea.sflag [#allocation20], %s1378
        %s1380 = sand.u32 %s553, 1
        %s1381 = scalar_lea.vmem [#allocation21], %s1380
        %p1382 = pneg %p566
        %p1383 = pneg %p563
        %s1384 = sand.u32 %s65, 1
        %s1385 = scalar_lea.sflag [#allocation23], %s1384
        %s1386 = sand.u32 %s579, 1
        %s1387 = scalar_lea.vmem [#allocation22], %s1386
        %p1388 = pneg %p592
        %p1389 = pneg %p589
        %s1390 = sand.u32 %s65, 1
        %s1391 = scalar_lea.sflag [#allocation23], %s1390
        %s1392 = sand.u32 %s605, 1
        %s1393 = smul.addr %s1392, 16
        %s1394 = scalar_lea.vmem [#allocation24], %s1393
        %p1395 = pneg %p618
        %p1396 = pneg %p615
        %s1397 = sand.u32 %s65, 1
        %s1398 = scalar_lea.sflag [#allocation26], %s1397
        %s1399 = sand.u32 %s631, 1
        %s1400 = scalar_lea.vmem [#allocation25], %s1399
        %p1401 = pneg %p644
        %p1402 = pneg %p641
        %p1403 = scmp.lt.s32.totalorder %s70, 1
        %s1404 = scalar_select %p1403, %s70, 1
        %s1405 = smul.addr %s1404, 8
        %s1406 = smul.addr %s1405, 4
        %s1407 = scalar_lea.vmem %s22, %s1406
        %p1408 = pneg %p670
        %p1409 = pneg %p667
        %s1410 = sand.u32 %s65, 1
        %s1411 = scalar_lea.sflag [#allocation26], %s1410
        %s1412 = sand.u32 %s683, 1
        %s1413 = scalar_lea.vmem [#allocation27], %s1412
        %p1414 = pneg %p696
        %p1415 = pneg %p693
        %p1416 = pneg %p717
        %p1417 = pneg %p714
        %p1418 = pneg %p738
        %p1419 = pneg %p735
        %p1420 = pneg %p764
        %p1421 = pneg %p761
        %s1422 = sand.u32 %s751, 1
        %s1423 = scalar_lea.sflag [#allocation6], %s1422
        %s1424 = sand.u32 %s751, 1
        %s1425 = smul.addr %s1424, 8
        %s1426 = scalar_lea.vmem [#allocation30], %s1425
        %p1427 = scmp.lt.s32.totalorder %s70, 1
        %s1428 = scalar_select %p1427, %s70, 1
        %s1429 = scalar_lea.vmem %s4, %s1428
        %p1430 = scmp.lt.s32.totalorder %s70, 1
        %s1431 = scalar_select %p1430, %s70, 1
        %s1432 = scalar_lea.vmem %s5, %s1431
        %p1433 = scmp.lt.s32.totalorder %s70, 1
        %s1434 = scalar_select %p1433, %s70, 1
        %s1435 = smul.addr %s1434, 4
        %s1436 = smul.addr %s1435, 4
        %s1437 = scalar_lea.vmem %s6, %s1436
        %p1438 = scmp.lt.s32.totalorder %s70, 1
        %s1439 = scalar_select %p1438, %s70, 1
        %s1440 = scalar_lea.vmem %s7, %s1439
        %p1441 = scmp.lt.s32.totalorder %s70, 1
        %s1442 = scalar_select %p1441, %s70, 1
        %s1443 = smul.addr %s1442, 4
        %s1444 = smul.addr %s1443, 4
        %s1445 = scalar_lea.vmem %s8, %s1444
        %p1446 = scmp.lt.s32.totalorder %s70, 1
        %s1447 = scalar_select %p1446, %s70, 1
        %s1448 = scalar_lea.vmem %s9, %s1447
        %p1449 = scmp.lt.s32.totalorder %s70, 1
        %s1450 = scalar_select %p1449, %s70, 1
        %s1451 = smul.addr %s1450, 4
        %s1452 = smul.addr %s1451, 4
        %s1453 = scalar_lea.vmem %s12, %s1452
        %p1454 = scmp.lt.s32.totalorder %s70, 1
        %s1455 = scalar_select %p1454, %s70, 1
        %s1456 = smul.addr %s1455, 4
        %s1457 = smul.addr %s1456, 4
        %s1458 = scalar_lea.vmem %s14, %s1457
        %p1459 = scmp.lt.s32.totalorder %s70, 1
        %s1460 = scalar_select %p1459, %s70, 1
        %s1461 = smul.addr %s1460, 8
        %s1462 = smul.addr %s1461, 4
        %s1463 = scalar_lea.vmem %s22, %s1462
        %p1465 = scmp.eq.s32.totalorder %s70, 0
        // Predicated region
        $region189: #{transformer_decoder_forward.1} parent=123 // pred_check
          %p1466 = pneg %p1465
        $region190: #{transformer_decoder_forward.1} parent=123 // pred_check_branch
          %1468 = sbr.rel (%p1466) target = $region192
        $region191: #{transformer_decoder_forward.1} parent=123 // pred_region
          %v1469 = vld [vmem:[%s1139] sm:$0xff]
          %vm1470 = vcmask 261120
          %1471 = vst.msk [vmem:[#allocation2] sm:$0xff] %vm1470, %v1469
        $region192: #{transformer_decoder_forward.1} parent=123 // pred_fallthru
          _
        %v1472 = vld [vmem:[#allocation2] sm:$0xff]
        %v1473 = vld [vmem:[%s1429] sm:$0x1]
        %v1474 = vld [vmem:[%s1432] sm:$0x1]
        %vm1475 = vcmask 261120
        %v1476 = vsel %vm1475, %v1472, 0.0
        %1477 = vadd.xlane.f32.xlu0 %v1476
        %v1478 = vpop.xlane.xlu0 %1477
        %v1479 = vrcp.pop 32.0
        %v1480 = vmul.f32 %v1478, %v1479
        %v1481 = vsub.f32 %v1472, %v1480
        %v1482 = vmul.f32 %v1481, %v1481
        %v1483 = vsel %vm1475, %v1482, 0.0
        %1484 = vadd.xlane.f32.xlu0 %v1483
        %v1485 = vpop.xlane.xlu0 %1484
        %v1486 = vmul.f32 %v1485, 0.032258064
        %v1487 = vrsqrt.pop %v1486
        %v1488 = vmul.f32 %v1486, %v1487
        %vm1489 = vcmp.eq.f32.partialorder %v1486, inf
        %v1490 = vsel %vm1489, %v1486, %v1488
        %vm1491 = vcmp.eq.f32.partialorder %v1486, 0.0
        %v1492 = vand.u32 %v1486, 2147483648
        %v1493 = vsel %vm1491, %v1492, %v1490
        %v1494 = vadd.f32 %v1493, 1e-06
        %v1495 = vrcp.pop %v1494
        %v1496 = vmul.f32 %v1481, %v1495
        %v1498 = vlaneseq
        %v1499 = vshrl.u32 %v1498, 7
        %v1500 = vsub.s32 0, %v1499
        %v1501 = vrot.slane %v1473, %v1500
        %v1503 = vmul.f32 %v1501, %v1496
        %v1505 = vlaneseq
        %v1506 = vshrl.u32 %v1505, 7
        %v1507 = vsub.s32 0, %v1506
        %v1508 = vrot.slane %v1474, %v1507
        %v1510 = vadd.f32 %v1503, %v1508
        %v1511 = vpack.c.bf16 %v1510, %v1510
        %v1512 = vld [vmem:[%s1437] sm:$0xf]
        %v1513 = vld [vmem:[%s1437 + $0x4] sm:$0xf]
        %v1514 = vld [vmem:[%s1437 + $0x8] sm:$0xf]
        %v1515 = vld [vmem:[%s1437 + $0xc] sm:$0xf]
        %v1516 = vld [vmem:[%s1440] sm:$0x1]
        %v1518 = vlaneseq
        %v1519 = vshrl.u32 %v1518, 7
        %v1520 = vsub.s32 0, %v1519
        %v1521 = vrot.slane %v1516, %v1520
        %v1527 = vunpack.c.l.b16 %v1512
        %v1528 = vunpack.c.l.b16 %v1513
        %v1529 = vunpack.c.l.b16 %v1514
        %v1530 = vunpack.c.l.b16 %v1515
        %v1531 = vpack.c.b16 %v1528, %v1527
        %v1532 = vpack.c.b16 %v1530, %v1529
        %v1536 = vsel %vm1475, %v1511, 0
        %1538 = vmatprep.subr.bf16.mxu0 0
        %1539 = vmatpush1.bf16.msra.mxu0 %v1531
        %1540 = vmatprep.subr.bf16.mxu0 0
        %1541 = vmatpush1.bf16.msra.mxu0 %v1532
        %1542 = vmatprep.subr.bf16.mxu0 0
        %1543 = vmatpush1.bf16.msra.mxu0 0
        %1544 = vmatprep.subr.bf16.mxu0 0
        %1545 = vmatpush1.bf16.msra.mxu0 0
        %1546 = vmatprep.subr.bf16.mxu0 0
        %1547 = vmatpush1.bf16.msra.mxu0 0
        %1548 = vmatprep.subr.bf16.mxu0 0
        %1549 = vmatpush1.bf16.msra.mxu0 0
        %1550 = vmatprep.subr.bf16.mxu0 0
        %1551 = vmatpush1.bf16.msra.mxu0 0
        %1552 = vmatprep.subr.bf16.mxu0 0
        %1553 = vmatpush1.bf16.msra.mxu0 0
        %1554 = vmatprep.subr.bf16.mxu0 0
        %1555 = vmatpush1.bf16.msra.mxu0 0
        %1556 = vmatprep.subr.bf16.mxu0 0
        %1557 = vmatpush1.bf16.msra.mxu0 0
        %1558 = vmatprep.subr.bf16.mxu0 0
        %1559 = vmatpush1.bf16.msra.mxu0 0
        %1560 = vmatprep.subr.bf16.mxu0 0
        %1561 = vmatpush1.bf16.msra.mxu0 0
        %1562 = vmatprep.subr.bf16.mxu0 0
        %1563 = vmatpush1.bf16.msra.mxu0 0
        %1564 = vmatprep.subr.bf16.mxu0 0
        %1565 = vmatpush1.bf16.msra.mxu0 0
        %1566 = vmatprep.subr.bf16.mxu0 0
        %1567 = vmatpush1.bf16.msra.mxu0 0
        %1568 = vmatprep.subr.bf16.mxu0 0
        %1569 = vmatpush1.bf16.msra.mxu0 0
        %1570 = vmatprep.mubr.bf16.mxu0 0
        %1571 = vmatmul.mubr.bf16.gmra.mrb[0].mxu0 %v1536
        %v1572 = vpop.f32.mrb[0].mxu0
        %v1573 = vadd.f32 %v1521, %v1572
        %v1574 = vpop.f32.mrb[0].mxu0
        %v1575 = vpop.f32.mrb[0].mxu0
        %v1576 = vpop.f32.mrb[0].mxu0
        %1577 = vdwg.mxu0
        %v1578 = vld [vmem:[%s1157] sm:$0xff]
        %vm1579 = vcmp.gt.f32.partialorder %v1578, 0.0
        %v1580 = vmul.f32 %v1573, 0.35355338
        %v1581 = vpack.c.bf16 %v1580, %v1580
        %v1582 = vpack.c.bf16 %v1573, %v1573
        %1584 = vrot.lane.b32.xlu0 %v1582, 96
        %v1585 = vpop.permute.xlu0 %1584
        %vm1586 = vcmask 64512
        %v1588 = vsel %vm1586, %v1581, 0
        %v1591 = vsel %vm1586, %v1585, 0
        %1593 = vmatprep.subr.bf16.mxu0 0
        %1594 = vmatpush1.bf16.xpose.msra.mxu0 %v1591
        %1595 = vmatprep.subr.bf16.mxu0 0
        %1596 = vmatpush1.bf16.xpose.msra.mxu0 0
        %1597 = vmatprep.subr.bf16.mxu0 0
        %1598 = vmatpush1.bf16.xpose.msra.mxu0 0
        %1599 = vmatprep.subr.bf16.mxu0 0
        %1600 = vmatpush1.bf16.xpose.msra.mxu0 0
        %1601 = vmatprep.subr.bf16.mxu0 0
        %1602 = vmatpush1.bf16.xpose.msra.mxu0 0
        %1603 = vmatprep.subr.bf16.mxu0 0
        %1604 = vmatpush1.bf16.xpose.msra.mxu0 0
        %1605 = vmatprep.subr.bf16.mxu0 0
        %1606 = vmatpush1.bf16.xpose.msra.mxu0 0
        %1607 = vmatprep.subr.bf16.mxu0 0
        %1608 = vmatpush1.bf16.xpose.msra.mxu0 0
        %1609 = vmatprep.subr.bf16.mxu0 0
        %1610 = vmatpush1.bf16.xpose.msra.mxu0 0
        %1611 = vmatprep.subr.bf16.mxu0 0
        %1612 = vmatpush1.bf16.xpose.msra.mxu0 0
        %1613 = vmatprep.subr.bf16.mxu0 0
        %1614 = vmatpush1.bf16.xpose.msra.mxu0 0
        %1615 = vmatprep.subr.bf16.mxu0 0
        %1616 = vmatpush1.bf16.xpose.msra.mxu0 0
        %1617 = vmatprep.subr.bf16.mxu0 0
        %1618 = vmatpush1.bf16.xpose.msra.mxu0 0
        %1619 = vmatprep.subr.bf16.mxu0 0
        %1620 = vmatpush1.bf16.xpose.msra.mxu0 0
        %1621 = vmatprep.subr.bf16.mxu0 0
        %1622 = vmatpush1.bf16.xpose.msra.mxu0 0
        %1623 = vmatprep.subr.bf16.mxu0 0
        %1624 = vmatpush1.bf16.xpose.msra.mxu0 0
        %1625 = vmatprep.mubr.bf16.mxu0 0
        %1626 = vmatmul.mubr.bf16.gmra.mrb[0].mxu0 %v1588
        %v1627 = vpop.f32.mrb[0].mxu0
        %v1628 = vadd.f32 0.0, %v1627
        %v1629 = vpop.f32.mrb[0].mxu0
        %v1630 = vpop.f32.mrb[0].mxu0
        %v1631 = vpop.f32.mrb[0].mxu0
        %1632 = vdwg.mxu0
        %v1633 = vsel %vm1579, %v1628, -1e+09
        %v1634 = vsel %vm1586, %v1633, -inf
        %1635 = vmax.xlane.f32.xlu0 %v1634
        %v1636 = vpop.xlane.xlu0 %1635
        %v1637 = vsub.f32 %v1633, %v1636
        %v1638 = vmul.f32 %v1637, 1.442695
        %v1639 = vpow.pop %v1638
        %v1640 = vsel %vm1586, %v1639, 0.0
        %1641 = vadd.xlane.f32.xlu0 %v1640
        %v1642 = vpop.xlane.xlu0 %1641
        %v1643 = vrcp.pop %v1642
        %v1644 = vmul.f32 %v1639, %v1643
        %v1645 = vpack.c.bf16 %v1644, %v1644
        %1646 = vrot.lane.b32.xlu0 %v1582, 64
        %v1647 = vpop.permute.xlu0 %1646
        %v1649 = vsel %vm1586, %v1645, 0
        %vm1651 = vcmask 1043456
        %v1653 = vsel %vm1651, %v1647, 0
        %1655 = vmatprep.subr.bf16.mxu0 0
        %1656 = vmatpush1.bf16.msra.mxu0 %v1653
        %1657 = vmatprep.subr.bf16.mxu0 0
        %1658 = vmatpush1.bf16.msra.mxu0 0
        %1659 = vmatprep.subr.bf16.mxu0 0
        %1660 = vmatpush1.bf16.msra.mxu0 0
        %1661 = vmatprep.subr.bf16.mxu0 0
        %1662 = vmatpush1.bf16.msra.mxu0 0
        %1663 = vmatprep.subr.bf16.mxu0 0
        %1664 = vmatpush1.bf16.msra.mxu0 0
        %1665 = vmatprep.subr.bf16.mxu0 0
        %1666 = vmatpush1.bf16.msra.mxu0 0
        %1667 = vmatprep.subr.bf16.mxu0 0
        %1668 = vmatpush1.bf16.msra.mxu0 0
        %1669 = vmatprep.subr.bf16.mxu0 0
        %1670 = vmatpush1.bf16.msra.mxu0 0
        %1671 = vmatprep.subr.bf16.mxu0 0
        %1672 = vmatpush1.bf16.msra.mxu0 0
        %1673 = vmatprep.subr.bf16.mxu0 0
        %1674 = vmatpush1.bf16.msra.mxu0 0
        %1675 = vmatprep.subr.bf16.mxu0 0
        %1676 = vmatpush1.bf16.msra.mxu0 0
        %1677 = vmatprep.subr.bf16.mxu0 0
        %1678 = vmatpush1.bf16.msra.mxu0 0
        %1679 = vmatprep.subr.bf16.mxu0 0
        %1680 = vmatpush1.bf16.msra.mxu0 0
        %1681 = vmatprep.subr.bf16.mxu0 0
        %1682 = vmatpush1.bf16.msra.mxu0 0
        %1683 = vmatprep.subr.bf16.mxu0 0
        %1684 = vmatpush1.bf16.msra.mxu0 0
        %1685 = vmatprep.subr.bf16.mxu0 0
        %1686 = vmatpush1.bf16.msra.mxu0 0
        %1687 = vmatprep.mubr.bf16.mxu0 0
        %1688 = vmatmul.mubr.bf16.gmra.mrb[0].mxu0 %v1649
        %v1689 = vpop.f32.mrb[0].mxu0
        %v1690 = vadd.f32 0.0, %v1689
        %v1691 = vpop.f32.mrb[0].mxu0
        %v1692 = vpop.f32.mrb[0].mxu0
        %v1693 = vpop.f32.mrb[0].mxu0
        %1694 = vdwg.mxu0
        %1695 = vst.msk [vmem:[#allocation3] sm:$0xff] %vm1586, %v1690
        %1697 = vrot.lane.b32.xlu0 %v1581, 120
        %v1698 = vpop.permute.xlu0 %1697
        %1699 = vrot.lane.b32.xlu0 %v1582, 88
        %v1700 = vpop.permute.xlu0 %1699
        %v1702 = vsel %vm1586, %v1698, 0
        %v1705 = vsel %vm1586, %v1700, 0
        %1707 = vmatprep.subr.bf16.mxu0 0
        %1708 = vmatpush1.bf16.xpose.msra.mxu0 %v1705
        %1709 = vmatprep.subr.bf16.mxu0 0
        %1710 = vmatpush1.bf16.xpose.msra.mxu0 0
        %1711 = vmatprep.subr.bf16.mxu0 0
        %1712 = vmatpush1.bf16.xpose.msra.mxu0 0
        %1713 = vmatprep.subr.bf16.mxu0 0
        %1714 = vmatpush1.bf16.xpose.msra.mxu0 0
        %1715 = vmatprep.subr.bf16.mxu0 0
        %1716 = vmatpush1.bf16.xpose.msra.mxu0 0
        %1717 = vmatprep.subr.bf16.mxu0 0
        %1718 = vmatpush1.bf16.xpose.msra.mxu0 0
        %1719 = vmatprep.subr.bf16.mxu0 0
        %1720 = vmatpush1.bf16.xpose.msra.mxu0 0
        %1721 = vmatprep.subr.bf16.mxu0 0
        %1722 = vmatpush1.bf16.xpose.msra.mxu0 0
        %1723 = vmatprep.subr.bf16.mxu0 0
        %1724 = vmatpush1.bf16.xpose.msra.mxu0 0
        %1725 = vmatprep.subr.bf16.mxu0 0
        %1726 = vmatpush1.bf16.xpose.msra.mxu0 0
        %1727 = vmatprep.subr.bf16.mxu0 0
        %1728 = vmatpush1.bf16.xpose.msra.mxu0 0
        %1729 = vmatprep.subr.bf16.mxu0 0
        %1730 = vmatpush1.bf16.xpose.msra.mxu0 0
        %1731 = vmatprep.subr.bf16.mxu0 0
        %1732 = vmatpush1.bf16.xpose.msra.mxu0 0
        %1733 = vmatprep.subr.bf16.mxu0 0
        %1734 = vmatpush1.bf16.xpose.msra.mxu0 0
        %1735 = vmatprep.subr.bf16.mxu0 0
        %1736 = vmatpush1.bf16.xpose.msra.mxu0 0
        %1737 = vmatprep.subr.bf16.mxu0 0
        %1738 = vmatpush1.bf16.xpose.msra.mxu0 0
        %1739 = vmatprep.mubr.bf16.mxu0 0
        %1740 = vmatmul.mubr.bf16.gmra.mrb[0].mxu0 %v1702
        %v1741 = vpop.f32.mrb[0].mxu0
        %v1742 = vadd.f32 0.0, %v1741
        %v1743 = vpop.f32.mrb[0].mxu0
        %v1744 = vpop.f32.mrb[0].mxu0
        %v1745 = vpop.f32.mrb[0].mxu0
        %1746 = vdwg.mxu0
        %v1747 = vsel %vm1579, %v1742, -1e+09
        %v1748 = vsel %vm1586, %v1747, -inf
        %1749 = vmax.xlane.f32.xlu0 %v1748
        %v1750 = vpop.xlane.xlu0 %1749
        %v1751 = vsub.f32 %v1747, %v1750
        %v1752 = vmul.f32 %v1751, 1.442695
        %v1753 = vpow.pop %v1752
        %v1754 = vsel %vm1586, %v1753, 0.0
        %1755 = vadd.xlane.f32.xlu0 %v1754
        %v1756 = vpop.xlane.xlu0 %1755
        %v1757 = vrcp.pop %v1756
        %v1758 = vmul.f32 %v1753, %v1757
        %v1759 = vpack.c.bf16 %v1758, %v1758
        %1760 = vrot.lane.b32.xlu0 %v1582, 56
        %v1761 = vpop.permute.xlu0 %1760
        %v1763 = vsel %vm1586, %v1759, 0
        %v1766 = vsel %vm1651, %v1761, 0
        %1768 = vmatprep.subr.bf16.mxu0 0
        %1769 = vmatpush1.bf16.msra.mxu0 %v1766
        %1770 = vmatprep.subr.bf16.mxu0 0
        %1771 = vmatpush1.bf16.msra.mxu0 0
        %1772 = vmatprep.subr.bf16.mxu0 0
        %1773 = vmatpush1.bf16.msra.mxu0 0
        %1774 = vmatprep.subr.bf16.mxu0 0
        %1775 = vmatpush1.bf16.msra.mxu0 0
        %1776 = vmatprep.subr.bf16.mxu0 0
        %1777 = vmatpush1.bf16.msra.mxu0 0
        %1778 = vmatprep.subr.bf16.mxu0 0
        %1779 = vmatpush1.bf16.msra.mxu0 0
        %1780 = vmatprep.subr.bf16.mxu0 0
        %1781 = vmatpush1.bf16.msra.mxu0 0
        %1782 = vmatprep.subr.bf16.mxu0 0
        %1783 = vmatpush1.bf16.msra.mxu0 0
        %1784 = vmatprep.subr.bf16.mxu0 0
        %1785 = vmatpush1.bf16.msra.mxu0 0
        %1786 = vmatprep.subr.bf16.mxu0 0
        %1787 = vmatpush1.bf16.msra.mxu0 0
        %1788 = vmatprep.subr.bf16.mxu0 0
        %1789 = vmatpush1.bf16.msra.mxu0 0
        %1790 = vmatprep.subr.bf16.mxu0 0
        %1791 = vmatpush1.bf16.msra.mxu0 0
        %1792 = vmatprep.subr.bf16.mxu0 0
        %1793 = vmatpush1.bf16.msra.mxu0 0
        %1794 = vmatprep.subr.bf16.mxu0 0
        %1795 = vmatpush1.bf16.msra.mxu0 0
        %1796 = vmatprep.subr.bf16.mxu0 0
        %1797 = vmatpush1.bf16.msra.mxu0 0
        %1798 = vmatprep.subr.bf16.mxu0 0
        %1799 = vmatpush1.bf16.msra.mxu0 0
        %1800 = vmatprep.mubr.bf16.mxu0 0
        %1801 = vmatmul.mubr.bf16.gmra.mrb[0].mxu0 %v1763
        %v1802 = vpop.f32.mrb[0].mxu0
        %v1803 = vadd.f32 0.0, %v1802
        %v1804 = vpop.f32.mrb[0].mxu0
        %v1805 = vpop.f32.mrb[0].mxu0
        %v1806 = vpop.f32.mrb[0].mxu0
        %1807 = vdwg.mxu0
        %1809 = vrot.lane.b32.xlu0 %v1803, 8
        %v1810 = vpop.permute.xlu0 %1809
        %vm1812 = vcmask 130112
        %1813 = vst.msk [vmem:[#allocation3] sm:$0xff] %vm1812, %v1810
        %1814 = vrot.lane.b32.xlu0 %v1581, 112
        %v1815 = vpop.permute.xlu0 %1814
        %1816 = vrot.lane.b32.xlu0 %v1582, 80
        %v1817 = vpop.permute.xlu0 %1816
        %v1819 = vsel %vm1586, %v1815, 0
        %v1822 = vsel %vm1586, %v1817, 0
        %1824 = vmatprep.subr.bf16.mxu0 0
        %1825 = vmatpush1.bf16.xpose.msra.mxu0 %v1822
        %1826 = vmatprep.subr.bf16.mxu0 0
        %1827 = vmatpush1.bf16.xpose.msra.mxu0 0
        %1828 = vmatprep.subr.bf16.mxu0 0
        %1829 = vmatpush1.bf16.xpose.msra.mxu0 0
        %1830 = vmatprep.subr.bf16.mxu0 0
        %1831 = vmatpush1.bf16.xpose.msra.mxu0 0
        %1832 = vmatprep.subr.bf16.mxu0 0
        %1833 = vmatpush1.bf16.xpose.msra.mxu0 0
        %1834 = vmatprep.subr.bf16.mxu0 0
        %1835 = vmatpush1.bf16.xpose.msra.mxu0 0
        %1836 = vmatprep.subr.bf16.mxu0 0
        %1837 = vmatpush1.bf16.xpose.msra.mxu0 0
        %1838 = vmatprep.subr.bf16.mxu0 0
        %1839 = vmatpush1.bf16.xpose.msra.mxu0 0
        %1840 = vmatprep.subr.bf16.mxu0 0
        %1841 = vmatpush1.bf16.xpose.msra.mxu0 0
        %1842 = vmatprep.subr.bf16.mxu0 0
        %1843 = vmatpush1.bf16.xpose.msra.mxu0 0
        %1844 = vmatprep.subr.bf16.mxu0 0
        %1845 = vmatpush1.bf16.xpose.msra.mxu0 0
        %1846 = vmatprep.subr.bf16.mxu0 0
        %1847 = vmatpush1.bf16.xpose.msra.mxu0 0
        %1848 = vmatprep.subr.bf16.mxu0 0
        %1849 = vmatpush1.bf16.xpose.msra.mxu0 0
        %1850 = vmatprep.subr.bf16.mxu0 0
        %1851 = vmatpush1.bf16.xpose.msra.mxu0 0
        %1852 = vmatprep.subr.bf16.mxu0 0
        %1853 = vmatpush1.bf16.xpose.msra.mxu0 0
        %1854 = vmatprep.subr.bf16.mxu0 0
        %1855 = vmatpush1.bf16.xpose.msra.mxu0 0
        %1856 = vmatprep.mubr.bf16.mxu0 0
        %1857 = vmatmul.mubr.bf16.gmra.mrb[0].mxu0 %v1819
        %v1858 = vpop.f32.mrb[0].mxu0
        %v1859 = vadd.f32 0.0, %v1858
        %v1860 = vpop.f32.mrb[0].mxu0
        %v1861 = vpop.f32.mrb[0].mxu0
        %v1862 = vpop.f32.mrb[0].mxu0
        %1863 = vdwg.mxu0
        %v1864 = vsel %vm1579, %v1859, -1e+09
        %v1865 = vsel %vm1586, %v1864, -inf
        %1866 = vmax.xlane.f32.xlu0 %v1865
        %v1867 = vpop.xlane.xlu0 %1866
        %v1868 = vsub.f32 %v1864, %v1867
        %v1869 = vmul.f32 %v1868, 1.442695
        %v1870 = vpow.pop %v1869
        %v1871 = vsel %vm1586, %v1870, 0.0
        %1872 = vadd.xlane.f32.xlu0 %v1871
        %v1873 = vpop.xlane.xlu0 %1872
        %v1874 = vrcp.pop %v1873
        %v1875 = vmul.f32 %v1870, %v1874
        %v1876 = vpack.c.bf16 %v1875, %v1875
        %1877 = vrot.lane.b32.xlu0 %v1582, 48
        %v1878 = vpop.permute.xlu0 %1877
        %v1880 = vsel %vm1586, %v1876, 0
        %v1883 = vsel %vm1651, %v1878, 0
        %1885 = vmatprep.subr.bf16.mxu0 0
        %1886 = vmatpush1.bf16.msra.mxu0 %v1883
        %1887 = vmatprep.subr.bf16.mxu0 0
        %1888 = vmatpush1.bf16.msra.mxu0 0
        %1889 = vmatprep.subr.bf16.mxu0 0
        %1890 = vmatpush1.bf16.msra.mxu0 0
        %1891 = vmatprep.subr.bf16.mxu0 0
        %1892 = vmatpush1.bf16.msra.mxu0 0
        %1893 = vmatprep.subr.bf16.mxu0 0
        %1894 = vmatpush1.bf16.msra.mxu0 0
        %1895 = vmatprep.subr.bf16.mxu0 0
        %1896 = vmatpush1.bf16.msra.mxu0 0
        %1897 = vmatprep.subr.bf16.mxu0 0
        %1898 = vmatpush1.bf16.msra.mxu0 0
        %1899 = vmatprep.subr.bf16.mxu0 0
        %1900 = vmatpush1.bf16.msra.mxu0 0
        %1901 = vmatprep.subr.bf16.mxu0 0
        %1902 = vmatpush1.bf16.msra.mxu0 0
        %1903 = vmatprep.subr.bf16.mxu0 0
        %1904 = vmatpush1.bf16.msra.mxu0 0
        %1905 = vmatprep.subr.bf16.mxu0 0
        %1906 = vmatpush1.bf16.msra.mxu0 0
        %1907 = vmatprep.subr.bf16.mxu0 0
        %1908 = vmatpush1.bf16.msra.mxu0 0
        %1909 = vmatprep.subr.bf16.mxu0 0
        %1910 = vmatpush1.bf16.msra.mxu0 0
        %1911 = vmatprep.subr.bf16.mxu0 0
        %1912 = vmatpush1.bf16.msra.mxu0 0
        %1913 = vmatprep.subr.bf16.mxu0 0
        %1914 = vmatpush1.bf16.msra.mxu0 0
        %1915 = vmatprep.subr.bf16.mxu0 0
        %1916 = vmatpush1.bf16.msra.mxu0 0
        %1917 = vmatprep.mubr.bf16.mxu0 0
        %1918 = vmatmul.mubr.bf16.gmra.mrb[0].mxu0 %v1880
        %v1919 = vpop.f32.mrb[0].mxu0
        %v1920 = vadd.f32 0.0, %v1919
        %v1921 = vpop.f32.mrb[0].mxu0
        %v1922 = vpop.f32.mrb[0].mxu0
        %v1923 = vpop.f32.mrb[0].mxu0
        %1924 = vdwg.mxu0
        %1926 = vrot.lane.b32.xlu0 %v1920, 16
        %v1927 = vpop.permute.xlu0 %1926
        %vm1929 = vcmask 195712
        %1930 = vst.msk [vmem:[#allocation3] sm:$0xff] %vm1929, %v1927
        %1931 = vrot.lane.b32.xlu0 %v1581, 104
        %v1932 = vpop.permute.xlu0 %1931
        %1933 = vrot.lane.b32.xlu0 %v1582, 72
        %v1934 = vpop.permute.xlu0 %1933
        %v1936 = vsel %vm1586, %v1932, 0
        %v1939 = vsel %vm1586, %v1934, 0
        %1941 = vmatprep.subr.bf16.mxu0 0
        %1942 = vmatpush1.bf16.xpose.msra.mxu0 %v1939
        %1943 = vmatprep.subr.bf16.mxu0 0
        %1944 = vmatpush1.bf16.xpose.msra.mxu0 0
        %1945 = vmatprep.subr.bf16.mxu0 0
        %1946 = vmatpush1.bf16.xpose.msra.mxu0 0
        %1947 = vmatprep.subr.bf16.mxu0 0
        %1948 = vmatpush1.bf16.xpose.msra.mxu0 0
        %1949 = vmatprep.subr.bf16.mxu0 0
        %1950 = vmatpush1.bf16.xpose.msra.mxu0 0
        %1951 = vmatprep.subr.bf16.mxu0 0
        %1952 = vmatpush1.bf16.xpose.msra.mxu0 0
        %1953 = vmatprep.subr.bf16.mxu0 0
        %1954 = vmatpush1.bf16.xpose.msra.mxu0 0
        %1955 = vmatprep.subr.bf16.mxu0 0
        %1956 = vmatpush1.bf16.xpose.msra.mxu0 0
        %1957 = vmatprep.subr.bf16.mxu0 0
        %1958 = vmatpush1.bf16.xpose.msra.mxu0 0
        %1959 = vmatprep.subr.bf16.mxu0 0
        %1960 = vmatpush1.bf16.xpose.msra.mxu0 0
        %1961 = vmatprep.subr.bf16.mxu0 0
        %1962 = vmatpush1.bf16.xpose.msra.mxu0 0
        %1963 = vmatprep.subr.bf16.mxu0 0
        %1964 = vmatpush1.bf16.xpose.msra.mxu0 0
        %1965 = vmatprep.subr.bf16.mxu0 0
        %1966 = vmatpush1.bf16.xpose.msra.mxu0 0
        %1967 = vmatprep.subr.bf16.mxu0 0
        %1968 = vmatpush1.bf16.xpose.msra.mxu0 0
        %1969 = vmatprep.subr.bf16.mxu0 0
        %1970 = vmatpush1.bf16.xpose.msra.mxu0 0
        %1971 = vmatprep.subr.bf16.mxu0 0
        %1972 = vmatpush1.bf16.xpose.msra.mxu0 0
        %1973 = vmatprep.mubr.bf16.mxu0 0
        %1974 = vmatmul.mubr.bf16.gmra.mrb[0].mxu0 %v1936
        %v1975 = vpop.f32.mrb[0].mxu0
        %v1976 = vadd.f32 0.0, %v1975
        %v1977 = vpop.f32.mrb[0].mxu0
        %v1978 = vpop.f32.mrb[0].mxu0
        %v1979 = vpop.f32.mrb[0].mxu0
        %1980 = vdwg.mxu0
        %v1981 = vsel %vm1579, %v1976, -1e+09
        %v1982 = vsel %vm1586, %v1981, -inf
        %1983 = vmax.xlane.f32.xlu0 %v1982
        %v1984 = vpop.xlane.xlu0 %1983
        %v1985 = vsub.f32 %v1981, %v1984
        %v1986 = vmul.f32 %v1985, 1.442695
        %v1987 = vpow.pop %v1986
        %v1988 = vsel %vm1586, %v1987, 0.0
        %1989 = vadd.xlane.f32.xlu0 %v1988
        %v1990 = vpop.xlane.xlu0 %1989
        %v1991 = vrcp.pop %v1990
        %v1992 = vmul.f32 %v1987, %v1991
        %v1993 = vpack.c.bf16 %v1992, %v1992
        %1994 = vrot.lane.b32.xlu0 %v1582, 40
        %v1995 = vpop.permute.xlu0 %1994
        %v1997 = vsel %vm1586, %v1993, 0
        %v2000 = vsel %vm1651, %v1995, 0
        %2002 = vmatprep.subr.bf16.mxu0 0
        %2003 = vmatpush1.bf16.msra.mxu0 %v2000
        %2004 = vmatprep.subr.bf16.mxu0 0
        %2005 = vmatpush1.bf16.msra.mxu0 0
        %2006 = vmatprep.subr.bf16.mxu0 0
        %2007 = vmatpush1.bf16.msra.mxu0 0
        %2008 = vmatprep.subr.bf16.mxu0 0
        %2009 = vmatpush1.bf16.msra.mxu0 0
        %2010 = vmatprep.subr.bf16.mxu0 0
        %2011 = vmatpush1.bf16.msra.mxu0 0
        %2012 = vmatprep.subr.bf16.mxu0 0
        %2013 = vmatpush1.bf16.msra.mxu0 0
        %2014 = vmatprep.subr.bf16.mxu0 0
        %2015 = vmatpush1.bf16.msra.mxu0 0
        %2016 = vmatprep.subr.bf16.mxu0 0
        %2017 = vmatpush1.bf16.msra.mxu0 0
        %2018 = vmatprep.subr.bf16.mxu0 0
        %2019 = vmatpush1.bf16.msra.mxu0 0
        %2020 = vmatprep.subr.bf16.mxu0 0
        %2021 = vmatpush1.bf16.msra.mxu0 0
        %2022 = vmatprep.subr.bf16.mxu0 0
        %2023 = vmatpush1.bf16.msra.mxu0 0
        %2024 = vmatprep.subr.bf16.mxu0 0
        %2025 = vmatpush1.bf16.msra.mxu0 0
        %2026 = vmatprep.subr.bf16.mxu0 0
        %2027 = vmatpush1.bf16.msra.mxu0 0
        %2028 = vmatprep.subr.bf16.mxu0 0
        %2029 = vmatpush1.bf16.msra.mxu0 0
        %2030 = vmatprep.subr.bf16.mxu0 0
        %2031 = vmatpush1.bf16.msra.mxu0 0
        %2032 = vmatprep.subr.bf16.mxu0 0
        %2033 = vmatpush1.bf16.msra.mxu0 0
        %2034 = vmatprep.mubr.bf16.mxu0 0
        %2035 = vmatmul.mubr.bf16.gmra.mrb[0].mxu0 %v1997
        %v2036 = vpop.f32.mrb[0].mxu0
        %v2037 = vadd.f32 0.0, %v2036
        %v2038 = vpop.f32.mrb[0].mxu0
        %v2039 = vpop.f32.mrb[0].mxu0
        %v2040 = vpop.f32.mrb[0].mxu0
        %2041 = vdwg.mxu0
        %2043 = vrot.lane.b32.xlu0 %v2037, 24
        %v2044 = vpop.permute.xlu0 %2043
        %vm2046 = vcmask 261312
        %2047 = vst.msk [vmem:[#allocation3] sm:$0xff] %vm2046, %v2044
        %v2048 = vld [vmem:[#allocation3] sm:$0xff]
        %v2049 = vpack.c.bf16 %v2048, %v2048
        %v2050 = vld [vmem:[%s1445] sm:$0xf]
        %v2051 = vld [vmem:[%s1445 + $0x4] sm:$0xf]
        %v2052 = vld [vmem:[%s1445 + $0x8] sm:$0xf]
        %v2053 = vld [vmem:[%s1445 + $0xc] sm:$0xf]
        %v2054 = vld [vmem:[%s1448] sm:$0x1]
        %v2056 = vlaneseq
        %v2057 = vshrl.u32 %v2056, 7
        %v2058 = vsub.s32 0, %v2057
        %v2059 = vrot.slane %v2054, %v2058
        %v2065 = vunpack.c.l.b16 %v2050
        %v2066 = vunpack.c.l.b16 %v2051
        %v2067 = vunpack.c.l.b16 %v2052
        %v2068 = vunpack.c.l.b16 %v2053
        %v2069 = vpack.c.b16 %v2066, %v2065
        %v2070 = vpack.c.b16 %v2068, %v2067
        %v2074 = vsel %vm1475, %v2049, 0
        %2076 = vmatprep.subr.bf16.mxu0 0
        %2077 = vmatpush1.bf16.msra.mxu0 %v2069
        %2078 = vmatprep.subr.bf16.mxu0 0
        %2079 = vmatpush1.bf16.msra.mxu0 %v2070
        %2080 = vmatprep.subr.bf16.mxu0 0
        %2081 = vmatpush1.bf16.msra.mxu0 0
        %2082 = vmatprep.subr.bf16.mxu0 0
        %2083 = vmatpush1.bf16.msra.mxu0 0
        %2084 = vmatprep.subr.bf16.mxu0 0
        %2085 = vmatpush1.bf16.msra.mxu0 0
        %2086 = vmatprep.subr.bf16.mxu0 0
        %2087 = vmatpush1.bf16.msra.mxu0 0
        %2088 = vmatprep.subr.bf16.mxu0 0
        %2089 = vmatpush1.bf16.msra.mxu0 0
        %2090 = vmatprep.subr.bf16.mxu0 0
        %2091 = vmatpush1.bf16.msra.mxu0 0
        %2092 = vmatprep.subr.bf16.mxu0 0
        %2093 = vmatpush1.bf16.msra.mxu0 0
        %2094 = vmatprep.subr.bf16.mxu0 0
        %2095 = vmatpush1.bf16.msra.mxu0 0
        %2096 = vmatprep.subr.bf16.mxu0 0
        %2097 = vmatpush1.bf16.msra.mxu0 0
        %2098 = vmatprep.subr.bf16.mxu0 0
        %2099 = vmatpush1.bf16.msra.mxu0 0
        %2100 = vmatprep.subr.bf16.mxu0 0
        %2101 = vmatpush1.bf16.msra.mxu0 0
        %2102 = vmatprep.subr.bf16.mxu0 0
        %2103 = vmatpush1.bf16.msra.mxu0 0
        %2104 = vmatprep.subr.bf16.mxu0 0
        %2105 = vmatpush1.bf16.msra.mxu0 0
        %2106 = vmatprep.subr.bf16.mxu0 0
        %2107 = vmatpush1.bf16.msra.mxu0 0
        %2108 = vmatprep.mubr.bf16.mxu0 0
        %2109 = vmatmul.mubr.bf16.gmra.mrb[0].mxu0 %v2074
        %v2110 = vpop.f32.mrb[0].mxu0
        %v2111 = vadd.f32 %v2059, %v2110
        %v2112 = vpop.f32.mrb[0].mxu0
        %v2113 = vpop.f32.mrb[0].mxu0
        %v2114 = vpop.f32.mrb[0].mxu0
        %2115 = vdwg.mxu0
        %v2116 = vadd.f32 %v1472, %v2111
        %v2117 = vld [vmem:[%s1148] sm:$0xff]
        %v2118 = vld [vmem:[%s1174] sm:$0x1]
        %v2119 = vld [vmem:[%s1182] sm:$0x1]
        %v2120 = vsel %vm1475, %v2116, 0.0
        %2121 = vadd.xlane.f32.xlu0 %v2120
        %v2122 = vpop.xlane.xlu0 %2121
        %v2123 = vmul.f32 %v2122, %v1479
        %v2124 = vsub.f32 %v2116, %v2123
        %v2125 = vmul.f32 %v2124, %v2124
        %v2126 = vsel %vm1475, %v2125, 0.0
        %2127 = vadd.xlane.f32.xlu0 %v2126
        %v2128 = vpop.xlane.xlu0 %2127
        %v2129 = vmul.f32 %v2128, 0.032258064
        %v2130 = vrsqrt.pop %v2129
        %v2131 = vmul.f32 %v2129, %v2130
        %vm2132 = vcmp.eq.f32.partialorder %v2129, inf
        %v2133 = vsel %vm2132, %v2129, %v2131
        %vm2134 = vcmp.eq.f32.partialorder %v2129, 0.0
        %v2135 = vand.u32 %v2129, 2147483648
        %v2136 = vsel %vm2134, %v2135, %v2133
        %v2137 = vadd.f32 %v2136, 1e-06
        %v2138 = vrcp.pop %v2137
        %v2139 = vmul.f32 %v2124, %v2138
        %v2141 = vlaneseq
        %v2142 = vshrl.u32 %v2141, 7
        %v2143 = vsub.s32 0, %v2142
        %v2144 = vrot.slane %v2118, %v2143
        %v2146 = vmul.f32 %v2144, %v2139
        %v2148 = vlaneseq
        %v2149 = vshrl.u32 %v2148, 7
        %v2150 = vsub.s32 0, %v2149
        %v2151 = vrot.slane %v2119, %v2150
        %v2153 = vadd.f32 %v2146, %v2151
        %v2154 = vpack.c.bf16 %v2153, %v2153
        %v2155 = vld [vmem:[%s1453] sm:$0xf]
        %v2156 = vld [vmem:[%s1453 + $0x4] sm:$0xf]
        %v2157 = vld [vmem:[%s1453 + $0x8] sm:$0xf]
        %v2158 = vld [vmem:[%s1453 + $0xc] sm:$0xf]
        %v2159 = vld [vmem:[%s1190] sm:$0x1]
        %v2161 = vlaneseq
        %v2162 = vshrl.u32 %v2161, 7
        %v2163 = vsub.s32 0, %v2162
        %v2164 = vrot.slane %v2159, %v2163
        %v2170 = vunpack.c.l.b16 %v2155
        %v2171 = vunpack.c.l.b16 %v2156
        %v2172 = vunpack.c.l.b16 %v2157
        %v2173 = vunpack.c.l.b16 %v2158
        %v2174 = vpack.c.b16 %v2171, %v2170
        %v2175 = vpack.c.b16 %v2173, %v2172
        %v2179 = vsel %vm1475, %v2154, 0
        %2181 = vmatprep.subr.bf16.mxu0 0
        %2182 = vmatpush1.bf16.msra.mxu0 %v2174
        %2183 = vmatprep.subr.bf16.mxu0 0
        %2184 = vmatpush1.bf16.msra.mxu0 %v2175
        %2185 = vmatprep.subr.bf16.mxu0 0
        %2186 = vmatpush1.bf16.msra.mxu0 0
        %2187 = vmatprep.subr.bf16.mxu0 0
        %2188 = vmatpush1.bf16.msra.mxu0 0
        %2189 = vmatprep.subr.bf16.mxu0 0
        %2190 = vmatpush1.bf16.msra.mxu0 0
        %2191 = vmatprep.subr.bf16.mxu0 0
        %2192 = vmatpush1.bf16.msra.mxu0 0
        %2193 = vmatprep.subr.bf16.mxu0 0
        %2194 = vmatpush1.bf16.msra.mxu0 0
        %2195 = vmatprep.subr.bf16.mxu0 0
        %2196 = vmatpush1.bf16.msra.mxu0 0
        %2197 = vmatprep.subr.bf16.mxu0 0
        %2198 = vmatpush1.bf16.msra.mxu0 0
        %2199 = vmatprep.subr.bf16.mxu0 0
        %2200 = vmatpush1.bf16.msra.mxu0 0
        %2201 = vmatprep.subr.bf16.mxu0 0
        %2202 = vmatpush1.bf16.msra.mxu0 0
        %2203 = vmatprep.subr.bf16.mxu0 0
        %2204 = vmatpush1.bf16.msra.mxu0 0
        %2205 = vmatprep.subr.bf16.mxu0 0
        %2206 = vmatpush1.bf16.msra.mxu0 0
        %2207 = vmatprep.subr.bf16.mxu0 0
        %2208 = vmatpush1.bf16.msra.mxu0 0
        %2209 = vmatprep.subr.bf16.mxu0 0
        %2210 = vmatpush1.bf16.msra.mxu0 0
        %2211 = vmatprep.subr.bf16.mxu0 0
        %2212 = vmatpush1.bf16.msra.mxu0 0
        %2213 = vmatprep.mubr.bf16.mxu0 0
        %2214 = vmatmul.mubr.bf16.gmra.mrb[0].mxu0 %v2179
        %v2215 = vpop.f32.mrb[0].mxu0
        %v2216 = vadd.f32 %v2164, %v2215
        %v2217 = vpop.f32.mrb[0].mxu0
        %v2218 = vpop.f32.mrb[0].mxu0
        %v2219 = vpop.f32.mrb[0].mxu0
        %2220 = vdwg.mxu0
        %v2221 = vpack.c.bf16 %v2117, %v2117
        %v2222 = vld [vmem:[%s1458] sm:$0xf]
        %v2223 = vld [vmem:[%s1458 + $0x4] sm:$0xf]
        %v2224 = vld [vmem:[%s1458 + $0x8] sm:$0xf]
        %v2225 = vld [vmem:[%s1458 + $0xc] sm:$0xf]
        %v2226 = vld [vmem:[%s1198] sm:$0x1]
        %v2228 = vlaneseq
        %v2229 = vshrl.u32 %v2228, 7
        %v2230 = vsub.s32 0, %v2229
        %v2231 = vrot.slane %v2226, %v2230
        %v2237 = vunpack.c.l.b16 %v2222
        %v2238 = vunpack.c.l.b16 %v2223
        %v2239 = vunpack.c.l.b16 %v2224
        %v2240 = vunpack.c.l.b16 %v2225
        %v2241 = vpack.c.b16 %v2238, %v2237
        %v2242 = vpack.c.b16 %v2240, %v2239
        %v2246 = vsel %vm1475, %v2221, 0
        %2248 = vmatprep.subr.bf16.mxu0 0
        %2249 = vmatpush1.bf16.msra.mxu0 %v2241
        %2250 = vmatprep.subr.bf16.mxu0 0
        %2251 = vmatpush1.bf16.msra.mxu0 %v2242
        %2252 = vmatprep.subr.bf16.mxu0 0
        %2253 = vmatpush1.bf16.msra.mxu0 0
        %2254 = vmatprep.subr.bf16.mxu0 0
        %2255 = vmatpush1.bf16.msra.mxu0 0
        %2256 = vmatprep.subr.bf16.mxu0 0
        %2257 = vmatpush1.bf16.msra.mxu0 0
        %2258 = vmatprep.subr.bf16.mxu0 0
        %2259 = vmatpush1.bf16.msra.mxu0 0
        %2260 = vmatprep.subr.bf16.mxu0 0
        %2261 = vmatpush1.bf16.msra.mxu0 0
        %2262 = vmatprep.subr.bf16.mxu0 0
        %2263 = vmatpush1.bf16.msra.mxu0 0
        %2264 = vmatprep.subr.bf16.mxu0 0
        %2265 = vmatpush1.bf16.msra.mxu0 0
        %2266 = vmatprep.subr.bf16.mxu0 0
        %2267 = vmatpush1.bf16.msra.mxu0 0
        %2268 = vmatprep.subr.bf16.mxu0 0
        %2269 = vmatpush1.bf16.msra.mxu0 0
        %2270 = vmatprep.subr.bf16.mxu0 0
        %2271 = vmatpush1.bf16.msra.mxu0 0
        %2272 = vmatprep.subr.bf16.mxu0 0
        %2273 = vmatpush1.bf16.msra.mxu0 0
        %2274 = vmatprep.subr.bf16.mxu0 0
        %2275 = vmatpush1.bf16.msra.mxu0 0
        %2276 = vmatprep.subr.bf16.mxu0 0
        %2277 = vmatpush1.bf16.msra.mxu0 0
        %2278 = vmatprep.subr.bf16.mxu0 0
        %2279 = vmatpush1.bf16.msra.mxu0 0
        %2280 = vmatprep.mubr.bf16.mxu0 0
        %2281 = vmatmul.mubr.bf16.gmra.mrb[0].mxu0 %v2246
        %v2282 = vpop.f32.mrb[0].mxu0
        %v2283 = vadd.f32 %v2231, %v2282
        %v2284 = vpop.f32.mrb[0].mxu0
        %v2285 = vpop.f32.mrb[0].mxu0
        %v2286 = vpop.f32.mrb[0].mxu0
        %2287 = vdwg.mxu0
        %v2288 = vld [vmem:[%s1166] sm:$0xff]
        %vm2289 = vcmp.gt.f32.partialorder %v2288, 0.0
        %v2290 = vmul.f32 %v2216, 0.35355338
        %v2291 = vpack.c.bf16 %v2290, %v2290
        %v2292 = vpack.c.bf16 %v2283, %v2283
        %v2294 = vsel %vm1586, %v2291, 0
        %v2297 = vsel %vm1586, %v2292, 0
        %2299 = vmatprep.subr.bf16.mxu0 0
        %2300 = vmatpush1.bf16.xpose.msra.mxu0 %v2297
        %2301 = vmatprep.subr.bf16.mxu0 0
        %2302 = vmatpush1.bf16.xpose.msra.mxu0 0
        %2303 = vmatprep.subr.bf16.mxu0 0
        %2304 = vmatpush1.bf16.xpose.msra.mxu0 0
        %2305 = vmatprep.subr.bf16.mxu0 0
        %2306 = vmatpush1.bf16.xpose.msra.mxu0 0
        %2307 = vmatprep.subr.bf16.mxu0 0
        %2308 = vmatpush1.bf16.xpose.msra.mxu0 0
        %2309 = vmatprep.subr.bf16.mxu0 0
        %2310 = vmatpush1.bf16.xpose.msra.mxu0 0
        %2311 = vmatprep.subr.bf16.mxu0 0
        %2312 = vmatpush1.bf16.xpose.msra.mxu0 0
        %2313 = vmatprep.subr.bf16.mxu0 0
        %2314 = vmatpush1.bf16.xpose.msra.mxu0 0
        %2315 = vmatprep.subr.bf16.mxu0 0
        %2316 = vmatpush1.bf16.xpose.msra.mxu0 0
        %2317 = vmatprep.subr.bf16.mxu0 0
        %2318 = vmatpush1.bf16.xpose.msra.mxu0 0
        %2319 = vmatprep.subr.bf16.mxu0 0
        %2320 = vmatpush1.bf16.xpose.msra.mxu0 0
        %2321 = vmatprep.subr.bf16.mxu0 0
        %2322 = vmatpush1.bf16.xpose.msra.mxu0 0
        %2323 = vmatprep.subr.bf16.mxu0 0
        %2324 = vmatpush1.bf16.xpose.msra.mxu0 0
        %2325 = vmatprep.subr.bf16.mxu0 0
        %2326 = vmatpush1.bf16.xpose.msra.mxu0 0
        %2327 = vmatprep.subr.bf16.mxu0 0
        %2328 = vmatpush1.bf16.xpose.msra.mxu0 0
        %2329 = vmatprep.subr.bf16.mxu0 0
        %2330 = vmatpush1.bf16.xpose.msra.mxu0 0
        %2331 = vmatprep.mubr.bf16.mxu0 0
        %2332 = vmatmul.mubr.bf16.gmra.mrb[0].mxu0 %v2294
        %v2333 = vpop.f32.mrb[0].mxu0
        %v2334 = vadd.f32 0.0, %v2333
        %v2335 = vpop.f32.mrb[0].mxu0
        %v2336 = vpop.f32.mrb[0].mxu0
        %v2337 = vpop.f32.mrb[0].mxu0
        %2338 = vdwg.mxu0
        %v2339 = vsel %vm2289, %v2334, -1e+09
        %v2340 = vsel %vm1586, %v2339, -inf
        %2341 = vmax.xlane.f32.xlu0 %v2340
        %v2342 = vpop.xlane.xlu0 %2341
        %v2343 = vsub.f32 %v2339, %v2342
        %v2344 = vmul.f32 %v2343, 1.442695
        %v2345 = vpow.pop %v2344
        %v2346 = vsel %vm1586, %v2345, 0.0
        %2347 = vadd.xlane.f32.xlu0 %v2346
        %v2348 = vpop.xlane.xlu0 %2347
        %v2349 = vrcp.pop %v2348
        %v2350 = vmul.f32 %v2345, %v2349
        %v2351 = vpack.c.bf16 %v2350, %v2350
        %2353 = vrot.lane.b32.xlu0 %v2292, 96
        %v2354 = vpop.permute.xlu0 %2353
        %v2356 = vsel %vm1586, %v2351, 0
        %v2359 = vsel %vm1651, %v2354, 0
        %2361 = vmatprep.subr.bf16.mxu0 0
        %2362 = vmatpush1.bf16.msra.mxu0 %v2359
        %2363 = vmatprep.subr.bf16.mxu0 0
        %2364 = vmatpush1.bf16.msra.mxu0 0
        %2365 = vmatprep.subr.bf16.mxu0 0
        %2366 = vmatpush1.bf16.msra.mxu0 0
        %2367 = vmatprep.subr.bf16.mxu0 0
        %2368 = vmatpush1.bf16.msra.mxu0 0
        %2369 = vmatprep.subr.bf16.mxu0 0
        %2370 = vmatpush1.bf16.msra.mxu0 0
        %2371 = vmatprep.subr.bf16.mxu0 0
        %2372 = vmatpush1.bf16.msra.mxu0 0
        %2373 = vmatprep.subr.bf16.mxu0 0
        %2374 = vmatpush1.bf16.msra.mxu0 0
        %2375 = vmatprep.subr.bf16.mxu0 0
        %2376 = vmatpush1.bf16.msra.mxu0 0
        %2377 = vmatprep.subr.bf16.mxu0 0
        %2378 = vmatpush1.bf16.msra.mxu0 0
        %2379 = vmatprep.subr.bf16.mxu0 0
        %2380 = vmatpush1.bf16.msra.mxu0 0
        %2381 = vmatprep.subr.bf16.mxu0 0
        %2382 = vmatpush1.bf16.msra.mxu0 0
        %2383 = vmatprep.subr.bf16.mxu0 0
        %2384 = vmatpush1.bf16.msra.mxu0 0
        %2385 = vmatprep.subr.bf16.mxu0 0
        %2386 = vmatpush1.bf16.msra.mxu0 0
        %2387 = vmatprep.subr.bf16.mxu0 0
        %2388 = vmatpush1.bf16.msra.mxu0 0
        %2389 = vmatprep.subr.bf16.mxu0 0
        %2390 = vmatpush1.bf16.msra.mxu0 0
        %2391 = vmatprep.subr.bf16.mxu0 0
        %2392 = vmatpush1.bf16.msra.mxu0 0
        %2393 = vmatprep.mubr.bf16.mxu0 0
        %2394 = vmatmul.mubr.bf16.gmra.mrb[0].mxu0 %v2356
        %v2395 = vpop.f32.mrb[0].mxu0
        %v2396 = vadd.f32 0.0, %v2395
        %v2397 = vpop.f32.mrb[0].mxu0
        %v2398 = vpop.f32.mrb[0].mxu0
        %v2399 = vpop.f32.mrb[0].mxu0
        %2400 = vdwg.mxu0
        %2401 = vst.msk [vmem:[#allocation3] sm:$0xff] %vm1586, %v2396
        %2403 = vrot.lane.b32.xlu0 %v2291, 120
        %v2404 = vpop.permute.xlu0 %2403
        %2405 = vrot.lane.b32.xlu0 %v2292, 120
        %v2406 = vpop.permute.xlu0 %2405
        %v2408 = vsel %vm1586, %v2404, 0
        %v2411 = vsel %vm1586, %v2406, 0
        %2413 = vmatprep.subr.bf16.mxu0 0
        %2414 = vmatpush1.bf16.xpose.msra.mxu0 %v2411
        %2415 = vmatprep.subr.bf16.mxu0 0
        %2416 = vmatpush1.bf16.xpose.msra.mxu0 0
        %2417 = vmatprep.subr.bf16.mxu0 0
        %2418 = vmatpush1.bf16.xpose.msra.mxu0 0
        %2419 = vmatprep.subr.bf16.mxu0 0
        %2420 = vmatpush1.bf16.xpose.msra.mxu0 0
        %2421 = vmatprep.subr.bf16.mxu0 0
        %2422 = vmatpush1.bf16.xpose.msra.mxu0 0
        %2423 = vmatprep.subr.bf16.mxu0 0
        %2424 = vmatpush1.bf16.xpose.msra.mxu0 0
        %2425 = vmatprep.subr.bf16.mxu0 0
        %2426 = vmatpush1.bf16.xpose.msra.mxu0 0
        %2427 = vmatprep.subr.bf16.mxu0 0
        %2428 = vmatpush1.bf16.xpose.msra.mxu0 0
        %2429 = vmatprep.subr.bf16.mxu0 0
        %2430 = vmatpush1.bf16.xpose.msra.mxu0 0
        %2431 = vmatprep.subr.bf16.mxu0 0
        %2432 = vmatpush1.bf16.xpose.msra.mxu0 0
        %2433 = vmatprep.subr.bf16.mxu0 0
        %2434 = vmatpush1.bf16.xpose.msra.mxu0 0
        %2435 = vmatprep.subr.bf16.mxu0 0
        %2436 = vmatpush1.bf16.xpose.msra.mxu0 0
        %2437 = vmatprep.subr.bf16.mxu0 0
        %2438 = vmatpush1.bf16.xpose.msra.mxu0 0
        %2439 = vmatprep.subr.bf16.mxu0 0
        %2440 = vmatpush1.bf16.xpose.msra.mxu0 0
        %2441 = vmatprep.subr.bf16.mxu0 0
        %2442 = vmatpush1.bf16.xpose.msra.mxu0 0
        %2443 = vmatprep.subr.bf16.mxu0 0
        %2444 = vmatpush1.bf16.xpose.msra.mxu0 0
        %2445 = vmatprep.mubr.bf16.mxu0 0
        %2446 = vmatmul.mubr.bf16.gmra.mrb[0].mxu0 %v2408
        %v2447 = vpop.f32.mrb[0].mxu0
        %v2448 = vadd.f32 0.0, %v2447
        %v2449 = vpop.f32.mrb[0].mxu0
        %v2450 = vpop.f32.mrb[0].mxu0
        %v2451 = vpop.f32.mrb[0].mxu0
        %2452 = vdwg.mxu0
        %v2453 = vsel %vm2289, %v2448, -1e+09
        %v2454 = vsel %vm1586, %v2453, -inf
        %2455 = vmax.xlane.f32.xlu0 %v2454
        %v2456 = vpop.xlane.xlu0 %2455
        %v2457 = vsub.f32 %v2453, %v2456
        %v2458 = vmul.f32 %v2457, 1.442695
        %v2459 = vpow.pop %v2458
        %v2460 = vsel %vm1586, %v2459, 0.0
        %2461 = vadd.xlane.f32.xlu0 %v2460
        %v2462 = vpop.xlane.xlu0 %2461
        %v2463 = vrcp.pop %v2462
        %v2464 = vmul.f32 %v2459, %v2463
        %v2465 = vpack.c.bf16 %v2464, %v2464
        %2466 = vrot.lane.b32.xlu0 %v2292, 88
        %v2467 = vpop.permute.xlu0 %2466
        %v2469 = vsel %vm1586, %v2465, 0
        %v2472 = vsel %vm1651, %v2467, 0
        %2474 = vmatprep.subr.bf16.mxu0 0
        %2475 = vmatpush1.bf16.msra.mxu0 %v2472
        %2476 = vmatprep.subr.bf16.mxu0 0
        %2477 = vmatpush1.bf16.msra.mxu0 0
        %2478 = vmatprep.subr.bf16.mxu0 0
        %2479 = vmatpush1.bf16.msra.mxu0 0
        %2480 = vmatprep.subr.bf16.mxu0 0
        %2481 = vmatpush1.bf16.msra.mxu0 0
        %2482 = vmatprep.subr.bf16.mxu0 0
        %2483 = vmatpush1.bf16.msra.mxu0 0
        %2484 = vmatprep.subr.bf16.mxu0 0
        %2485 = vmatpush1.bf16.msra.mxu0 0
        %2486 = vmatprep.subr.bf16.mxu0 0
        %2487 = vmatpush1.bf16.msra.mxu0 0
        %2488 = vmatprep.subr.bf16.mxu0 0
        %2489 = vmatpush1.bf16.msra.mxu0 0
        %2490 = vmatprep.subr.bf16.mxu0 0
        %2491 = vmatpush1.bf16.msra.mxu0 0
        %2492 = vmatprep.subr.bf16.mxu0 0
        %2493 = vmatpush1.bf16.msra.mxu0 0
        %2494 = vmatprep.subr.bf16.mxu0 0
        %2495 = vmatpush1.bf16.msra.mxu0 0
        %2496 = vmatprep.subr.bf16.mxu0 0
        %2497 = vmatpush1.bf16.msra.mxu0 0
        %2498 = vmatprep.subr.bf16.mxu0 0
        %2499 = vmatpush1.bf16.msra.mxu0 0
        %2500 = vmatprep.subr.bf16.mxu0 0
        %2501 = vmatpush1.bf16.msra.mxu0 0
        %2502 = vmatprep.subr.bf16.mxu0 0
        %2503 = vmatpush1.bf16.msra.mxu0 0
        %2504 = vmatprep.subr.bf16.mxu0 0
        %2505 = vmatpush1.bf16.msra.mxu0 0
        %2506 = vmatprep.mubr.bf16.mxu0 0
        %2507 = vmatmul.mubr.bf16.gmra.mrb[0].mxu0 %v2469
        %v2508 = vpop.f32.mrb[0].mxu0
        %v2509 = vadd.f32 0.0, %v2508
        %v2510 = vpop.f32.mrb[0].mxu0
        %v2511 = vpop.f32.mrb[0].mxu0
        %v2512 = vpop.f32.mrb[0].mxu0
        %2513 = vdwg.mxu0
        %2515 = vrot.lane.b32.xlu0 %v2509, 8
        %v2516 = vpop.permute.xlu0 %2515
        %2518 = vst.msk [vmem:[#allocation3] sm:$0xff] %vm1812, %v2516
        %2519 = vrot.lane.b32.xlu0 %v2291, 112
        %v2520 = vpop.permute.xlu0 %2519
        %2521 = vrot.lane.b32.xlu0 %v2292, 112
        %v2522 = vpop.permute.xlu0 %2521
        %v2524 = vsel %vm1586, %v2520, 0
        %v2527 = vsel %vm1586, %v2522, 0
        %2529 = vmatprep.subr.bf16.mxu0 0
        %2530 = vmatpush1.bf16.xpose.msra.mxu0 %v2527
        %2531 = vmatprep.subr.bf16.mxu0 0
        %2532 = vmatpush1.bf16.xpose.msra.mxu0 0
        %2533 = vmatprep.subr.bf16.mxu0 0
        %2534 = vmatpush1.bf16.xpose.msra.mxu0 0
        %2535 = vmatprep.subr.bf16.mxu0 0
        %2536 = vmatpush1.bf16.xpose.msra.mxu0 0
        %2537 = vmatprep.subr.bf16.mxu0 0
        %2538 = vmatpush1.bf16.xpose.msra.mxu0 0
        %2539 = vmatprep.subr.bf16.mxu0 0
        %2540 = vmatpush1.bf16.xpose.msra.mxu0 0
        %2541 = vmatprep.subr.bf16.mxu0 0
        %2542 = vmatpush1.bf16.xpose.msra.mxu0 0
        %2543 = vmatprep.subr.bf16.mxu0 0
        %2544 = vmatpush1.bf16.xpose.msra.mxu0 0
        %2545 = vmatprep.subr.bf16.mxu0 0
        %2546 = vmatpush1.bf16.xpose.msra.mxu0 0
        %2547 = vmatprep.subr.bf16.mxu0 0
        %2548 = vmatpush1.bf16.xpose.msra.mxu0 0
        %2549 = vmatprep.subr.bf16.mxu0 0
        %2550 = vmatpush1.bf16.xpose.msra.mxu0 0
        %2551 = vmatprep.subr.bf16.mxu0 0
        %2552 = vmatpush1.bf16.xpose.msra.mxu0 0
        %2553 = vmatprep.subr.bf16.mxu0 0
        %2554 = vmatpush1.bf16.xpose.msra.mxu0 0
        %2555 = vmatprep.subr.bf16.mxu0 0
        %2556 = vmatpush1.bf16.xpose.msra.mxu0 0
        %2557 = vmatprep.subr.bf16.mxu0 0
        %2558 = vmatpush1.bf16.xpose.msra.mxu0 0
        %2559 = vmatprep.subr.bf16.mxu0 0
        %2560 = vmatpush1.bf16.xpose.msra.mxu0 0
        %2561 = vmatprep.mubr.bf16.mxu0 0
        %2562 = vmatmul.mubr.bf16.gmra.mrb[0].mxu0 %v2524
        %v2563 = vpop.f32.mrb[0].mxu0
        %v2564 = vadd.f32 0.0, %v2563
        %v2565 = vpop.f32.mrb[0].mxu0
        %v2566 = vpop.f32.mrb[0].mxu0
        %v2567 = vpop.f32.mrb[0].mxu0
        %2568 = vdwg.mxu0
        %v2569 = vsel %vm2289, %v2564, -1e+09
        %v2570 = vsel %vm1586, %v2569, -inf
        %2571 = vmax.xlane.f32.xlu0 %v2570
        %v2572 = vpop.xlane.xlu0 %2571
        %v2573 = vsub.f32 %v2569, %v2572
        %v2574 = vmul.f32 %v2573, 1.442695
        %v2575 = vpow.pop %v2574
        %v2576 = vsel %vm1586, %v2575, 0.0
        %2577 = vadd.xlane.f32.xlu0 %v2576
        %v2578 = vpop.xlane.xlu0 %2577
        %v2579 = vrcp.pop %v2578
        %v2580 = vmul.f32 %v2575, %v2579
        %v2581 = vpack.c.bf16 %v2580, %v2580
        %2582 = vrot.lane.b32.xlu0 %v2292, 80
        %v2583 = vpop.permute.xlu0 %2582
        %v2585 = vsel %vm1586, %v2581, 0
        %v2588 = vsel %vm1651, %v2583, 0
        %2590 = vmatprep.subr.bf16.mxu0 0
        %2591 = vmatpush1.bf16.msra.mxu0 %v2588
        %2592 = vmatprep.subr.bf16.mxu0 0
        %2593 = vmatpush1.bf16.msra.mxu0 0
        %2594 = vmatprep.subr.bf16.mxu0 0
        %2595 = vmatpush1.bf16.msra.mxu0 0
        %2596 = vmatprep.subr.bf16.mxu0 0
        %2597 = vmatpush1.bf16.msra.mxu0 0
        %2598 = vmatprep.subr.bf16.mxu0 0
        %2599 = vmatpush1.bf16.msra.mxu0 0
        %2600 = vmatprep.subr.bf16.mxu0 0
        %2601 = vmatpush1.bf16.msra.mxu0 0
        %2602 = vmatprep.subr.bf16.mxu0 0
        %2603 = vmatpush1.bf16.msra.mxu0 0
        %2604 = vmatprep.subr.bf16.mxu0 0
        %2605 = vmatpush1.bf16.msra.mxu0 0
        %2606 = vmatprep.subr.bf16.mxu0 0
        %2607 = vmatpush1.bf16.msra.mxu0 0
        %2608 = vmatprep.subr.bf16.mxu0 0
        %2609 = vmatpush1.bf16.msra.mxu0 0
        %2610 = vmatprep.subr.bf16.mxu0 0
        %2611 = vmatpush1.bf16.msra.mxu0 0
        %2612 = vmatprep.subr.bf16.mxu0 0
        %2613 = vmatpush1.bf16.msra.mxu0 0
        %2614 = vmatprep.subr.bf16.mxu0 0
        %2615 = vmatpush1.bf16.msra.mxu0 0
        %2616 = vmatprep.subr.bf16.mxu0 0
        %2617 = vmatpush1.bf16.msra.mxu0 0
        %2618 = vmatprep.subr.bf16.mxu0 0
        %2619 = vmatpush1.bf16.msra.mxu0 0
        %2620 = vmatprep.subr.bf16.mxu0 0
        %2621 = vmatpush1.bf16.msra.mxu0 0
        %2622 = vmatprep.mubr.bf16.mxu0 0
        %2623 = vmatmul.mubr.bf16.gmra.mrb[0].mxu0 %v2585
        %v2624 = vpop.f32.mrb[0].mxu0
        %v2625 = vadd.f32 0.0, %v2624
        %v2626 = vpop.f32.mrb[0].mxu0
        %v2627 = vpop.f32.mrb[0].mxu0
        %v2628 = vpop.f32.mrb[0].mxu0
        %2629 = vdwg.mxu0
        %2631 = vrot.lane.b32.xlu0 %v2625, 16
        %v2632 = vpop.permute.xlu0 %2631
        %2634 = vst.msk [vmem:[#allocation3] sm:$0xff] %vm1929, %v2632
        %2635 = vrot.lane.b32.xlu0 %v2291, 104
        %v2636 = vpop.permute.xlu0 %2635
        %2637 = vrot.lane.b32.xlu0 %v2292, 104
        %v2638 = vpop.permute.xlu0 %2637
        %v2640 = vsel %vm1586, %v2636, 0
        %v2643 = vsel %vm1586, %v2638, 0
        %2645 = vmatprep.subr.bf16.mxu0 0
        %2646 = vmatpush1.bf16.xpose.msra.mxu0 %v2643
        %2647 = vmatprep.subr.bf16.mxu0 0
        %2648 = vmatpush1.bf16.xpose.msra.mxu0 0
        %2649 = vmatprep.subr.bf16.mxu0 0
        %2650 = vmatpush1.bf16.xpose.msra.mxu0 0
        %2651 = vmatprep.subr.bf16.mxu0 0
        %2652 = vmatpush1.bf16.xpose.msra.mxu0 0
        %2653 = vmatprep.subr.bf16.mxu0 0
        %2654 = vmatpush1.bf16.xpose.msra.mxu0 0
        %2655 = vmatprep.subr.bf16.mxu0 0
        %2656 = vmatpush1.bf16.xpose.msra.mxu0 0
        %2657 = vmatprep.subr.bf16.mxu0 0
        %2658 = vmatpush1.bf16.xpose.msra.mxu0 0
        %2659 = vmatprep.subr.bf16.mxu0 0
        %2660 = vmatpush1.bf16.xpose.msra.mxu0 0
        %2661 = vmatprep.subr.bf16.mxu0 0
        %2662 = vmatpush1.bf16.xpose.msra.mxu0 0
        %2663 = vmatprep.subr.bf16.mxu0 0
        %2664 = vmatpush1.bf16.xpose.msra.mxu0 0
        %2665 = vmatprep.subr.bf16.mxu0 0
        %2666 = vmatpush1.bf16.xpose.msra.mxu0 0
        %2667 = vmatprep.subr.bf16.mxu0 0
        %2668 = vmatpush1.bf16.xpose.msra.mxu0 0
        %2669 = vmatprep.subr.bf16.mxu0 0
        %2670 = vmatpush1.bf16.xpose.msra.mxu0 0
        %2671 = vmatprep.subr.bf16.mxu0 0
        %2672 = vmatpush1.bf16.xpose.msra.mxu0 0
        %2673 = vmatprep.subr.bf16.mxu0 0
        %2674 = vmatpush1.bf16.xpose.msra.mxu0 0
        %2675 = vmatprep.subr.bf16.mxu0 0
        %2676 = vmatpush1.bf16.xpose.msra.mxu0 0
        %2677 = vmatprep.mubr.bf16.mxu0 0
        %2678 = vmatmul.mubr.bf16.gmra.mrb[0].mxu0 %v2640
        %v2679 = vpop.f32.mrb[0].mxu0
        %v2680 = vadd.f32 0.0, %v2679
        %v2681 = vpop.f32.mrb[0].mxu0
        %v2682 = vpop.f32.mrb[0].mxu0
        %v2683 = vpop.f32.mrb[0].mxu0
        %2684 = vdwg.mxu0
        %v2685 = vsel %vm2289, %v2680, -1e+09
        %v2686 = vsel %vm1586, %v2685, -inf
        %2687 = vmax.xlane.f32.xlu0 %v2686
        %v2688 = vpop.xlane.xlu0 %2687
        %v2689 = vsub.f32 %v2685, %v2688
        %v2690 = vmul.f32 %v2689, 1.442695
        %v2691 = vpow.pop %v2690
        %v2692 = vsel %vm1586, %v2691, 0.0
        %2693 = vadd.xlane.f32.xlu0 %v2692
        %v2694 = vpop.xlane.xlu0 %2693
        %v2695 = vrcp.pop %v2694
        %v2696 = vmul.f32 %v2691, %v2695
        %v2697 = vpack.c.bf16 %v2696, %v2696
        %2698 = vrot.lane.b32.xlu0 %v2292, 72
        %v2699 = vpop.permute.xlu0 %2698
        %v2701 = vsel %vm1586, %v2697, 0
        %v2704 = vsel %vm1651, %v2699, 0
        %2706 = vmatprep.subr.bf16.mxu0 0
        %2707 = vmatpush1.bf16.msra.mxu0 %v2704
        %2708 = vmatprep.subr.bf16.mxu0 0
        %2709 = vmatpush1.bf16.msra.mxu0 0
        %2710 = vmatprep.subr.bf16.mxu0 0
        %2711 = vmatpush1.bf16.msra.mxu0 0
        %2712 = vmatprep.subr.bf16.mxu0 0
        %2713 = vmatpush1.bf16.msra.mxu0 0
        %2714 = vmatprep.subr.bf16.mxu0 0
        %2715 = vmatpush1.bf16.msra.mxu0 0
        %2716 = vmatprep.subr.bf16.mxu0 0
        %2717 = vmatpush1.bf16.msra.mxu0 0
        %2718 = vmatprep.subr.bf16.mxu0 0
        %2719 = vmatpush1.bf16.msra.mxu0 0
        %2720 = vmatprep.subr.bf16.mxu0 0
        %2721 = vmatpush1.bf16.msra.mxu0 0
        %2722 = vmatprep.subr.bf16.mxu0 0
        %2723 = vmatpush1.bf16.msra.mxu0 0
        %2724 = vmatprep.subr.bf16.mxu0 0
        %2725 = vmatpush1.bf16.msra.mxu0 0
        %2726 = vmatprep.subr.bf16.mxu0 0
        %2727 = vmatpush1.bf16.msra.mxu0 0
        %2728 = vmatprep.subr.bf16.mxu0 0
        %2729 = vmatpush1.bf16.msra.mxu0 0
        %2730 = vmatprep.subr.bf16.mxu0 0
        %2731 = vmatpush1.bf16.msra.mxu0 0
        %2732 = vmatprep.subr.bf16.mxu0 0
        %2733 = vmatpush1.bf16.msra.mxu0 0
        %2734 = vmatprep.subr.bf16.mxu0 0
        %2735 = vmatpush1.bf16.msra.mxu0 0
        %2736 = vmatprep.subr.bf16.mxu0 0
        %2737 = vmatpush1.bf16.msra.mxu0 0
        %2738 = vmatprep.mubr.bf16.mxu0 0
        %2739 = vmatmul.mubr.bf16.gmra.mrb[0].mxu0 %v2701
        %v2740 = vpop.f32.mrb[0].mxu0
        %v2741 = vadd.f32 0.0, %v2740
        %v2742 = vpop.f32.mrb[0].mxu0
        %v2743 = vpop.f32.mrb[0].mxu0
        %v2744 = vpop.f32.mrb[0].mxu0
        %2745 = vdwg.mxu0
        %2747 = vrot.lane.b32.xlu0 %v2741, 24
        %v2748 = vpop.permute.xlu0 %2747
        %2750 = vst.msk [vmem:[#allocation3] sm:$0xff] %vm2046, %v2748
        %v2751 = vld [vmem:[#allocation3] sm:$0xff]
        %v2752 = vpack.c.bf16 %v2751, %v2751
        %v2753 = vld [vmem:[%s1207] sm:$0xf]
        %v2754 = vld [vmem:[%s1207 + $0x4] sm:$0xf]
        %v2755 = vld [vmem:[%s1207 + $0x8] sm:$0xf]
        %v2756 = vld [vmem:[%s1207 + $0xc] sm:$0xf]
        %v2757 = vld [vmem:[%s1215] sm:$0x1]
        %v2759 = vlaneseq
        %v2760 = vshrl.u32 %v2759, 7
        %v2761 = vsub.s32 0, %v2760
        %v2762 = vrot.slane %v2757, %v2761
        %v2768 = vunpack.c.l.b16 %v2753
        %v2769 = vunpack.c.l.b16 %v2754
        %v2770 = vunpack.c.l.b16 %v2755
        %v2771 = vunpack.c.l.b16 %v2756
        %v2772 = vpack.c.b16 %v2769, %v2768
        %v2773 = vpack.c.b16 %v2771, %v2770
        %v2777 = vsel %vm1475, %v2752, 0
        %2779 = vmatprep.subr.bf16.mxu0 0
        %2780 = vmatpush1.bf16.msra.mxu0 %v2772
        %2781 = vmatprep.subr.bf16.mxu0 0
        %2782 = vmatpush1.bf16.msra.mxu0 %v2773
        %2783 = vmatprep.subr.bf16.mxu0 0
        %2784 = vmatpush1.bf16.msra.mxu0 0
        %2785 = vmatprep.subr.bf16.mxu0 0
        %2786 = vmatpush1.bf16.msra.mxu0 0
        %2787 = vmatprep.subr.bf16.mxu0 0
        %2788 = vmatpush1.bf16.msra.mxu0 0
        %2789 = vmatprep.subr.bf16.mxu0 0
        %2790 = vmatpush1.bf16.msra.mxu0 0
        %2791 = vmatprep.subr.bf16.mxu0 0
        %2792 = vmatpush1.bf16.msra.mxu0 0
        %2793 = vmatprep.subr.bf16.mxu0 0
        %2794 = vmatpush1.bf16.msra.mxu0 0
        %2795 = vmatprep.subr.bf16.mxu0 0
        %2796 = vmatpush1.bf16.msra.mxu0 0
        %2797 = vmatprep.subr.bf16.mxu0 0
        %2798 = vmatpush1.bf16.msra.mxu0 0
        %2799 = vmatprep.subr.bf16.mxu0 0
        %2800 = vmatpush1.bf16.msra.mxu0 0
        %2801 = vmatprep.subr.bf16.mxu0 0
        %2802 = vmatpush1.bf16.msra.mxu0 0
        %2803 = vmatprep.subr.bf16.mxu0 0
        %2804 = vmatpush1.bf16.msra.mxu0 0
        %2805 = vmatprep.subr.bf16.mxu0 0
        %2806 = vmatpush1.bf16.msra.mxu0 0
        %2807 = vmatprep.subr.bf16.mxu0 0
        %2808 = vmatpush1.bf16.msra.mxu0 0
        %2809 = vmatprep.subr.bf16.mxu0 0
        %2810 = vmatpush1.bf16.msra.mxu0 0
        %2811 = vmatprep.mubr.bf16.mxu0 0
        %2812 = vmatmul.mubr.bf16.gmra.mrb[0].mxu0 %v2777
        %v2813 = vpop.f32.mrb[0].mxu0
        %v2814 = vadd.f32 %v2762, %v2813
        %v2815 = vpop.f32.mrb[0].mxu0
        %v2816 = vpop.f32.mrb[0].mxu0
        %v2817 = vpop.f32.mrb[0].mxu0
        %2818 = vdwg.mxu0
        %v2819 = vadd.f32 %v2116, %v2814
        %v2820 = vld [vmem:[%s1223] sm:$0x1]
        %v2821 = vld [vmem:[%s1231] sm:$0x1]
        %v2822 = vsel %vm1475, %v2819, 0.0
        %2823 = vadd.xlane.f32.xlu0 %v2822
        %v2824 = vpop.xlane.xlu0 %2823
        %v2825 = vmul.f32 %v2824, %v1479
        %v2826 = vsub.f32 %v2819, %v2825
        %v2827 = vmul.f32 %v2826, %v2826
        %v2828 = vsel %vm1475, %v2827, 0.0
        %2829 = vadd.xlane.f32.xlu0 %v2828
        %v2830 = vpop.xlane.xlu0 %2829
        %v2831 = vmul.f32 %v2830, 0.032258064
        %v2832 = vrsqrt.pop %v2831
        %v2833 = vmul.f32 %v2831, %v2832
        %vm2834 = vcmp.eq.f32.partialorder %v2831, inf
        %v2835 = vsel %vm2834, %v2831, %v2833
        %vm2836 = vcmp.eq.f32.partialorder %v2831, 0.0
        %v2837 = vand.u32 %v2831, 2147483648
        %v2838 = vsel %vm2836, %v2837, %v2835
        %v2839 = vadd.f32 %v2838, 1e-06
        %v2840 = vrcp.pop %v2839
        %v2841 = vmul.f32 %v2826, %v2840
        %v2843 = vlaneseq
        %v2844 = vshrl.u32 %v2843, 7
        %v2845 = vsub.s32 0, %v2844
        %v2846 = vrot.slane %v2820, %v2845
        %v2848 = vmul.f32 %v2846, %v2841
        %v2850 = vlaneseq
        %v2851 = vshrl.u32 %v2850, 7
        %v2852 = vsub.s32 0, %v2851
        %v2853 = vrot.slane %v2821, %v2852
        %v2855 = vadd.f32 %v2848, %v2853
        %v2856 = vpack.c.bf16 %v2855, %v2855
        %v2857 = vld [vmem:[%s1240] sm:$0xf]
        %v2858 = vld [vmem:[%s1240 + $0x4] sm:$0xf]
        %v2859 = vld [vmem:[%s1240 + $0x8] sm:$0xf]
        %v2860 = vld [vmem:[%s1240 + $0xc] sm:$0xf]
        %v2861 = vld [vmem:[%s1248] sm:$0x1]
        %v2863 = vlaneseq
        %v2864 = vshrl.u32 %v2863, 7
        %v2865 = vsub.s32 0, %v2864
        %v2866 = vrot.slane %v2861, %v2865
        %v2872 = vunpack.c.l.b16 %v2857
        %v2873 = vunpack.c.l.b16 %v2858
        %v2874 = vunpack.c.l.b16 %v2859
        %v2875 = vunpack.c.l.b16 %v2860
        %v2876 = vpack.c.b16 %v2873, %v2872
        %v2877 = vpack.c.b16 %v2875, %v2874
        %v2881 = vsel %vm1475, %v2856, 0
        %2883 = vmatprep.subr.bf16.mxu0 0
        %2884 = vmatpush1.bf16.msra.mxu0 %v2876
        %2885 = vmatprep.subr.bf16.mxu0 0
        %2886 = vmatpush1.bf16.msra.mxu0 %v2877
        %2887 = vmatprep.subr.bf16.mxu0 0
        %2888 = vmatpush1.bf16.msra.mxu0 0
        %2889 = vmatprep.subr.bf16.mxu0 0
        %2890 = vmatpush1.bf16.msra.mxu0 0
        %2891 = vmatprep.subr.bf16.mxu0 0
        %2892 = vmatpush1.bf16.msra.mxu0 0
        %2893 = vmatprep.subr.bf16.mxu0 0
        %2894 = vmatpush1.bf16.msra.mxu0 0
        %2895 = vmatprep.subr.bf16.mxu0 0
        %2896 = vmatpush1.bf16.msra.mxu0 0
        %2897 = vmatprep.subr.bf16.mxu0 0
        %2898 = vmatpush1.bf16.msra.mxu0 0
        %2899 = vmatprep.subr.bf16.mxu0 0
        %2900 = vmatpush1.bf16.msra.mxu0 0
        %2901 = vmatprep.subr.bf16.mxu0 0
        %2902 = vmatpush1.bf16.msra.mxu0 0
        %2903 = vmatprep.subr.bf16.mxu0 0
        %2904 = vmatpush1.bf16.msra.mxu0 0
        %2905 = vmatprep.subr.bf16.mxu0 0
        %2906 = vmatpush1.bf16.msra.mxu0 0
        %2907 = vmatprep.subr.bf16.mxu0 0
        %2908 = vmatpush1.bf16.msra.mxu0 0
        %2909 = vmatprep.subr.bf16.mxu0 0
        %2910 = vmatpush1.bf16.msra.mxu0 0
        %2911 = vmatprep.subr.bf16.mxu0 0
        %2912 = vmatpush1.bf16.msra.mxu0 0
        %2913 = vmatprep.subr.bf16.mxu0 0
        %2914 = vmatpush1.bf16.msra.mxu0 0
        %2915 = vmatprep.mubr.bf16.mxu0 0
        %2916 = vmatmul.mubr.bf16.gmra.mrb[0].mxu0 %v2881
        %v2917 = vpop.f32.mrb[0].mxu0
        %v2918 = vadd.f32 %v2866, %v2917
        %v2919 = vpop.f32.mrb[0].mxu0
        %v2920 = vpop.f32.mrb[0].mxu0
        %v2921 = vpop.f32.mrb[0].mxu0
        %2922 = vdwg.mxu0
        %v2923 = vmax.f32 %v2918, 0.0
        %v2924 = vpack.c.bf16 %v2923, %v2923
        %v2925 = vld [vmem:[%s1463] sm:$0xf]
        %v2926 = vld [vmem:[%s1463 + $0x4] sm:$0xf]
        %v2927 = vld [vmem:[%s1463 + $0x8] sm:$0xf]
        %v2928 = vld [vmem:[%s1463 + $0xc] sm:$0xf]
        %v2929 = vld [vmem:[%s1463 + $0x10] sm:$0xf]
        %v2930 = vld [vmem:[%s1463 + $0x14] sm:$0xf]
        %v2931 = vld [vmem:[%s1463 + $0x18] sm:$0xf]
        %v2932 = vld [vmem:[%s1463 + $0x1c] sm:$0xf]
        %v2933 = vld [vmem:[%s1256] sm:$0x1]
        %v2935 = vlaneseq
        %v2936 = vshrl.u32 %v2935, 7
        %v2937 = vsub.s32 0, %v2936
        %v2938 = vrot.slane %v2933, %v2937
        %v2948 = vunpack.c.l.b16 %v2925
        %v2949 = vunpack.c.l.b16 %v2926
        %v2950 = vunpack.c.l.b16 %v2927
        %v2951 = vunpack.c.l.b16 %v2928
        %v2952 = vunpack.c.l.b16 %v2929
        %v2953 = vunpack.c.l.b16 %v2930
        %v2954 = vunpack.c.l.b16 %v2931
        %v2955 = vunpack.c.l.b16 %v2932
        %v2956 = vpack.c.b16 %v2949, %v2948
        %v2957 = vpack.c.b16 %v2951, %v2950
        %v2958 = vpack.c.b16 %v2953, %v2952
        %v2959 = vpack.c.b16 %v2955, %v2954
        %vm2964 = vcmask 523264
        %v2966 = vsel %vm2964, %v2924, 0
        %2968 = vmatprep.subr.bf16.mxu0 0
        %2969 = vmatpush1.bf16.msra.mxu0 %v2956
        %2970 = vmatprep.subr.bf16.mxu0 0
        %2971 = vmatpush1.bf16.msra.mxu0 %v2957
        %2972 = vmatprep.subr.bf16.mxu0 0
        %2973 = vmatpush1.bf16.msra.mxu0 %v2958
        %2974 = vmatprep.subr.bf16.mxu0 0
        %2975 = vmatpush1.bf16.msra.mxu0 %v2959
        %2976 = vmatprep.subr.bf16.mxu0 0
        %2977 = vmatpush1.bf16.msra.mxu0 0
        %2978 = vmatprep.subr.bf16.mxu0 0
        %2979 = vmatpush1.bf16.msra.mxu0 0
        %2980 = vmatprep.subr.bf16.mxu0 0
        %2981 = vmatpush1.bf16.msra.mxu0 0
        %2982 = vmatprep.subr.bf16.mxu0 0
        %2983 = vmatpush1.bf16.msra.mxu0 0
        %2984 = vmatprep.subr.bf16.mxu0 0
        %2985 = vmatpush1.bf16.msra.mxu0 0
        %2986 = vmatprep.subr.bf16.mxu0 0
        %2987 = vmatpush1.bf16.msra.mxu0 0
        %2988 = vmatprep.subr.bf16.mxu0 0
        %2989 = vmatpush1.bf16.msra.mxu0 0
        %2990 = vmatprep.subr.bf16.mxu0 0
        %2991 = vmatpush1.bf16.msra.mxu0 0
        %2992 = vmatprep.subr.bf16.mxu0 0
        %2993 = vmatpush1.bf16.msra.mxu0 0
        %2994 = vmatprep.subr.bf16.mxu0 0
        %2995 = vmatpush1.bf16.msra.mxu0 0
        %2996 = vmatprep.subr.bf16.mxu0 0
        %2997 = vmatpush1.bf16.msra.mxu0 0
        %2998 = vmatprep.subr.bf16.mxu0 0
        %2999 = vmatpush1.bf16.msra.mxu0 0
        %3000 = vmatprep.mubr.bf16.mxu0 0
        %3001 = vmatmul.mubr.bf16.gmra.mrb[0].mxu0 %v2966
        %v3002 = vpop.f32.mrb[0].mxu0
        %v3003 = vadd.f32 %v2938, %v3002
        %v3004 = vpop.f32.mrb[0].mxu0
        %v3005 = vpop.f32.mrb[0].mxu0
        %v3006 = vpop.f32.mrb[0].mxu0
        %3007 = vdwg.mxu0
        %v3008 = vadd.f32 %v2819, %v3003
        %3009 = vst.msk [vmem:[#allocation2] sm:$0xff] %vm1475, %v3008
        %p3010 = scmp.eq.s32.totalorder %s70, 1
        // Predicated region
        $region193: #{transformer_decoder_forward.1} parent=123 // pred_check
          %p3011 = pneg %p3010
        $region194: #{transformer_decoder_forward.1} parent=123 // pred_check_branch
          %3013 = sbr.rel (%p3011) target = $region196
        $region195: #{transformer_decoder_forward.1} parent=123 // pred_region
          %v3014 = vld [vmem:[#allocation28] sm:$0x1]
          %v3015 = vld [vmem:[%s25] sm:$0x1]
          %v3016 = vsel %vm1475, %v3008, 0.0
          %3017 = vadd.xlane.f32.xlu0 %v3016
          %v3018 = vpop.xlane.xlu0 %3017
          %v3019 = vmul.f32 %v3018, %v1479
          %v3020 = vsub.f32 %v3008, %v3019
          %v3021 = vmul.f32 %v3020, %v3020
          %v3022 = vsel %vm1475, %v3021, 0.0
          %3023 = vadd.xlane.f32.xlu0 %v3022
          %v3024 = vpop.xlane.xlu0 %3023
          %v3025 = vmul.f32 %v3024, 0.032258064
          %v3026 = vrsqrt.pop %v3025
          %v3027 = vmul.f32 %v3025, %v3026
          %vm3028 = vcmp.eq.f32.partialorder %v3025, inf
          %v3029 = vsel %vm3028, %v3025, %v3027
          %vm3030 = vcmp.eq.f32.partialorder %v3025, 0.0
          %v3031 = vand.u32 %v3025, 2147483648
          %v3032 = vsel %vm3030, %v3031, %v3029
          %v3033 = vadd.f32 %v3032, 1e-06
          %v3034 = vrcp.pop %v3033
          %v3035 = vmul.f32 %v3020, %v3034
          %v3037 = vlaneseq
          %v3038 = vshrl.u32 %v3037, 7
          %v3039 = vsub.s32 0, %v3038
          %v3040 = vrot.slane %v3014, %v3039
          %v3042 = vmul.f32 %v3040, %v3035
          %v3044 = vlaneseq
          %v3045 = vshrl.u32 %v3044, 7
          %v3046 = vsub.s32 0, %v3045
          %v3047 = vrot.slane %v3015, %v3046
          %v3049 = vadd.f32 %v3042, %v3047
          %3050 = vst.msk [vmem:[%s1426] sm:$0xff] %vm1475, %v3049
        $region196: #{transformer_decoder_forward.1} parent=123 // pred_fallthru
          _
        %s3051 = sand.u32 %s751, 1
        %s3052 = scalar_lea.sflag [#allocation6], %s3051
        %s3053 = sand.u32 %s751, 1
        %s3054 = smul.addr %s3053, 8
        %s3055 = scalar_lea.vmem [#allocation30], %s3054
        // Predicated region
        $region197: #{transformer_decoder_forward.1} parent=123 // pred_check
          %p3056 = pneg %p761
        $region198: #{transformer_decoder_forward.1} parent=123 // pred_check_branch
          %3058 = sbr.rel (%p3056) target = $region200
        $region199: #{transformer_decoder_forward.1} parent=123 // pred_region
          %s3060 = ssub.s32 128, 128
          %3061 = vsyncadd %s3052, %s3060
          %s3062 = smul.addr %s69, 128
          %s3063 = scalar_lea.hbm %s26, %s3062
          %s3065 = sshll.u32 %s3055, 4
          %s3066 = int_to_ptr.vmem [resolvable:$true] %s3065
          %3068 = dma.vmem_to_hbm [thread:$0]  %s3066, 128, %s3063, %s3052
        $region200: #{transformer_decoder_forward.1} parent=123 // pred_fallthru
          _
      $region124: #{transformer_decoder_forward.1} parent=5 // pred_fallthru
        _
      %p3069 = scmp.le.s32.totalorder 2, %s60
      // Predicated region
      $region201: #{transformer_decoder_forward.1} parent=5 // pred_check
        %p3070 = pneg %p3069
      $region202: #{transformer_decoder_forward.1} parent=5 // pred_check_branch
        %3072 = sbr.rel (%p3070) target = $region204
      $region203: #{transformer_decoder_forward.1} parent=5 // pred_region
        %s3073 = ssub.s32 %s60, 2
        // Predicated region
        $region205: #{transformer_decoder_forward.1} parent=203 // pred_check
          %p3074 = pneg %p767
        $region206: #{transformer_decoder_forward.1} parent=203 // pred_check_branch
          %3076 = sbr.rel (%p3074) target = $region208
        $region207: #{transformer_decoder_forward.1} parent=203 // pred_region
          %s3077 = sand.u32 %s752, 1
          %s3078 = scalar_lea.sflag [#allocation6], %s3077
          %s3079 = sand.u32 %s752, 1
          %s3080 = smul.addr %s3079, 8
          %s3081 = scalar_lea.vmem [#allocation30], %s3080
          %3082 = dma.done %s3078, 128
        $region208: #{transformer_decoder_forward.1} parent=203 // pred_fallthru
          _
      $region204: #{transformer_decoder_forward.1} parent=5 // pred_fallthru
        _
    $region6: #{transformer_decoder_forward.1} parent=1 // loop_footer
      %s64 = sadd.s32 1, %s60
    $region7: #{transformer_decoder_forward.1} parent=1 // loop_footer_branch
      %59 = sbr.rel target = $region3
    $region8: #{transformer_decoder_forward.1} parent=1 // loop_exit
      _
    %3083 = vsyncpa [#allocation5], 1
    %s3084 = scalar_lea.sflag [#allocation5], 1
    %3085 = vsyncpa %s3084, 1
    %3086 = vsyncpa [#allocation8], 1
    %s3087 = scalar_lea.sflag [#allocation8], 1
    %3088 = vsyncpa %s3087, 1
    %3089 = vsyncpa [#allocation11], 1
    %s3090 = scalar_lea.sflag [#allocation11], 1
    %3091 = vsyncpa %s3090, 1
    %3092 = vsyncpa [#allocation14], 1
    %s3093 = scalar_lea.sflag [#allocation14], 1
    %3094 = vsyncpa %s3093, 1
    %3095 = vsyncpa [#allocation17], 1
    %s3096 = scalar_lea.sflag [#allocation17], 1
    %3097 = vsyncpa %s3096, 1
    %3098 = vsyncpa [#allocation20], 1
    %s3099 = scalar_lea.sflag [#allocation20], 1
    %3100 = vsyncpa %s3099, 1
    %3101 = vsyncpa [#allocation23], 1
    %s3102 = scalar_lea.sflag [#allocation23], 1
    %3103 = vsyncpa %s3102, 1
    %3104 = vsyncpa [#allocation26], 1
    %s3105 = scalar_lea.sflag [#allocation26], 1
    %3106 = vsyncpa %s3105, 1
    %3107 = vsyncpa [#allocation29], 1
    %3108 = vsyncpa [#allocation6], 1
    %s3109 = scalar_lea.sflag [#allocation6], 1
    %3110 = vsyncpa %s3109, 1

</llo_original>
